<compile_context>
chip_gen: v6e
topology: v6e:2x2x1
jax: 0.10.0
libtpu: 0.0.40
codegen_flags: <defaults>
</compile_context>

<pallas_src>
import jax
import jax.numpy as jnp
from jax import lax
from jax.experimental import pallas as pl
from jax.experimental.pallas import tpu as pltpu

# ---- model hyper-parameters (ConformerBlock(dim=128, heads=4)) ----
D = 128          # model dim
H = 4            # attention heads
DH = D // H      # head dim
FF = 4           # ff mult
CE = 2           # conv expansion
C2 = D * CE      # expanded conv channels
K = 31           # depthwise kernel size
PAD = K // 2
EPS = 1e-5

B = 2            # batch
S = 8            # sequence length
BS = B * S

assert PAD >= S - 1  # banded depthwise-conv formulation below relies on this

# row indices into the packed (18, D) small-vector bundle
NF1_G, NF1_B, F1_LN_G, F1_LN_B, F1_B2 = 0, 1, 2, 3, 4
NMHA_G, NMHA_B, BO = 5, 6, 7
NCV_G, NCV_B, PW2_B = 8, 9, 10
NF2_G, NF2_B, F2_LN_G, F2_LN_B, F2_B2 = 11, 12, 13, 14, 15
NFIN_G, NFIN_B = 16, 17


def _layer_norm(x, g, b):
    mu = jnp.mean(x, axis=-1, keepdims=True)
    xc = x - mu
    var = jnp.mean(xc * xc, axis=-1, keepdims=True)
    return xc * lax.rsqrt(var + EPS) * g + b


def _silu(x):
    # x * sigmoid(x); sigmoid(x) = 0.5*(tanh(x/2)+1) keeps the transcendental on the EUP.
    return x * (0.5 * jnp.tanh(0.5 * x) + 0.5)


def _softmax(x):
    m = jnp.max(x, axis=-1, keepdims=True)
    e = jnp.exp(x - m)
    s = jnp.sum(e, axis=-1, keepdims=True)
    return e * pl.reciprocal(s, approx=True)   # divide on the EUP slot


def conformer_kernel(
    x_ref,                                   # (B*S, D) f32
    f1_w1, f1_w2,                            # FF1 linear weights (bf16)
    wqkv, wo,                                # attention projections (bf16, q-scale pre-folded)
    pw1_w, band_w, pw2_w,                    # conv module: pointwise (bf16) / banded depthwise (f32) / pointwise (bf16)
    f2_w1, f2_w2,                            # FF2 linear weights (bf16)
    vecD, vecC2, vecFF, bqkv,                # packed small vectors (f32)
    kmask, vmask, attn_bias,                 # precomputed attention masks / block-diag bias (f32)
    out_ref,                                 # (B*S, D) f32
):
    x = x_ref[...]                                           # (BS, D) f32

    def vd(i):
        return vecD[i:i + 1, :]                              # (1, D)

    def vc2(i):
        return vecC2[i:i + 1, :]                             # (1, C2)

    def bf(h):
        return h.astype(jnp.bfloat16)                        # bf16 operand for MXU dots

    def feed_forward(h, ln_g, ln_b, w1, b1, w2, b2):
        h = _layer_norm(h, ln_g, ln_b)
        h = jnp.dot(bf(h), w1[...], preferred_element_type=jnp.float32) + b1
        h = _silu(h)
        # TODO(synk): dropout is identity (eval-mode semantics)
        h = jnp.dot(bf(h), w2[...], preferred_element_type=jnp.float32) + b2
        return h

    # ---------- FF1 half-step (norm_ff1 AND the FF module's own LN, as in the reference) ----------
    h = _layer_norm(x, vd(NF1_G), vd(NF1_B))
    h = feed_forward(h, vd(F1_LN_G), vd(F1_LN_B), f1_w1, vecFF[0:1, :], f1_w2, vd(F1_B2))
    x = x + 0.5 * h

    # ---------- Multi-head self-attention (fused score and P@V matmuls) ----------
    # Scores for all heads in one (BS, D) @ (D, H*BS) matmul against a head-row-masked,
    # lane-tiled K; cross-sample attention is forbidden via the precomputed block-diagonal
    # additive bias; per-head softmax on each BS-column block; one (BS, H*BS) @ (H*BS, D)
    # matmul against a head-lane-masked, sublane-tiled V yields the concatenated head outputs.
    h = _layer_norm(x, vd(NMHA_G), vd(NMHA_B))
    qkv = jnp.dot(bf(h), wqkv[...], preferred_element_type=jnp.float32) + bqkv[...]
    q2 = qkv[:, :D]                                          # (BS, D), scale pre-folded
    k2 = qkv[:, D:2 * D]
    v2 = qkv[:, 2 * D:]

    k2t = k2.T                                               # (D, BS), single hoisted transpose
    k_big = jnp.concatenate([k2t] * H, axis=1) * kmask[...]  # (D, H*BS), head-row masked
    v_big = jnp.concatenate([v2] * H, axis=0) * vmask[...]   # (H*BS, D), head-lane masked

    s_all = jnp.dot(q2, k_big, preferred_element_type=jnp.float32) + attn_bias[...]  # (BS, H*BS)
    p_parts = [_softmax(s_all[:, hh * BS:(hh + 1) * BS]) for hh in range(H)]
    p_all = jnp.concatenate(p_parts, axis=1)                  # (BS, H*BS)

    attn = jnp.dot(p_all, v_big, preferred_element_type=jnp.float32)                 # (BS, D)
    attn = jnp.dot(bf(attn), wo[...], preferred_element_type=jnp.float32) + vd(BO)
    x = x + attn

    # ---------- Conv module ----------
    h = _layer_norm(x, vd(NCV_G), vd(NCV_B))
    # pointwise conv1 (kernel_size=1) == matmul in channels-last layout
    h = jnp.dot(bf(h), pw1_w[...], preferred_element_type=jnp.float32) + vc2(0)       # (BS, C2)
    # depthwise conv as a banded weighted sum over each sample's S input rows
    # (since PAD >= S-1 these are the only taps that can ever touch non-zero data);
    # 16 row reads is the minimum, FMAs stay on aligned (S, C2) slabs.
    sample_outs = []
    for bb in range(B):
        hb = h[bb * S:(bb + 1) * S, :]                        # (S, C2), aligned slab
        accb = hb[0:1, :] * band_w[0:S, :]
        for s_in in range(1, S):
            accb = accb + hb[s_in:s_in + 1, :] * band_w[s_in * S:(s_in + 1) * S, :]
        sample_outs.append(accb)
    h = jnp.concatenate(sample_outs, axis=0)                  # (BS, C2), aligned concat
    # eval-mode BatchNorm (+ depthwise bias), folded into one affine in pack_params
    h = h * vc2(1) + vc2(2)
    h = _silu(h)
    # pointwise conv2 (kernel_size=1)
    h = jnp.dot(bf(h), pw2_w[...], preferred_element_type=jnp.float32) + vd(PW2_B)
    x = x + h

    # ---------- FF2 half-step ----------
    h = _layer_norm(x, vd(NF2_G), vd(NF2_B))
    h = feed_forward(h, vd(F2_LN_G), vd(F2_LN_B), f2_w1, vecFF[1:2, :], f2_w2, vd(F2_B2))
    x = x + 0.5 * h

    # ---------- final LayerNorm ----------
    out_ref[...] = _layer_norm(x, vd(NFIN_G), vd(NFIN_B))


def pack_params(params):
    """One-time parameter packing/folding. Call at model load, NOT per forward call."""
    (nf1_g, nf1_b, f1_ln_g, f1_ln_b, f1_w1, f1_b1, f1_w2, f1_b2,
     nmha_g, nmha_b, wqkv, bqkv, wo, bo,
     ncv_g, ncv_b, pw1_w, pw1_b, dw_w, dw_b,
     bn_g, bn_b, bn_rm, bn_rv, pw2_w, pw2_b,
     nf2_g, nf2_b, f2_ln_g, f2_ln_b, f2_w1, f2_b1, f2_w2, f2_b2,
     nfin_g, nfin_b) = params

    # fold the 1/sqrt(head_dim) attention scale into the q columns of the qkv projection
    qscale = jnp.concatenate(
        [jnp.full((1, D), 1.0 / (DH ** 0.5), jnp.float32),
         jnp.ones((1, 2 * D), jnp.float32)], axis=1)
    wqkv_s = wqkv * qscale
    bqkv_s = bqkv * qscale

    # banded depthwise-conv weights: band[s_in*S + s_out, c] = dw_w[PAD + s_in - s_out, c]
    kk = PAD + jnp.arange(S)[:, None] - jnp.arange(S)[None, :]        # (S_in, S_out), all in [0, K)
    band = dw_w[kk].reshape(S * S, C2)                                # stays f32 (VALU operand)

    # fold eval-mode BatchNorm (running stats) and the depthwise bias into one affine
    conv_scale = bn_g * lax.rsqrt(bn_rv + EPS)
    conv_shift = (dw_b - bn_rm) * conv_scale + bn_b

    vecD = jnp.concatenate(
        [nf1_g, nf1_b, f1_ln_g, f1_ln_b, f1_b2,
         nmha_g, nmha_b, bo,
         ncv_g, ncv_b, pw2_b,
         nf2_g, nf2_b, f2_ln_g, f2_ln_b, f2_b2,
         nfin_g, nfin_b], axis=0)                                     # (18, D)
    vecC2 = jnp.concatenate([pw1_b, conv_scale, conv_shift], axis=0)  # (3, C2)
    vecFF = jnp.concatenate([f1_b1, f2_b1], axis=0)                   # (2, 4D)

    # precomputed attention masks (0/1) and block-diagonal batch bias, tiled per head
    row_k = jnp.arange(D)[:, None]
    col_k = jnp.arange(H * BS)[None, :]
    kmask = ((row_k // DH) == (col_k // BS)).astype(jnp.float32)      # (D, H*BS)
    row_v = jnp.arange(H * BS)[:, None]
    col_v = jnp.arange(D)[None, :]
    vmask = ((row_v // BS) == (col_v // DH)).astype(jnp.float32)      # (H*BS, D)
    ri = jnp.arange(BS)[:, None]
    ci = jnp.arange(BS)[None, :]
    same_sample = (ri // S) == (ci // S)
    bias = jnp.where(same_sample, 0.0, -1e30).astype(jnp.float32)     # (BS, BS)
    attn_bias = jnp.tile(bias, (1, H))                                # (BS, H*BS)

    b16 = lambda w: w.astype(jnp.bfloat16)   # MXU weights in bf16 (halves weight DMA)
    return [b16(f1_w1), b16(f1_w2), b16(wqkv_s), b16(wo),
            b16(pw1_w), band, b16(pw2_w), b16(f2_w1), b16(f2_w2),
            vecD, vecC2, vecFF, bqkv_s, kmask, vmask, attn_bias]


@jax.jit
def conformer_block(x, packed):
    b, s, d = x.shape
    assert (b, s, d) == (B, S, D)
    x2 = x.reshape(b * s, d)                      # free, wrapper-side reshape
    n_in = 1 + len(packed)
    y2 = pl.pallas_call(
        conformer_kernel,
        out_shape=jax.ShapeDtypeStruct((b * s, d), jnp.float32),
        in_specs=[pl.BlockSpec(memory_space=pltpu.MemorySpace.VMEM)] * n_in,
        out_specs=pl.BlockSpec(memory_space=pltpu.MemorySpace.VMEM),
        compiler_params=pltpu.CompilerParams(vmem_limit_bytes=16 << 20),
    )(x2, *packed)
    return y2.reshape(b, s, d)


def init_params(key):
    ks = iter(jax.random.split(key, 64))

    def unif(shape, scale):
        return jax.random.uniform(next(ks), shape, jnp.float32, -1.0, 1.0) * scale

    def ln(d):
        g = 1.0 + 0.02 * jax.random.normal(next(ks), (1, d), jnp.float32)
        b = 0.02 * jax.random.normal(next(ks), (1, d), jnp.float32)
        return g, b

    def lin(fi, fo):
        s = 1.0 / (fi ** 0.5)
        return unif((fi, fo), s), unif((1, fo), s)

    # ff1
    nf1_g, nf1_b = ln(D)
    f1_ln_g, f1_ln_b = ln(D)
    f1_w1, f1_b1 = lin(D, D * FF)
    f1_w2, f1_b2 = lin(D * FF, D)
    # mha
    nmha_g, nmha_b = ln(D)
    wqkv, bqkv = lin(D, 3 * D)
    wo, bo = lin(D, D)
    # conv module
    ncv_g, ncv_b = ln(D)
    pw1_w, pw1_b = lin(D, C2)
    dw_s = 1.0 / (K ** 0.5)
    dw_w = unif((K, C2), dw_s)
    dw_b = unif((1, C2), dw_s)
    bn_g = 1.0 + 0.02 * jax.random.normal(next(ks), (1, C2), jnp.float32)
    bn_b = 0.02 * jax.random.normal(next(ks), (1, C2), jnp.float32)
    bn_rm = 0.1 * jax.random.normal(next(ks), (1, C2), jnp.float32)
    bn_rv = 1.0 + 0.1 * jax.random.uniform(next(ks), (1, C2), jnp.float32)
    pw2_w, pw2_b = lin(C2, D)
    # ff2
    nf2_g, nf2_b = ln(D)
    f2_ln_g, f2_ln_b = ln(D)
    f2_w1, f2_b1 = lin(D, D * FF)
    f2_w2, f2_b2 = lin(D * FF, D)
    # final
    nfin_g, nfin_b = ln(D)

    return [
        nf1_g, nf1_b, f1_ln_g, f1_ln_b, f1_w1, f1_b1, f1_w2, f1_b2,
        nmha_g, nmha_b, wqkv, bqkv, wo, bo,
        ncv_g, ncv_b, pw1_w, pw1_b, dw_w, dw_b,
        bn_g, bn_b, bn_rm, bn_rv, pw2_w, pw2_b,
        nf2_g, nf2_b, f2_ln_g, f2_ln_b, f2_w1, f2_b1, f2_w2, f2_b2,
        nfin_g, nfin_b,
    ]


if __name__ == "__main__":
    key = jax.random.PRNGKey(0)
    kx, kp = jax.random.split(key)
    x = jax.random.normal(kx, (B, S, D), jnp.float32)
    params = init_params(kp)

    # One-time packing/folding at "model load" — NOT in the per-call hot path.
    packed = jax.block_until_ready(pack_params(params))

    y = conformer_block(x, packed)
    y = jax.block_until_ready(y)

    assert y.shape == (B, S, D), y.shape
    assert bool(jnp.all(jnp.isfinite(y)))
    print("KERNEL_OK")
</pallas_src>

<mosaic_0001>
module attributes {stable_mosaic.version = 11 : i64} {
  func.func @conformer_kernel(%arg0: memref<16x128xf32, #tpu.memory_space<vmem>>, %arg1: memref<128x512xbf16, #tpu.memory_space<vmem>>, %arg2: memref<512x128xbf16, #tpu.memory_space<vmem>>, %arg3: memref<128x384xbf16, #tpu.memory_space<vmem>>, %arg4: memref<128x128xbf16, #tpu.memory_space<vmem>>, %arg5: memref<128x256xbf16, #tpu.memory_space<vmem>>, %arg6: memref<64x256xf32, #tpu.memory_space<vmem>>, %arg7: memref<256x128xbf16, #tpu.memory_space<vmem>>, %arg8: memref<128x512xbf16, #tpu.memory_space<vmem>>, %arg9: memref<512x128xbf16, #tpu.memory_space<vmem>>, %arg10: memref<18x128xf32, #tpu.memory_space<vmem>>, %arg11: memref<3x256xf32, #tpu.memory_space<vmem>>, %arg12: memref<2x512xf32, #tpu.memory_space<vmem>>, %arg13: memref<1x384xf32, #tpu.memory_space<vmem>>, %arg14: memref<128x64xf32, #tpu.memory_space<vmem>>, %arg15: memref<64x128xf32, #tpu.memory_space<vmem>>, %arg16: memref<16x64xf32, #tpu.memory_space<vmem>>, %arg17: memref<16x128xf32, #tpu.memory_space<vmem>>) attributes {dimension_semantics = [], scalar_prefetch = 0 : i64, scratch_operands = 0 : i64, tpu.core_type = #tpu.core_type<tc>} {
    %c0 = arith.constant 0 : index
    %c0_0 = arith.constant 0 : index
    %0 = vector.load %arg0[%c0, %c0_0] : memref<16x128xf32, #tpu.memory_space<vmem>>, vector<16x128xf32>
    %c0_1 = arith.constant 0 : index
    %c0_2 = arith.constant 0 : index
    %1 = vector.load %arg10[%c0_1, %c0_2] : memref<18x128xf32, #tpu.memory_space<vmem>>, vector<1x128xf32>
    %c1 = arith.constant 1 : index
    %c0_3 = arith.constant 0 : index
    %2 = vector.load %arg10[%c1, %c0_3] : memref<18x128xf32, #tpu.memory_space<vmem>>, vector<1x128xf32>
    %cst = arith.constant dense<0.000000e+00> : vector<16xf32>
    %3 = vector.multi_reduction <add>, %0, %cst [1] : vector<16x128xf32> to vector<16xf32>
    %4 = vector.shape_cast %3 : vector<16xf32> to vector<16x1xf32>
    %cst_4 = arith.constant 1.280000e+02 : f32
    %5 = vector.broadcast %cst_4 : f32 to vector<16x1xf32>
    %6 = arith.divf %4, %5 : vector<16x1xf32>
    %7 = vector.broadcast %6 : vector<16x1xf32> to vector<16x128xf32>
    %8 = arith.subf %0, %7 : vector<16x128xf32>
    %9 = arith.mulf %8, %8 : vector<16x128xf32>
    %cst_5 = arith.constant dense<0.000000e+00> : vector<16xf32>
    %10 = vector.multi_reduction <add>, %9, %cst_5 [1] : vector<16x128xf32> to vector<16xf32>
    %11 = vector.shape_cast %10 : vector<16xf32> to vector<16x1xf32>
    %cst_6 = arith.constant 1.280000e+02 : f32
    %12 = vector.broadcast %cst_6 : f32 to vector<16x1xf32>
    %13 = arith.divf %11, %12 : vector<16x1xf32>
    %cst_7 = arith.constant 9.99999974E-6 : f32
    %14 = vector.broadcast %cst_7 : f32 to vector<16x1xf32>
    %15 = arith.addf %13, %14 : vector<16x1xf32>
    %16 = math.rsqrt %15 : vector<16x1xf32>
    %17 = vector.broadcast %16 : vector<16x1xf32> to vector<16x128xf32>
    %18 = arith.mulf %8, %17 : vector<16x128xf32>
    %19 = vector.broadcast %1 : vector<1x128xf32> to vector<16x128xf32>
    %20 = arith.mulf %18, %19 : vector<16x128xf32>
    %21 = vector.broadcast %2 : vector<1x128xf32> to vector<16x128xf32>
    %22 = arith.addf %20, %21 : vector<16x128xf32>
    %c2 = arith.constant 2 : index
    %c0_8 = arith.constant 0 : index
    %23 = vector.load %arg10[%c2, %c0_8] : memref<18x128xf32, #tpu.memory_space<vmem>>, vector<1x128xf32>
    %c3 = arith.constant 3 : index
    %c0_9 = arith.constant 0 : index
    %24 = vector.load %arg10[%c3, %c0_9] : memref<18x128xf32, #tpu.memory_space<vmem>>, vector<1x128xf32>
    %c0_10 = arith.constant 0 : index
    %c0_11 = arith.constant 0 : index
    %25 = vector.load %arg12[%c0_10, %c0_11] : memref<2x512xf32, #tpu.memory_space<vmem>>, vector<1x512xf32>
    %c4 = arith.constant 4 : index
    %c0_12 = arith.constant 0 : index
    %26 = vector.load %arg10[%c4, %c0_12] : memref<18x128xf32, #tpu.memory_space<vmem>>, vector<1x128xf32>
    %cst_13 = arith.constant dense<0.000000e+00> : vector<16xf32>
    %27 = vector.multi_reduction <add>, %22, %cst_13 [1] : vector<16x128xf32> to vector<16xf32>
    %28 = vector.shape_cast %27 : vector<16xf32> to vector<16x1xf32>
    %cst_14 = arith.constant 1.280000e+02 : f32
    %29 = vector.broadcast %cst_14 : f32 to vector<16x1xf32>
    %30 = arith.divf %28, %29 : vector<16x1xf32>
    %31 = vector.broadcast %30 : vector<16x1xf32> to vector<16x128xf32>
    %32 = arith.subf %22, %31 : vector<16x128xf32>
    %33 = arith.mulf %32, %32 : vector<16x128xf32>
    %cst_15 = arith.constant dense<0.000000e+00> : vector<16xf32>
    %34 = vector.multi_reduction <add>, %33, %cst_15 [1] : vector<16x128xf32> to vector<16xf32>
    %35 = vector.shape_cast %34 : vector<16xf32> to vector<16x1xf32>
    %cst_16 = arith.constant 1.280000e+02 : f32
    %36 = vector.broadcast %cst_16 : f32 to vector<16x1xf32>
    %37 = arith.divf %35, %36 : vector<16x1xf32>
    %cst_17 = arith.constant 9.99999974E-6 : f32
    %38 = vector.broadcast %cst_17 : f32 to vector<16x1xf32>
    %39 = arith.addf %37, %38 : vector<16x1xf32>
    %40 = math.rsqrt %39 : vector<16x1xf32>
    %41 = vector.broadcast %40 : vector<16x1xf32> to vector<16x128xf32>
    %42 = arith.mulf %32, %41 : vector<16x128xf32>
    %43 = vector.broadcast %23 : vector<1x128xf32> to vector<16x128xf32>
    %44 = arith.mulf %42, %43 : vector<16x128xf32>
    %45 = vector.broadcast %24 : vector<1x128xf32> to vector<16x128xf32>
    %46 = arith.addf %44, %45 : vector<16x128xf32>
    %47 = arith.truncf %46 : vector<16x128xf32> to vector<16x128xbf16>
    %c0_18 = arith.constant 0 : index
    %c0_19 = arith.constant 0 : index
    %48 = vector.load %arg1[%c0_18, %c0_19] : memref<128x512xbf16, #tpu.memory_space<vmem>>, vector<128x512xbf16>
    %cst_20 = arith.constant dense<0.000000e+00> : vector<16x512xf32>
    %49 = tpu.matmul %47, %48, %cst_20 {dimension_numbers = #tpu.dot_dimension_numbers<[1], [0], [0], [1], [0, 0, 1, 1], [], []>} : vector<16x128xbf16>, vector<128x512xbf16>, vector<16x512xf32> -> vector<16x512xf32>
    %50 = vector.broadcast %25 : vector<1x512xf32> to vector<16x512xf32>
    %51 = arith.addf %49, %50 : vector<16x512xf32>
    %cst_21 = arith.constant 5.000000e-01 : f32
    %52 = vector.broadcast %cst_21 : f32 to vector<16x512xf32>
    %53 = arith.mulf %52, %51 : vector<16x512xf32>
    %54 = math.tanh %53 : vector<16x512xf32>
    %cst_22 = arith.constant 5.000000e-01 : f32
    %55 = vector.broadcast %cst_22 : f32 to vector<16x512xf32>
    %56 = arith.mulf %55, %54 : vector<16x512xf32>
    %cst_23 = arith.constant 5.000000e-01 : f32
    %57 = vector.broadcast %cst_23 : f32 to vector<16x512xf32>
    %58 = arith.addf %56, %57 : vector<16x512xf32>
    %59 = arith.mulf %51, %58 : vector<16x512xf32>
    %60 = arith.truncf %59 : vector<16x512xf32> to vector<16x512xbf16>
    %c0_24 = arith.constant 0 : index
    %c0_25 = arith.constant 0 : index
    %61 = vector.load %arg2[%c0_24, %c0_25] : memref<512x128xbf16, #tpu.memory_space<vmem>>, vector<512x128xbf16>
    %cst_26 = arith.constant dense<0.000000e+00> : vector<16x128xf32>
    %62 = tpu.matmul %60, %61, %cst_26 {dimension_numbers = #tpu.dot_dimension_numbers<[1], [0], [0], [1], [0, 0, 1, 1], [], []>} : vector<16x512xbf16>, vector<512x128xbf16>, vector<16x128xf32> -> vector<16x128xf32>
    %63 = vector.broadcast %26 : vector<1x128xf32> to vector<16x128xf32>
    %64 = arith.addf %62, %63 : vector<16x128xf32>
    %cst_27 = arith.constant 5.000000e-01 : f32
    %65 = vector.broadcast %cst_27 : f32 to vector<16x128xf32>
    %66 = arith.mulf %65, %64 : vector<16x128xf32>
    %67 = arith.addf %0, %66 : vector<16x128xf32>
    %c5 = arith.constant 5 : index
    %c0_28 = arith.constant 0 : index
    %68 = vector.load %arg10[%c5, %c0_28] : memref<18x128xf32, #tpu.memory_space<vmem>>, vector<1x128xf32>
    %c6 = arith.constant 6 : index
    %c0_29 = arith.constant 0 : index
    %69 = vector.load %arg10[%c6, %c0_29] : memref<18x128xf32, #tpu.memory_space<vmem>>, vector<1x128xf32>
    %cst_30 = arith.constant dense<0.000000e+00> : vector<16xf32>
    %70 = vector.multi_reduction <add>, %67, %cst_30 [1] : vector<16x128xf32> to vector<16xf32>
    %71 = vector.shape_cast %70 : vector<16xf32> to vector<16x1xf32>
    %cst_31 = arith.constant 1.280000e+02 : f32
    %72 = vector.broadcast %cst_31 : f32 to vector<16x1xf32>
    %73 = arith.divf %71, %72 : vector<16x1xf32>
    %74 = vector.broadcast %73 : vector<16x1xf32> to vector<16x128xf32>
    %75 = arith.subf %67, %74 : vector<16x128xf32>
    %76 = arith.mulf %75, %75 : vector<16x128xf32>
    %cst_32 = arith.constant dense<0.000000e+00> : vector<16xf32>
    %77 = vector.multi_reduction <add>, %76, %cst_32 [1] : vector<16x128xf32> to vector<16xf32>
    %78 = vector.shape_cast %77 : vector<16xf32> to vector<16x1xf32>
    %cst_33 = arith.constant 1.280000e+02 : f32
    %79 = vector.broadcast %cst_33 : f32 to vector<16x1xf32>
    %80 = arith.divf %78, %79 : vector<16x1xf32>
    %cst_34 = arith.constant 9.99999974E-6 : f32
    %81 = vector.broadcast %cst_34 : f32 to vector<16x1xf32>
    %82 = arith.addf %80, %81 : vector<16x1xf32>
    %83 = math.rsqrt %82 : vector<16x1xf32>
    %84 = vector.broadcast %83 : vector<16x1xf32> to vector<16x128xf32>
    %85 = arith.mulf %75, %84 : vector<16x128xf32>
    %86 = vector.broadcast %68 : vector<1x128xf32> to vector<16x128xf32>
    %87 = arith.mulf %85, %86 : vector<16x128xf32>
    %88 = vector.broadcast %69 : vector<1x128xf32> to vector<16x128xf32>
    %89 = arith.addf %87, %88 : vector<16x128xf32>
    %90 = arith.truncf %89 : vector<16x128xf32> to vector<16x128xbf16>
    %c0_35 = arith.constant 0 : index
    %c0_36 = arith.constant 0 : index
    %91 = vector.load %arg3[%c0_35, %c0_36] : memref<128x384xbf16, #tpu.memory_space<vmem>>, vector<128x384xbf16>
    %cst_37 = arith.constant dense<0.000000e+00> : vector<16x384xf32>
    %92 = tpu.matmul %90, %91, %cst_37 {dimension_numbers = #tpu.dot_dimension_numbers<[1], [0], [0], [1], [0, 0, 1, 1], [], []>} : vector<16x128xbf16>, vector<128x384xbf16>, vector<16x384xf32> -> vector<16x384xf32>
    %c0_38 = arith.constant 0 : index
    %c0_39 = arith.constant 0 : index
    %93 = vector.load %arg13[%c0_38, %c0_39] : memref<1x384xf32, #tpu.memory_space<vmem>>, vector<1x384xf32>
    %94 = vector.broadcast %93 : vector<1x384xf32> to vector<16x384xf32>
    %95 = arith.addf %92, %94 : vector<16x384xf32>
    %96 = vector.extract_strided_slice %95 {offsets = [0, 0], sizes = [16, 128], strides = [1, 1]} : vector<16x384xf32> to vector<16x128xf32>
    %97 = vector.extract_strided_slice %95 {offsets = [0, 128], sizes = [16, 128], strides = [1, 1]} : vector<16x384xf32> to vector<16x128xf32>
    %98 = vector.extract_strided_slice %95 {offsets = [0, 256], sizes = [16, 128], strides = [1, 1]} : vector<16x384xf32> to vector<16x128xf32>
    %99 = tpu.transpose %97, [1, 0] : vector<16x128xf32> -> vector<128x16xf32>
    %100 = tpu.concatenate %99, %99, %99, %99 in 1 : vector<128x16xf32>, vector<128x16xf32>, vector<128x16xf32>, vector<128x16xf32> -> vector<128x64xf32>
    %c0_40 = arith.constant 0 : index
    %c0_41 = arith.constant 0 : index
    %101 = vector.load %arg14[%c0_40, %c0_41] : memref<128x64xf32, #tpu.memory_space<vmem>>, vector<128x64xf32>
    %102 = arith.mulf %100, %101 : vector<128x64xf32>
    %103 = tpu.concatenate %98, %98, %98, %98 in 0 : vector<16x128xf32>, vector<16x128xf32>, vector<16x128xf32>, vector<16x128xf32> -> vector<64x128xf32>
    %c0_42 = arith.constant 0 : index
    %c0_43 = arith.constant 0 : index
    %104 = vector.load %arg15[%c0_42, %c0_43] : memref<64x128xf32, #tpu.memory_space<vmem>>, vector<64x128xf32>
    %105 = arith.mulf %103, %104 : vector<64x128xf32>
    %cst_44 = arith.constant dense<0.000000e+00> : vector<16x64xf32>
    %106 = tpu.matmul %96, %102, %cst_44 {dimension_numbers = #tpu.dot_dimension_numbers<[1], [0], [0], [1], [0, 0, 1, 1], [], []>} : vector<16x128xf32>, vector<128x64xf32>, vector<16x64xf32> -> vector<16x64xf32>
    %c0_45 = arith.constant 0 : index
    %c0_46 = arith.constant 0 : index
    %107 = vector.load %arg16[%c0_45, %c0_46] : memref<16x64xf32, #tpu.memory_space<vmem>>, vector<16x64xf32>
    %108 = arith.addf %106, %107 : vector<16x64xf32>
    %109 = vector.extract_strided_slice %108 {offsets = [0, 0], sizes = [16, 16], strides = [1, 1]} : vector<16x64xf32> to vector<16x16xf32>
    %cst_47 = arith.constant dense<0xFF800000> : vector<16xf32>
    %110 = vector.multi_reduction <maximumf>, %109, %cst_47 [1] : vector<16x16xf32> to vector<16xf32>
    %111 = vector.shape_cast %110 : vector<16xf32> to vector<16x1xf32>
    %112 = vector.broadcast %111 : vector<16x1xf32> to vector<16x16xf32>
    %113 = arith.subf %109, %112 : vector<16x16xf32>
    %114 = math.exp %113 : vector<16x16xf32>
    %cst_48 = arith.constant dense<0.000000e+00> : vector<16xf32>
    %115 = vector.multi_reduction <add>, %114, %cst_48 [1] : vector<16x16xf32> to vector<16xf32>
    %116 = vector.shape_cast %115 : vector<16xf32> to vector<16x1xf32>
    %117 = tpu.reciprocal %116 {approx = true} : vector<16x1xf32> -> vector<16x1xf32>
    %118 = vector.broadcast %117 : vector<16x1xf32> to vector<16x16xf32>
    %119 = arith.mulf %114, %118 : vector<16x16xf32>
    %120 = vector.extract_strided_slice %108 {offsets = [0, 16], sizes = [16, 16], strides = [1, 1]} : vector<16x64xf32> to vector<16x16xf32>
    %cst_49 = arith.constant dense<0xFF800000> : vector<16xf32>
    %121 = vector.multi_reduction <maximumf>, %120, %cst_49 [1] : vector<16x16xf32> to vector<16xf32>
    %122 = vector.shape_cast %121 : vector<16xf32> to vector<16x1xf32>
    %123 = vector.broadcast %122 : vector<16x1xf32> to vector<16x16xf32>
    %124 = arith.subf %120, %123 : vector<16x16xf32>
    %125 = math.exp %124 : vector<16x16xf32>
    %cst_50 = arith.constant dense<0.000000e+00> : vector<16xf32>
    %126 = vector.multi_reduction <add>, %125, %cst_50 [1] : vector<16x16xf32> to vector<16xf32>
    %127 = vector.shape_cast %126 : vector<16xf32> to vector<16x1xf32>
    %128 = tpu.reciprocal %127 {approx = true} : vector<16x1xf32> -> vector<16x1xf32>
    %129 = vector.broadcast %128 : vector<16x1xf32> to vector<16x16xf32>
    %130 = arith.mulf %125, %129 : vector<16x16xf32>
    %131 = vector.extract_strided_slice %108 {offsets = [0, 32], sizes = [16, 16], strides = [1, 1]} : vector<16x64xf32> to vector<16x16xf32>
    %cst_51 = arith.constant dense<0xFF800000> : vector<16xf32>
    %132 = vector.multi_reduction <maximumf>, %131, %cst_51 [1] : vector<16x16xf32> to vector<16xf32>
    %133 = vector.shape_cast %132 : vector<16xf32> to vector<16x1xf32>
    %134 = vector.broadcast %133 : vector<16x1xf32> to vector<16x16xf32>
    %135 = arith.subf %131, %134 : vector<16x16xf32>
    %136 = math.exp %135 : vector<16x16xf32>
    %cst_52 = arith.constant dense<0.000000e+00> : vector<16xf32>
    %137 = vector.multi_reduction <add>, %136, %cst_52 [1] : vector<16x16xf32> to vector<16xf32>
    %138 = vector.shape_cast %137 : vector<16xf32> to vector<16x1xf32>
    %139 = tpu.reciprocal %138 {approx = true} : vector<16x1xf32> -> vector<16x1xf32>
    %140 = vector.broadcast %139 : vector<16x1xf32> to vector<16x16xf32>
    %141 = arith.mulf %136, %140 : vector<16x16xf32>
    %142 = vector.extract_strided_slice %108 {offsets = [0, 48], sizes = [16, 16], strides = [1, 1]} : vector<16x64xf32> to vector<16x16xf32>
    %cst_53 = arith.constant dense<0xFF800000> : vector<16xf32>
    %143 = vector.multi_reduction <maximumf>, %142, %cst_53 [1] : vector<16x16xf32> to vector<16xf32>
    %144 = vector.shape_cast %143 : vector<16xf32> to vector<16x1xf32>
    %145 = vector.broadcast %144 : vector<16x1xf32> to vector<16x16xf32>
    %146 = arith.subf %142, %145 : vector<16x16xf32>
    %147 = math.exp %146 : vector<16x16xf32>
    %cst_54 = arith.constant dense<0.000000e+00> : vector<16xf32>
    %148 = vector.multi_reduction <add>, %147, %cst_54 [1] : vector<16x16xf32> to vector<16xf32>
    %149 = vector.shape_cast %148 : vector<16xf32> to vector<16x1xf32>
    %150 = tpu.reciprocal %149 {approx = true} : vector<16x1xf32> -> vector<16x1xf32>
    %151 = vector.broadcast %150 : vector<16x1xf32> to vector<16x16xf32>
    %152 = arith.mulf %147, %151 : vector<16x16xf32>
    %153 = tpu.concatenate %119, %130, %141, %152 in 1 : vector<16x16xf32>, vector<16x16xf32>, vector<16x16xf32>, vector<16x16xf32> -> vector<16x64xf32>
    %cst_55 = arith.constant dense<0.000000e+00> : vector<16x128xf32>
    %154 = tpu.matmul %153, %105, %cst_55 {dimension_numbers = #tpu.dot_dimension_numbers<[1], [0], [0], [1], [0, 0, 1, 1], [], []>} : vector<16x64xf32>, vector<64x128xf32>, vector<16x128xf32> -> vector<16x128xf32>
    %155 = arith.truncf %154 : vector<16x128xf32> to vector<16x128xbf16>
    %c0_56 = arith.constant 0 : index
    %c0_57 = arith.constant 0 : index
    %156 = vector.load %arg4[%c0_56, %c0_57] : memref<128x128xbf16, #tpu.memory_space<vmem>>, vector<128x128xbf16>
    %cst_58 = arith.constant dense<0.000000e+00> : vector<16x128xf32>
    %157 = tpu.matmul %155, %156, %cst_58 {dimension_numbers = #tpu.dot_dimension_numbers<[1], [0], [0], [1], [0, 0, 1, 1], [], []>} : vector<16x128xbf16>, vector<128x128xbf16>, vector<16x128xf32> -> vector<16x128xf32>
    %c7 = arith.constant 7 : index
    %c0_59 = arith.constant 0 : index
    %158 = vector.load %arg10[%c7, %c0_59] : memref<18x128xf32, #tpu.memory_space<vmem>>, vector<1x128xf32>
    %159 = vector.broadcast %158 : vector<1x128xf32> to vector<16x128xf32>
    %160 = arith.addf %157, %159 : vector<16x128xf32>
    %161 = arith.addf %67, %160 : vector<16x128xf32>
    %c8 = arith.constant 8 : index
    %c0_60 = arith.constant 0 : index
    %162 = vector.load %arg10[%c8, %c0_60] : memref<18x128xf32, #tpu.memory_space<vmem>>, vector<1x128xf32>
    %c9 = arith.constant 9 : index
    %c0_61 = arith.constant 0 : index
    %163 = vector.load %arg10[%c9, %c0_61] : memref<18x128xf32, #tpu.memory_space<vmem>>, vector<1x128xf32>
    %cst_62 = arith.constant dense<0.000000e+00> : vector<16xf32>
    %164 = vector.multi_reduction <add>, %161, %cst_62 [1] : vector<16x128xf32> to vector<16xf32>
    %165 = vector.shape_cast %164 : vector<16xf32> to vector<16x1xf32>
    %cst_63 = arith.constant 1.280000e+02 : f32
    %166 = vector.broadcast %cst_63 : f32 to vector<16x1xf32>
    %167 = arith.divf %165, %166 : vector<16x1xf32>
    %168 = vector.broadcast %167 : vector<16x1xf32> to vector<16x128xf32>
    %169 = arith.subf %161, %168 : vector<16x128xf32>
    %170 = arith.mulf %169, %169 : vector<16x128xf32>
    %cst_64 = arith.constant dense<0.000000e+00> : vector<16xf32>
    %171 = vector.multi_reduction <add>, %170, %cst_64 [1] : vector<16x128xf32> to vector<16xf32>
    %172 = vector.shape_cast %171 : vector<16xf32> to vector<16x1xf32>
    %cst_65 = arith.constant 1.280000e+02 : f32
    %173 = vector.broadcast %cst_65 : f32 to vector<16x1xf32>
    %174 = arith.divf %172, %173 : vector<16x1xf32>
    %cst_66 = arith.constant 9.99999974E-6 : f32
    %175 = vector.broadcast %cst_66 : f32 to vector<16x1xf32>
    %176 = arith.addf %174, %175 : vector<16x1xf32>
    %177 = math.rsqrt %176 : vector<16x1xf32>
    %178 = vector.broadcast %177 : vector<16x1xf32> to vector<16x128xf32>
    %179 = arith.mulf %169, %178 : vector<16x128xf32>
    %180 = vector.broadcast %162 : vector<1x128xf32> to vector<16x128xf32>
    %181 = arith.mulf %179, %180 : vector<16x128xf32>
    %182 = vector.broadcast %163 : vector<1x128xf32> to vector<16x128xf32>
    %183 = arith.addf %181, %182 : vector<16x128xf32>
    %184 = arith.truncf %183 : vector<16x128xf32> to vector<16x128xbf16>
    %c0_67 = arith.constant 0 : index
    %c0_68 = arith.constant 0 : index
    %185 = vector.load %arg5[%c0_67, %c0_68] : memref<128x256xbf16, #tpu.memory_space<vmem>>, vector<128x256xbf16>
    %cst_69 = arith.constant dense<0.000000e+00> : vector<16x256xf32>
    %186 = tpu.matmul %184, %185, %cst_69 {dimension_numbers = #tpu.dot_dimension_numbers<[1], [0], [0], [1], [0, 0, 1, 1], [], []>} : vector<16x128xbf16>, vector<128x256xbf16>, vector<16x256xf32> -> vector<16x256xf32>
    %c0_70 = arith.constant 0 : index
    %c0_71 = arith.constant 0 : index
    %187 = vector.load %arg11[%c0_70, %c0_71] : memref<3x256xf32, #tpu.memory_space<vmem>>, vector<1x256xf32>
    %188 = vector.broadcast %187 : vector<1x256xf32> to vector<16x256xf32>
    %189 = arith.addf %186, %188 : vector<16x256xf32>
    %190 = vector.extract_strided_slice %189 {offsets = [0, 0], sizes = [8, 256], strides = [1, 1]} : vector<16x256xf32> to vector<8x256xf32>
    %191 = vector.extract_strided_slice %190 {offsets = [0, 0], sizes = [1, 256], strides = [1, 1]} : vector<8x256xf32> to vector<1x256xf32>
    %c0_72 = arith.constant 0 : index
    %c0_73 = arith.constant 0 : index
    %192 = vector.load %arg6[%c0_72, %c0_73] : memref<64x256xf32, #tpu.memory_space<vmem>>, vector<8x256xf32>
    %193 = vector.broadcast %191 : vector<1x256xf32> to vector<8x256xf32>
    %194 = arith.mulf %193, %192 : vector<8x256xf32>
    %195 = vector.extract_strided_slice %190 {offsets = [1, 0], sizes = [1, 256], strides = [1, 1]} : vector<8x256xf32> to vector<1x256xf32>
    %c8_74 = arith.constant 8 : index
    %c0_75 = arith.constant 0 : index
    %196 = vector.load %arg6[%c8_74, %c0_75] : memref<64x256xf32, #tpu.memory_space<vmem>>, vector<8x256xf32>
    %197 = vector.broadcast %195 : vector<1x256xf32> to vector<8x256xf32>
    %198 = arith.mulf %197, %196 : vector<8x256xf32>
    %199 = arith.addf %194, %198 : vector<8x256xf32>
    %200 = vector.extract_strided_slice %190 {offsets = [2, 0], sizes = [1, 256], strides = [1, 1]} : vector<8x256xf32> to vector<1x256xf32>
    %c16 = arith.constant 16 : index
    %c0_76 = arith.constant 0 : index
    %201 = vector.load %arg6[%c16, %c0_76] : memref<64x256xf32, #tpu.memory_space<vmem>>, vector<8x256xf32>
    %202 = vector.broadcast %200 : vector<1x256xf32> to vector<8x256xf32>
    %203 = arith.mulf %202, %201 : vector<8x256xf32>
    %204 = arith.addf %199, %203 : vector<8x256xf32>
    %205 = vector.extract_strided_slice %190 {offsets = [3, 0], sizes = [1, 256], strides = [1, 1]} : vector<8x256xf32> to vector<1x256xf32>
    %c24 = arith.constant 24 : index
    %c0_77 = arith.constant 0 : index
    %206 = vector.load %arg6[%c24, %c0_77] : memref<64x256xf32, #tpu.memory_space<vmem>>, vector<8x256xf32>
    %207 = vector.broadcast %205 : vector<1x256xf32> to vector<8x256xf32>
    %208 = arith.mulf %207, %206 : vector<8x256xf32>
    %209 = arith.addf %204, %208 : vector<8x256xf32>
    %210 = vector.extract_strided_slice %190 {offsets = [4, 0], sizes = [1, 256], strides = [1, 1]} : vector<8x256xf32> to vector<1x256xf32>
    %c32 = arith.constant 32 : index
    %c0_78 = arith.constant 0 : index
    %211 = vector.load %arg6[%c32, %c0_78] : memref<64x256xf32, #tpu.memory_space<vmem>>, vector<8x256xf32>
    %212 = vector.broadcast %210 : vector<1x256xf32> to vector<8x256xf32>
    %213 = arith.mulf %212, %211 : vector<8x256xf32>
    %214 = arith.addf %209, %213 : vector<8x256xf32>
    %215 = vector.extract_strided_slice %190 {offsets = [5, 0], sizes = [1, 256], strides = [1, 1]} : vector<8x256xf32> to vector<1x256xf32>
    %c40 = arith.constant 40 : index
    %c0_79 = arith.constant 0 : index
    %216 = vector.load %arg6[%c40, %c0_79] : memref<64x256xf32, #tpu.memory_space<vmem>>, vector<8x256xf32>
    %217 = vector.broadcast %215 : vector<1x256xf32> to vector<8x256xf32>
    %218 = arith.mulf %217, %216 : vector<8x256xf32>
    %219 = arith.addf %214, %218 : vector<8x256xf32>
    %220 = vector.extract_strided_slice %190 {offsets = [6, 0], sizes = [1, 256], strides = [1, 1]} : vector<8x256xf32> to vector<1x256xf32>
    %c48 = arith.constant 48 : index
    %c0_80 = arith.constant 0 : index
    %221 = vector.load %arg6[%c48, %c0_80] : memref<64x256xf32, #tpu.memory_space<vmem>>, vector<8x256xf32>
    %222 = vector.broadcast %220 : vector<1x256xf32> to vector<8x256xf32>
    %223 = arith.mulf %222, %221 : vector<8x256xf32>
    %224 = arith.addf %219, %223 : vector<8x256xf32>
    %225 = vector.extract_strided_slice %190 {offsets = [7, 0], sizes = [1, 256], strides = [1, 1]} : vector<8x256xf32> to vector<1x256xf32>
    %c56 = arith.constant 56 : index
    %c0_81 = arith.constant 0 : index
    %226 = vector.load %arg6[%c56, %c0_81] : memref<64x256xf32, #tpu.memory_space<vmem>>, vector<8x256xf32>
    %227 = vector.broadcast %225 : vector<1x256xf32> to vector<8x256xf32>
    %228 = arith.mulf %227, %226 : vector<8x256xf32>
    %229 = arith.addf %224, %228 : vector<8x256xf32>
    %230 = vector.extract_strided_slice %189 {offsets = [8, 0], sizes = [8, 256], strides = [1, 1]} : vector<16x256xf32> to vector<8x256xf32>
    %231 = vector.extract_strided_slice %230 {offsets = [0, 0], sizes = [1, 256], strides = [1, 1]} : vector<8x256xf32> to vector<1x256xf32>
    %c0_82 = arith.constant 0 : index
    %c0_83 = arith.constant 0 : index
    %232 = vector.load %arg6[%c0_82, %c0_83] : memref<64x256xf32, #tpu.memory_space<vmem>>, vector<8x256xf32>
    %233 = vector.broadcast %231 : vector<1x256xf32> to vector<8x256xf32>
    %234 = arith.mulf %233, %232 : vector<8x256xf32>
    %235 = vector.extract_strided_slice %230 {offsets = [1, 0], sizes = [1, 256], strides = [1, 1]} : vector<8x256xf32> to vector<1x256xf32>
    %c8_84 = arith.constant 8 : index
    %c0_85 = arith.constant 0 : index
    %236 = vector.load %arg6[%c8_84, %c0_85] : memref<64x256xf32, #tpu.memory_space<vmem>>, vector<8x256xf32>
    %237 = vector.broadcast %235 : vector<1x256xf32> to vector<8x256xf32>
    %238 = arith.mulf %237, %236 : vector<8x256xf32>
    %239 = arith.addf %234, %238 : vector<8x256xf32>
    %240 = vector.extract_strided_slice %230 {offsets = [2, 0], sizes = [1, 256], strides = [1, 1]} : vector<8x256xf32> to vector<1x256xf32>
    %c16_86 = arith.constant 16 : index
    %c0_87 = arith.constant 0 : index
    %241 = vector.load %arg6[%c16_86, %c0_87] : memref<64x256xf32, #tpu.memory_space<vmem>>, vector<8x256xf32>
    %242 = vector.broadcast %240 : vector<1x256xf32> to vector<8x256xf32>
    %243 = arith.mulf %242, %241 : vector<8x256xf32>
    %244 = arith.addf %239, %243 : vector<8x256xf32>
    %245 = vector.extract_strided_slice %230 {offsets = [3, 0], sizes = [1, 256], strides = [1, 1]} : vector<8x256xf32> to vector<1x256xf32>
    %c24_88 = arith.constant 24 : index
    %c0_89 = arith.constant 0 : index
    %246 = vector.load %arg6[%c24_88, %c0_89] : memref<64x256xf32, #tpu.memory_space<vmem>>, vector<8x256xf32>
    %247 = vector.broadcast %245 : vector<1x256xf32> to vector<8x256xf32>
    %248 = arith.mulf %247, %246 : vector<8x256xf32>
    %249 = arith.addf %244, %248 : vector<8x256xf32>
    %250 = vector.extract_strided_slice %230 {offsets = [4, 0], sizes = [1, 256], strides = [1, 1]} : vector<8x256xf32> to vector<1x256xf32>
    %c32_90 = arith.constant 32 : index
    %c0_91 = arith.constant 0 : index
    %251 = vector.load %arg6[%c32_90, %c0_91] : memref<64x256xf32, #tpu.memory_space<vmem>>, vector<8x256xf32>
    %252 = vector.broadcast %250 : vector<1x256xf32> to vector<8x256xf32>
    %253 = arith.mulf %252, %251 : vector<8x256xf32>
    %254 = arith.addf %249, %253 : vector<8x256xf32>
    %255 = vector.extract_strided_slice %230 {offsets = [5, 0], sizes = [1, 256], strides = [1, 1]} : vector<8x256xf32> to vector<1x256xf32>
    %c40_92 = arith.constant 40 : index
    %c0_93 = arith.constant 0 : index
    %256 = vector.load %arg6[%c40_92, %c0_93] : memref<64x256xf32, #tpu.memory_space<vmem>>, vector<8x256xf32>
    %257 = vector.broadcast %255 : vector<1x256xf32> to vector<8x256xf32>
    %258 = arith.mulf %257, %256 : vector<8x256xf32>
    %259 = arith.addf %254, %258 : vector<8x256xf32>
    %260 = vector.extract_strided_slice %230 {offsets = [6, 0], sizes = [1, 256], strides = [1, 1]} : vector<8x256xf32> to vector<1x256xf32>
    %c48_94 = arith.constant 48 : index
    %c0_95 = arith.constant 0 : index
    %261 = vector.load %arg6[%c48_94, %c0_95] : memref<64x256xf32, #tpu.memory_space<vmem>>, vector<8x256xf32>
    %262 = vector.broadcast %260 : vector<1x256xf32> to vector<8x256xf32>
    %263 = arith.mulf %262, %261 : vector<8x256xf32>
    %264 = arith.addf %259, %263 : vector<8x256xf32>
    %265 = vector.extract_strided_slice %230 {offsets = [7, 0], sizes = [1, 256], strides = [1, 1]} : vector<8x256xf32> to vector<1x256xf32>
    %c56_96 = arith.constant 56 : index
    %c0_97 = arith.constant 0 : index
    %266 = vector.load %arg6[%c56_96, %c0_97] : memref<64x256xf32, #tpu.memory_space<vmem>>, vector<8x256xf32>
    %267 = vector.broadcast %265 : vector<1x256xf32> to vector<8x256xf32>
    %268 = arith.mulf %267, %266 : vector<8x256xf32>
    %269 = arith.addf %264, %268 : vector<8x256xf32>
    %270 = tpu.concatenate %229, %269 in 0 : vector<8x256xf32>, vector<8x256xf32> -> vector<16x256xf32>
    %c1_98 = arith.constant 1 : index
    %c0_99 = arith.constant 0 : index
    %271 = vector.load %arg11[%c1_98, %c0_99] : memref<3x256xf32, #tpu.memory_space<vmem>>, vector<1x256xf32>
    %272 = vector.broadcast %271 : vector<1x256xf32> to vector<16x256xf32>
    %273 = arith.mulf %270, %272 : vector<16x256xf32>
    %c2_100 = arith.constant 2 : index
    %c0_101 = arith.constant 0 : index
    %274 = vector.load %arg11[%c2_100, %c0_101] : memref<3x256xf32, #tpu.memory_space<vmem>>, vector<1x256xf32>
    %275 = vector.broadcast %274 : vector<1x256xf32> to vector<16x256xf32>
    %276 = arith.addf %273, %275 : vector<16x256xf32>
    %cst_102 = arith.constant 5.000000e-01 : f32
    %277 = vector.broadcast %cst_102 : f32 to vector<16x256xf32>
    %278 = arith.mulf %277, %276 : vector<16x256xf32>
    %279 = math.tanh %278 : vector<16x256xf32>
    %cst_103 = arith.constant 5.000000e-01 : f32
    %280 = vector.broadcast %cst_103 : f32 to vector<16x256xf32>
    %281 = arith.mulf %280, %279 : vector<16x256xf32>
    %cst_104 = arith.constant 5.000000e-01 : f32
    %282 = vector.broadcast %cst_104 : f32 to vector<16x256xf32>
    %283 = arith.addf %281, %282 : vector<16x256xf32>
    %284 = arith.mulf %276, %283 : vector<16x256xf32>
    %285 = arith.truncf %284 : vector<16x256xf32> to vector<16x256xbf16>
    %c0_105 = arith.constant 0 : index
    %c0_106 = arith.constant 0 : index
    %286 = vector.load %arg7[%c0_105, %c0_106] : memref<256x128xbf16, #tpu.memory_space<vmem>>, vector<256x128xbf16>
    %cst_107 = arith.constant dense<0.000000e+00> : vector<16x128xf32>
    %287 = tpu.matmul %285, %286, %cst_107 {dimension_numbers = #tpu.dot_dimension_numbers<[1], [0], [0], [1], [0, 0, 1, 1], [], []>} : vector<16x256xbf16>, vector<256x128xbf16>, vector<16x128xf32> -> vector<16x128xf32>
    %c10 = arith.constant 10 : index
    %c0_108 = arith.constant 0 : index
    %288 = vector.load %arg10[%c10, %c0_108] : memref<18x128xf32, #tpu.memory_space<vmem>>, vector<1x128xf32>
    %289 = vector.broadcast %288 : vector<1x128xf32> to vector<16x128xf32>
    %290 = arith.addf %287, %289 : vector<16x128xf32>
    %291 = arith.addf %161, %290 : vector<16x128xf32>
    %c11 = arith.constant 11 : index
    %c0_109 = arith.constant 0 : index
    %292 = vector.load %arg10[%c11, %c0_109] : memref<18x128xf32, #tpu.memory_space<vmem>>, vector<1x128xf32>
    %c12 = arith.constant 12 : index
    %c0_110 = arith.constant 0 : index
    %293 = vector.load %arg10[%c12, %c0_110] : memref<18x128xf32, #tpu.memory_space<vmem>>, vector<1x128xf32>
    %cst_111 = arith.constant dense<0.000000e+00> : vector<16xf32>
    %294 = vector.multi_reduction <add>, %291, %cst_111 [1] : vector<16x128xf32> to vector<16xf32>
    %295 = vector.shape_cast %294 : vector<16xf32> to vector<16x1xf32>
    %cst_112 = arith.constant 1.280000e+02 : f32
    %296 = vector.broadcast %cst_112 : f32 to vector<16x1xf32>
    %297 = arith.divf %295, %296 : vector<16x1xf32>
    %298 = vector.broadcast %297 : vector<16x1xf32> to vector<16x128xf32>
    %299 = arith.subf %291, %298 : vector<16x128xf32>
    %300 = arith.mulf %299, %299 : vector<16x128xf32>
    %cst_113 = arith.constant dense<0.000000e+00> : vector<16xf32>
    %301 = vector.multi_reduction <add>, %300, %cst_113 [1] : vector<16x128xf32> to vector<16xf32>
    %302 = vector.shape_cast %301 : vector<16xf32> to vector<16x1xf32>
    %cst_114 = arith.constant 1.280000e+02 : f32
    %303 = vector.broadcast %cst_114 : f32 to vector<16x1xf32>
    %304 = arith.divf %302, %303 : vector<16x1xf32>
    %cst_115 = arith.constant 9.99999974E-6 : f32
    %305 = vector.broadcast %cst_115 : f32 to vector<16x1xf32>
    %306 = arith.addf %304, %305 : vector<16x1xf32>
    %307 = math.rsqrt %306 : vector<16x1xf32>
    %308 = vector.broadcast %307 : vector<16x1xf32> to vector<16x128xf32>
    %309 = arith.mulf %299, %308 : vector<16x128xf32>
    %310 = vector.broadcast %292 : vector<1x128xf32> to vector<16x128xf32>
    %311 = arith.mulf %309, %310 : vector<16x128xf32>
    %312 = vector.broadcast %293 : vector<1x128xf32> to vector<16x128xf32>
    %313 = arith.addf %311, %312 : vector<16x128xf32>
    %c13 = arith.constant 13 : index
    %c0_116 = arith.constant 0 : index
    %314 = vector.load %arg10[%c13, %c0_116] : memref<18x128xf32, #tpu.memory_space<vmem>>, vector<1x128xf32>
    %c14 = arith.constant 14 : index
    %c0_117 = arith.constant 0 : index
    %315 = vector.load %arg10[%c14, %c0_117] : memref<18x128xf32, #tpu.memory_space<vmem>>, vector<1x128xf32>
    %c1_118 = arith.constant 1 : index
    %c0_119 = arith.constant 0 : index
    %316 = vector.load %arg12[%c1_118, %c0_119] : memref<2x512xf32, #tpu.memory_space<vmem>>, vector<1x512xf32>
    %c15 = arith.constant 15 : index
    %c0_120 = arith.constant 0 : index
    %317 = vector.load %arg10[%c15, %c0_120] : memref<18x128xf32, #tpu.memory_space<vmem>>, vector<1x128xf32>
    %cst_121 = arith.constant dense<0.000000e+00> : vector<16xf32>
    %318 = vector.multi_reduction <add>, %313, %cst_121 [1] : vector<16x128xf32> to vector<16xf32>
    %319 = vector.shape_cast %318 : vector<16xf32> to vector<16x1xf32>
    %cst_122 = arith.constant 1.280000e+02 : f32
    %320 = vector.broadcast %cst_122 : f32 to vector<16x1xf32>
    %321 = arith.divf %319, %320 : vector<16x1xf32>
    %322 = vector.broadcast %321 : vector<16x1xf32> to vector<16x128xf32>
    %323 = arith.subf %313, %322 : vector<16x128xf32>
    %324 = arith.mulf %323, %323 : vector<16x128xf32>
    %cst_123 = arith.constant dense<0.000000e+00> : vector<16xf32>
    %325 = vector.multi_reduction <add>, %324, %cst_123 [1] : vector<16x128xf32> to vector<16xf32>
    %326 = vector.shape_cast %325 : vector<16xf32> to vector<16x1xf32>
    %cst_124 = arith.constant 1.280000e+02 : f32
    %327 = vector.broadcast %cst_124 : f32 to vector<16x1xf32>
    %328 = arith.divf %326, %327 : vector<16x1xf32>
    %cst_125 = arith.constant 9.99999974E-6 : f32
    %329 = vector.broadcast %cst_125 : f32 to vector<16x1xf32>
    %330 = arith.addf %328, %329 : vector<16x1xf32>
    %331 = math.rsqrt %330 : vector<16x1xf32>
    %332 = vector.broadcast %331 : vector<16x1xf32> to vector<16x128xf32>
    %333 = arith.mulf %323, %332 : vector<16x128xf32>
    %334 = vector.broadcast %314 : vector<1x128xf32> to vector<16x128xf32>
    %335 = arith.mulf %333, %334 : vector<16x128xf32>
    %336 = vector.broadcast %315 : vector<1x128xf32> to vector<16x128xf32>
    %337 = arith.addf %335, %336 : vector<16x128xf32>
    %338 = arith.truncf %337 : vector<16x128xf32> to vector<16x128xbf16>
    %c0_126 = arith.constant 0 : index
    %c0_127 = arith.constant 0 : index
    %339 = vector.load %arg8[%c0_126, %c0_127] : memref<128x512xbf16, #tpu.memory_space<vmem>>, vector<128x512xbf16>
    %cst_128 = arith.constant dense<0.000000e+00> : vector<16x512xf32>
    %340 = tpu.matmul %338, %339, %cst_128 {dimension_numbers = #tpu.dot_dimension_numbers<[1], [0], [0], [1], [0, 0, 1, 1], [], []>} : vector<16x128xbf16>, vector<128x512xbf16>, vector<16x512xf32> -> vector<16x512xf32>
    %341 = vector.broadcast %316 : vector<1x512xf32> to vector<16x512xf32>
    %342 = arith.addf %340, %341 : vector<16x512xf32>
    %cst_129 = arith.constant 5.000000e-01 : f32
    %343 = vector.broadcast %cst_129 : f32 to vector<16x512xf32>
    %344 = arith.mulf %343, %342 : vector<16x512xf32>
    %345 = math.tanh %344 : vector<16x512xf32>
    %cst_130 = arith.constant 5.000000e-01 : f32
    %346 = vector.broadcast %cst_130 : f32 to vector<16x512xf32>
    %347 = arith.mulf %346, %345 : vector<16x512xf32>
    %cst_131 = arith.constant 5.000000e-01 : f32
    %348 = vector.broadcast %cst_131 : f32 to vector<16x512xf32>
    %349 = arith.addf %347, %348 : vector<16x512xf32>
    %350 = arith.mulf %342, %349 : vector<16x512xf32>
    %351 = arith.truncf %350 : vector<16x512xf32> to vector<16x512xbf16>
    %c0_132 = arith.constant 0 : index
    %c0_133 = arith.constant 0 : index
    %352 = vector.load %arg9[%c0_132, %c0_133] : memref<512x128xbf16, #tpu.memory_space<vmem>>, vector<512x128xbf16>
    %cst_134 = arith.constant dense<0.000000e+00> : vector<16x128xf32>
    %353 = tpu.matmul %351, %352, %cst_134 {dimension_numbers = #tpu.dot_dimension_numbers<[1], [0], [0], [1], [0, 0, 1, 1], [], []>} : vector<16x512xbf16>, vector<512x128xbf16>, vector<16x128xf32> -> vector<16x128xf32>
    %354 = vector.broadcast %317 : vector<1x128xf32> to vector<16x128xf32>
    %355 = arith.addf %353, %354 : vector<16x128xf32>
    %cst_135 = arith.constant 5.000000e-01 : f32
    %356 = vector.broadcast %cst_135 : f32 to vector<16x128xf32>
    %357 = arith.mulf %356, %355 : vector<16x128xf32>
    %358 = arith.addf %291, %357 : vector<16x128xf32>
    %c16_136 = arith.constant 16 : index
    %c0_137 = arith.constant 0 : index
    %359 = vector.load %arg10[%c16_136, %c0_137] : memref<18x128xf32, #tpu.memory_space<vmem>>, vector<1x128xf32>
    %c17 = arith.constant 17 : index
    %c0_138 = arith.constant 0 : index
    %360 = vector.load %arg10[%c17, %c0_138] : memref<18x128xf32, #tpu.memory_space<vmem>>, vector<1x128xf32>
    %cst_139 = arith.constant dense<0.000000e+00> : vector<16xf32>
    %361 = vector.multi_reduction <add>, %358, %cst_139 [1] : vector<16x128xf32> to vector<16xf32>
    %362 = vector.shape_cast %361 : vector<16xf32> to vector<16x1xf32>
    %cst_140 = arith.constant 1.280000e+02 : f32
    %363 = vector.broadcast %cst_140 : f32 to vector<16x1xf32>
    %364 = arith.divf %362, %363 : vector<16x1xf32>
    %365 = vector.broadcast %364 : vector<16x1xf32> to vector<16x128xf32>
    %366 = arith.subf %358, %365 : vector<16x128xf32>
    %367 = arith.mulf %366, %366 : vector<16x128xf32>
    %cst_141 = arith.constant dense<0.000000e+00> : vector<16xf32>
    %368 = vector.multi_reduction <add>, %367, %cst_141 [1] : vector<16x128xf32> to vector<16xf32>
    %369 = vector.shape_cast %368 : vector<16xf32> to vector<16x1xf32>
    %cst_142 = arith.constant 1.280000e+02 : f32
    %370 = vector.broadcast %cst_142 : f32 to vector<16x1xf32>
    %371 = arith.divf %369, %370 : vector<16x1xf32>
    %cst_143 = arith.constant 9.99999974E-6 : f32
    %372 = vector.broadcast %cst_143 : f32 to vector<16x1xf32>
    %373 = arith.addf %371, %372 : vector<16x1xf32>
    %374 = math.rsqrt %373 : vector<16x1xf32>
    %375 = vector.broadcast %374 : vector<16x1xf32> to vector<16x128xf32>
    %376 = arith.mulf %366, %375 : vector<16x128xf32>
    %377 = vector.broadcast %359 : vector<1x128xf32> to vector<16x128xf32>
    %378 = arith.mulf %376, %377 : vector<16x128xf32>
    %379 = vector.broadcast %360 : vector<1x128xf32> to vector<16x128xf32>
    %380 = arith.addf %378, %379 : vector<16x128xf32>
    %c0_144 = arith.constant 0 : index
    %c0_145 = arith.constant 0 : index
    %381 = vector.load %arg17[%c0_144, %c0_145] : memref<16x128xf32, #tpu.memory_space<vmem>>, vector<16x128xf32>
    tpu.vector_store %arg17[%c0_144, %c0_145], %380 {strides = array<i32>} : memref<16x128xf32, #tpu.memory_space<vmem>>, vector<16x128xf32>,
    return
  }
}

</mosaic_0001>

<llo_original>
// kernel: conformer_block.1
$region0: #{conformer_block.1}
  #allocation0 [shape = 'u32[]', space=smem, size = 0x4, offset = 0x4, fixed_abs, tag = 'smem constant byte address 0x4 - core index']
  #allocation1 [shape = 'u32[144,128]{1,0:T(1,128)}', space=vmem, size = 0x12000, scoped, tag = 'internal scratch']
  %s0 = inlined_call_operand.hbm [shape: f32[16,128], index: 0, kind: input, shape index: {}]
  %s1 = inlined_call_operand.hbm [shape: bf16[128,512], index: 1, kind: input, shape index: {}]
  %s2 = inlined_call_operand.hbm [shape: bf16[512,128], index: 2, kind: input, shape index: {}]
  %s3 = inlined_call_operand.vmem [shape: bf16[128,384], index: 3, kind: input, shape index: {}]
  %s4 = inlined_call_operand.hbm [shape: bf16[128,128], index: 4, kind: input, shape index: {}]
  %s5 = inlined_call_operand.hbm [shape: bf16[128,256], index: 5, kind: input, shape index: {}]
  %s6 = inlined_call_operand.hbm [shape: f32[64,256], index: 6, kind: input, shape index: {}]
  %s7 = inlined_call_operand.hbm [shape: bf16[256,128], index: 7, kind: input, shape index: {}]
  %s8 = inlined_call_operand.hbm [shape: bf16[128,512], index: 8, kind: input, shape index: {}]
  %s9 = inlined_call_operand.hbm [shape: bf16[512,128], index: 9, kind: input, shape index: {}]
  %s10 = inlined_call_operand.hbm [shape: f32[18,128], index: 10, kind: input, shape index: {}]
  %s11 = inlined_call_operand.hbm [shape: f32[3,256], index: 11, kind: input, shape index: {}]
  %s12 = inlined_call_operand.hbm [shape: f32[2,512], index: 12, kind: input, shape index: {}]
  %s13 = inlined_call_operand.vmem [shape: f32[1,384], index: 13, kind: input, shape index: {}]
  %s14 = inlined_call_operand.vmem [shape: f32[128,64], index: 14, kind: input, shape index: {}]
  %s15 = inlined_call_operand.hbm [shape: f32[64,128], index: 15, kind: input, shape index: {}]
  %s16 = inlined_call_operand.vmem [shape: f32[16,64], index: 16, kind: input, shape index: {}]
  %s17 = inlined_call_operand.hbm [shape: f32[16,128], index: 17, kind: output, shape index: {}]
  %s18 = sld [smem:[#allocation0]]
  $region130: #{conformer_block.1} parent=0
    _
  %s20 = ssub.s32 1, %s18
  %s21 = scalar_select 0, %s20, %s18
  $region1: #{conformer_block.1} parent=0
    #allocation2 [shape = 'u8[8192]{0}', space=vmem, size = 0x2000, scoped, tag = 'input window, operand 0, single buffered']
    #allocation3 [shape = 's32[1]{0}', space=sflag, size = 0x4, scoped, tag = 'scoped memory for conformer_block.1']
    #allocation4 [shape = 's32[1]{0}', space=sflag, size = 0x4, scoped, tag = 'scoped memory for conformer_block.1']
    #allocation5 [shape = 'u8[131072]{0}', space=vmem, size = 0x20000, scoped, tag = 'input window, operand 1, single buffered']
    #allocation6 [shape = 's32[1]{0}', space=sflag, size = 0x4, scoped, tag = 'scoped memory for conformer_block.1']
    #allocation7 [shape = 'u8[131072]{0}', space=vmem, size = 0x20000, scoped, tag = 'input window, operand 2, single buffered']
    #allocation8 [shape = 'u8[32768]{0}', space=vmem, size = 0x8000, scoped, tag = 'input window, operand 4, single buffered']
    #allocation9 [shape = 's32[1]{0}', space=sflag, size = 0x4, scoped, tag = 'scoped memory for conformer_block.1']
    #allocation10 [shape = 'u8[65536]{0}', space=vmem, size = 0x10000, scoped, tag = 'input window, operand 5, single buffered']
    #allocation11 [shape = 'u8[65536]{0}', space=vmem, size = 0x10000, scoped, tag = 'input window, operand 6, single buffered']
    #allocation12 [shape = 's32[1]{0}', space=sflag, size = 0x4, scoped, tag = 'scoped memory for conformer_block.1']
    #allocation13 [shape = 'u8[65536]{0}', space=vmem, size = 0x10000, scoped, tag = 'input window, operand 7, single buffered']
    #allocation14 [shape = 'u8[131072]{0}', space=vmem, size = 0x20000, scoped, tag = 'input window, operand 8, single buffered']
    #allocation15 [shape = 's32[1]{0}', space=sflag, size = 0x4, scoped, tag = 'scoped memory for conformer_block.1']
    #allocation16 [shape = 'u8[131072]{0}', space=vmem, size = 0x20000, scoped, tag = 'input window, operand 9, single buffered']
    #allocation17 [shape = 'u8[12288]{0}', space=vmem, size = 0x3000, scoped, tag = 'input window, operand 10, single buffered']
    #allocation18 [shape = 's32[1]{0}', space=sflag, size = 0x4, scoped, tag = 'scoped memory for conformer_block.1']
    #allocation19 [shape = 'u8[4096]{0}', space=vmem, size = 0x1000, scoped, tag = 'input window, operand 11, single buffered']
    #allocation20 [shape = 'u8[4096]{0}', space=vmem, size = 0x1000, scoped, tag = 'input window, operand 12, single buffered']
    #allocation21 [shape = 's32[1]{0}', space=sflag, size = 0x4, scoped, tag = 'scoped memory for conformer_block.1']
    #allocation22 [shape = 'u8[32768]{0}', space=vmem, size = 0x8000, scoped, tag = 'input window, operand 15, single buffered']
    #allocation23 [shape = 'u8[8192]{0}', space=vmem, size = 0x2000, scoped, tag = 'output window, operand 0, single buffered']
    %22 = vsyncpa [#allocation3], 0
    %23 = vsyncpa [#allocation6], 0
    %24 = vsyncpa [#allocation9], 0
    %25 = vsyncpa [#allocation12], 0
    %26 = vsyncpa [#allocation15], 0
    %27 = vsyncpa [#allocation18], 0
    %28 = vsyncpa [#allocation21], 0
    %29 = vsyncpa [#allocation4], 0
    // Predicated region
    $region2: #{conformer_block.1} parent=1 // pred_check
      _
    $region3: #{conformer_block.1} parent=1 // pred_check_branch
      %31 = sbr.rel (0) target = $region5
    $region4: #{conformer_block.1} parent=1 // pred_region
      %s33 = ssub.s32 256, 256
      %34 = vsyncadd [#allocation3], %s33
      %s35 = sshll.u32 [#allocation2], 4
      %s36 = int_to_ptr.vmem [resolvable:$true] %s35
      %41 = dma.hbm_to_vmem [thread:$0]  %s0, 256, %s36, [#allocation3], 128, 128, 8
    $region5: #{conformer_block.1} parent=1 // pred_fallthru
      _
    // Predicated region
    $region6: #{conformer_block.1} parent=1 // pred_check
      _
    $region7: #{conformer_block.1} parent=1 // pred_check_branch
      %43 = sbr.rel (0) target = $region9
    $region8: #{conformer_block.1} parent=1 // pred_region
      %s45 = ssub.s32 4096, 4096
      %46 = vsyncadd [#allocation6], %s45
      %s47 = sshll.u32 [#allocation5], 4
      %s48 = int_to_ptr.vmem [resolvable:$true] %s47
      %53 = dma.hbm_to_vmem [thread:$0]  %s1, 4096, %s48, [#allocation6], 256, 256, 16
    $region9: #{conformer_block.1} parent=1 // pred_fallthru
      _
    // Predicated region
    $region10: #{conformer_block.1} parent=1 // pred_check
      _
    $region11: #{conformer_block.1} parent=1 // pred_check_branch
      %55 = sbr.rel (0) target = $region13
    $region12: #{conformer_block.1} parent=1 // pred_region
      %s57 = ssub.s32 4096, 4096
      %58 = vsyncadd [#allocation6], %s57
      %s59 = sshll.u32 [#allocation7], 4
      %s60 = int_to_ptr.vmem [resolvable:$true] %s59
      %65 = dma.hbm_to_vmem [thread:$0]  %s2, 4096, %s60, [#allocation6], 64, 64, 4
    $region13: #{conformer_block.1} parent=1 // pred_fallthru
      _
    // Predicated region
    $region14: #{conformer_block.1} parent=1 // pred_check
      _
    $region15: #{conformer_block.1} parent=1 // pred_check_branch
      %67 = sbr.rel (0) target = $region17
    $region16: #{conformer_block.1} parent=1 // pred_region
      _
    $region17: #{conformer_block.1} parent=1 // pred_fallthru
      _
    // Predicated region
    $region18: #{conformer_block.1} parent=1 // pred_check
      _
    $region19: #{conformer_block.1} parent=1 // pred_check_branch
      %69 = sbr.rel (0) target = $region21
    $region20: #{conformer_block.1} parent=1 // pred_region
      %s71 = ssub.s32 1024, 1024
      %72 = vsyncadd [#allocation9], %s71
      %s73 = sshll.u32 [#allocation8], 4
      %s74 = int_to_ptr.vmem [resolvable:$true] %s73
      %79 = dma.hbm_to_vmem [thread:$0]  %s4, 1024, %s74, [#allocation9], 64, 64, 4
    $region21: #{conformer_block.1} parent=1 // pred_fallthru
      _
    // Predicated region
    $region22: #{conformer_block.1} parent=1 // pred_check
      _
    $region23: #{conformer_block.1} parent=1 // pred_check_branch
      %81 = sbr.rel (0) target = $region25
    $region24: #{conformer_block.1} parent=1 // pred_region
      %s83 = ssub.s32 2048, 2048
      %84 = vsyncadd [#allocation9], %s83
      %s85 = sshll.u32 [#allocation10], 4
      %s86 = int_to_ptr.vmem [resolvable:$true] %s85
      %91 = dma.hbm_to_vmem [thread:$0]  %s5, 2048, %s86, [#allocation9], 128, 128, 8
    $region25: #{conformer_block.1} parent=1 // pred_fallthru
      _
    // Predicated region
    $region26: #{conformer_block.1} parent=1 // pred_check
      _
    $region27: #{conformer_block.1} parent=1 // pred_check_branch
      %93 = sbr.rel (0) target = $region29
    $region28: #{conformer_block.1} parent=1 // pred_region
      %s95 = ssub.s32 2048, 2048
      %96 = vsyncadd [#allocation12], %s95
      %s97 = sshll.u32 [#allocation11], 4
      %s98 = int_to_ptr.vmem [resolvable:$true] %s97
      %103 = dma.hbm_to_vmem [thread:$0]  %s6, 2048, %s98, [#allocation12], 256, 256, 16
    $region29: #{conformer_block.1} parent=1 // pred_fallthru
      _
    // Predicated region
    $region30: #{conformer_block.1} parent=1 // pred_check
      _
    $region31: #{conformer_block.1} parent=1 // pred_check_branch
      %105 = sbr.rel (0) target = $region33
    $region32: #{conformer_block.1} parent=1 // pred_region
      %s107 = ssub.s32 2048, 2048
      %108 = vsyncadd [#allocation12], %s107
      %s109 = sshll.u32 [#allocation13], 4
      %s110 = int_to_ptr.vmem [resolvable:$true] %s109
      %115 = dma.hbm_to_vmem [thread:$0]  %s7, 2048, %s110, [#allocation12], 64, 64, 4
    $region33: #{conformer_block.1} parent=1 // pred_fallthru
      _
    // Predicated region
    $region34: #{conformer_block.1} parent=1 // pred_check
      _
    $region35: #{conformer_block.1} parent=1 // pred_check_branch
      %117 = sbr.rel (0) target = $region37
    $region36: #{conformer_block.1} parent=1 // pred_region
      %s119 = ssub.s32 4096, 4096
      %120 = vsyncadd [#allocation15], %s119
      %s121 = sshll.u32 [#allocation14], 4
      %s122 = int_to_ptr.vmem [resolvable:$true] %s121
      %127 = dma.hbm_to_vmem [thread:$0]  %s8, 4096, %s122, [#allocation15], 256, 256, 16
    $region37: #{conformer_block.1} parent=1 // pred_fallthru
      _
    // Predicated region
    $region38: #{conformer_block.1} parent=1 // pred_check
      _
    $region39: #{conformer_block.1} parent=1 // pred_check_branch
      %129 = sbr.rel (0) target = $region41
    $region40: #{conformer_block.1} parent=1 // pred_region
      %s131 = ssub.s32 4096, 4096
      %132 = vsyncadd [#allocation15], %s131
      %s133 = sshll.u32 [#allocation16], 4
      %s134 = int_to_ptr.vmem [resolvable:$true] %s133
      %139 = dma.hbm_to_vmem [thread:$0]  %s9, 4096, %s134, [#allocation15], 64, 64, 4
    $region41: #{conformer_block.1} parent=1 // pred_fallthru
      _
    // Predicated region
    $region42: #{conformer_block.1} parent=1 // pred_check
      _
    $region43: #{conformer_block.1} parent=1 // pred_check_branch
      %141 = sbr.rel (0) target = $region45
    $region44: #{conformer_block.1} parent=1 // pred_region
      %s143 = ssub.s32 384, 384
      %144 = vsyncadd [#allocation18], %s143
      %s145 = sshll.u32 [#allocation17], 4
      %s146 = int_to_ptr.vmem [resolvable:$true] %s145
      %151 = dma.hbm_to_vmem [thread:$0]  %s10, 384, %s146, [#allocation18], 128, 128, 8
    $region45: #{conformer_block.1} parent=1 // pred_fallthru
      _
    // Predicated region
    $region46: #{conformer_block.1} parent=1 // pred_check
      _
    $region47: #{conformer_block.1} parent=1 // pred_check_branch
      %153 = sbr.rel (0) target = $region49
    $region48: #{conformer_block.1} parent=1 // pred_region
      %s155 = ssub.s32 128, 128
      %156 = vsyncadd [#allocation18], %s155
      %s158 = sshll.u32 [#allocation19], 4
      %s159 = int_to_ptr.vmem [resolvable:$true] %s158
      %161 = dma.hbm_to_vmem [thread:$0]  %s11, 128, %s159, [#allocation18]
    $region49: #{conformer_block.1} parent=1 // pred_fallthru
      _
    // Predicated region
    $region50: #{conformer_block.1} parent=1 // pred_check
      _
    $region51: #{conformer_block.1} parent=1 // pred_check_branch
      %163 = sbr.rel (0) target = $region53
    $region52: #{conformer_block.1} parent=1 // pred_region
      %s165 = ssub.s32 128, 128
      %166 = vsyncadd [#allocation21], %s165
      %s168 = sshll.u32 [#allocation20], 4
      %s169 = int_to_ptr.vmem [resolvable:$true] %s168
      %171 = dma.hbm_to_vmem [thread:$0]  %s12, 128, %s169, [#allocation21]
    $region53: #{conformer_block.1} parent=1 // pred_fallthru
      _
    // Predicated region
    $region54: #{conformer_block.1} parent=1 // pred_check
      _
    $region55: #{conformer_block.1} parent=1 // pred_check_branch
      %173 = sbr.rel (0) target = $region57
    $region56: #{conformer_block.1} parent=1 // pred_region
      _
    $region57: #{conformer_block.1} parent=1 // pred_fallthru
      _
    // Predicated region
    $region58: #{conformer_block.1} parent=1 // pred_check
      _
    $region59: #{conformer_block.1} parent=1 // pred_check_branch
      %175 = sbr.rel (0) target = $region61
    $region60: #{conformer_block.1} parent=1 // pred_region
      _
    $region61: #{conformer_block.1} parent=1 // pred_fallthru
      _
    // Predicated region
    $region62: #{conformer_block.1} parent=1 // pred_check
      _
    $region63: #{conformer_block.1} parent=1 // pred_check_branch
      %177 = sbr.rel (0) target = $region65
    $region64: #{conformer_block.1} parent=1 // pred_region
      %s179 = ssub.s32 1024, 1024
      %180 = vsyncadd [#allocation21], %s179
      %s181 = sshll.u32 [#allocation22], 4
      %s182 = int_to_ptr.vmem [resolvable:$true] %s181
      %187 = dma.hbm_to_vmem [thread:$0]  %s15, 1024, %s182, [#allocation21], 128, 128, 8
    $region65: #{conformer_block.1} parent=1 // pred_fallthru
      _
    // Predicated region
    $region66: #{conformer_block.1} parent=1 // pred_check
      _
    $region67: #{conformer_block.1} parent=1 // pred_check_branch
      %189 = sbr.rel (0) target = $region69
    $region68: #{conformer_block.1} parent=1 // pred_region
      _
    $region69: #{conformer_block.1} parent=1 // pred_fallthru
      _
    // Predicated region
    $region70: #{conformer_block.1} parent=1 // pred_check
      _
    $region71: #{conformer_block.1} parent=1 // pred_check_branch
      %191 = sbr.rel (0) target = $region73
    $region72: #{conformer_block.1} parent=1 // pred_region
      %192 = dma.done [#allocation3], 256
    $region73: #{conformer_block.1} parent=1 // pred_fallthru
      _
    // Predicated region
    $region74: #{conformer_block.1} parent=1 // pred_check
      _
    $region75: #{conformer_block.1} parent=1 // pred_check_branch
      %194 = sbr.rel (0) target = $region77
    $region76: #{conformer_block.1} parent=1 // pred_region
      %195 = dma.done [#allocation6], 4096
    $region77: #{conformer_block.1} parent=1 // pred_fallthru
      _
    // Predicated region
    $region78: #{conformer_block.1} parent=1 // pred_check
      _
    $region79: #{conformer_block.1} parent=1 // pred_check_branch
      %197 = sbr.rel (0) target = $region81
    $region80: #{conformer_block.1} parent=1 // pred_region
      %198 = dma.done [#allocation6], 4096
    $region81: #{conformer_block.1} parent=1 // pred_fallthru
      _
    // Predicated region
    $region82: #{conformer_block.1} parent=1 // pred_check
      _
    $region83: #{conformer_block.1} parent=1 // pred_check_branch
      %200 = sbr.rel (0) target = $region85
    $region84: #{conformer_block.1} parent=1 // pred_region
      %201 = dma.done [#allocation9], 1024
    $region85: #{conformer_block.1} parent=1 // pred_fallthru
      _
    // Predicated region
    $region86: #{conformer_block.1} parent=1 // pred_check
      _
    $region87: #{conformer_block.1} parent=1 // pred_check_branch
      %203 = sbr.rel (0) target = $region89
    $region88: #{conformer_block.1} parent=1 // pred_region
      %204 = dma.done [#allocation9], 2048
    $region89: #{conformer_block.1} parent=1 // pred_fallthru
      _
    // Predicated region
    $region90: #{conformer_block.1} parent=1 // pred_check
      _
    $region91: #{conformer_block.1} parent=1 // pred_check_branch
      %206 = sbr.rel (0) target = $region93
    $region92: #{conformer_block.1} parent=1 // pred_region
      %207 = dma.done [#allocation12], 2048
    $region93: #{conformer_block.1} parent=1 // pred_fallthru
      _
    // Predicated region
    $region94: #{conformer_block.1} parent=1 // pred_check
      _
    $region95: #{conformer_block.1} parent=1 // pred_check_branch
      %209 = sbr.rel (0) target = $region97
    $region96: #{conformer_block.1} parent=1 // pred_region
      %210 = dma.done [#allocation12], 2048
    $region97: #{conformer_block.1} parent=1 // pred_fallthru
      _
    // Predicated region
    $region98: #{conformer_block.1} parent=1 // pred_check
      _
    $region99: #{conformer_block.1} parent=1 // pred_check_branch
      %212 = sbr.rel (0) target = $region101
    $region100: #{conformer_block.1} parent=1 // pred_region
      %213 = dma.done [#allocation15], 4096
    $region101: #{conformer_block.1} parent=1 // pred_fallthru
      _
    // Predicated region
    $region102: #{conformer_block.1} parent=1 // pred_check
      _
    $region103: #{conformer_block.1} parent=1 // pred_check_branch
      %215 = sbr.rel (0) target = $region105
    $region104: #{conformer_block.1} parent=1 // pred_region
      %216 = dma.done [#allocation15], 4096
    $region105: #{conformer_block.1} parent=1 // pred_fallthru
      _
    // Predicated region
    $region106: #{conformer_block.1} parent=1 // pred_check
      _
    $region107: #{conformer_block.1} parent=1 // pred_check_branch
      %218 = sbr.rel (0) target = $region109
    $region108: #{conformer_block.1} parent=1 // pred_region
      %219 = dma.done [#allocation18], 384
    $region109: #{conformer_block.1} parent=1 // pred_fallthru
      _
    // Predicated region
    $region110: #{conformer_block.1} parent=1 // pred_check
      _
    $region111: #{conformer_block.1} parent=1 // pred_check_branch
      %221 = sbr.rel (0) target = $region113
    $region112: #{conformer_block.1} parent=1 // pred_region
      %222 = dma.done [#allocation18], 128
    $region113: #{conformer_block.1} parent=1 // pred_fallthru
      _
    // Predicated region
    $region114: #{conformer_block.1} parent=1 // pred_check
      _
    $region115: #{conformer_block.1} parent=1 // pred_check_branch
      %224 = sbr.rel (0) target = $region117
    $region116: #{conformer_block.1} parent=1 // pred_region
      %225 = dma.done [#allocation21], 128
    $region117: #{conformer_block.1} parent=1 // pred_fallthru
      _
    // Predicated region
    $region118: #{conformer_block.1} parent=1 // pred_check
      _
    $region119: #{conformer_block.1} parent=1 // pred_check_branch
      %227 = sbr.rel (0) target = $region121
    $region120: #{conformer_block.1} parent=1 // pred_region
      %228 = dma.done [#allocation21], 1024
    $region121: #{conformer_block.1} parent=1 // pred_fallthru
      _
    %v230 = vld [vmem:[#allocation2] sm:$0xff]
    %v231 = vld [vmem:[#allocation2 + $0x8] sm:$0xff]
    %v232 = vld [vmem:[#allocation17] sm:$0x1]
    %v233 = vld [vmem:[#allocation17 + $0x1] sm:$0x1]
    %234 = vadd.xlane.f32.xlu0 %v230
    %v235 = vpop.xlane.xlu0 %234
    %236 = vadd.xlane.f32.xlu0 %v231
    %v237 = vpop.xlane.xlu0 %236
    %v238 = vrcp.pop 128.0
    %v239 = vmul.f32 %v235, %v238
    %v240 = vmul.f32 %v237, %v238
    %v241 = vsub.f32 %v230, %v239
    %v242 = vsub.f32 %v231, %v240
    %v243 = vmul.f32 %v241, %v241
    %v244 = vmul.f32 %v242, %v242
    %245 = vadd.xlane.f32.xlu0 %v243
    %v246 = vpop.xlane.xlu0 %245
    %247 = vadd.xlane.f32.xlu0 %v244
    %v248 = vpop.xlane.xlu0 %247
    %v249 = vmul.f32 %v246, %v238
    %v250 = vmul.f32 %v248, %v238
    %v251 = vadd.f32 %v249, 1e-05
    %v252 = vadd.f32 %v250, 1e-05
    %v253 = vrsqrt.pop %v251
    %v254 = vrsqrt.pop %v252
    %v255 = vmul.f32 %v241, %v253
    %v256 = vmul.f32 %v242, %v254
    %v257 = vlaneseq
    %v258 = vshrl.u32 %v257, 7
    %v259 = vsub.s32 0, %v258
    %v260 = vrot.slane %v232, %v259
    %v261 = vmul.f32 %v255, %v260
    %v262 = vmul.f32 %v256, %v260
    %v263 = vlaneseq
    %v264 = vshrl.u32 %v263, 7
    %v265 = vsub.s32 0, %v264
    %v266 = vrot.slane %v233, %v265
    %v267 = vadd.f32 %v261, %v266
    %v268 = vadd.f32 %v262, %v266
    %v269 = vld [vmem:[#allocation17 + $0x2] sm:$0x1]
    %v270 = vld [vmem:[#allocation17 + $0x3] sm:$0x1]
    %v271 = vld [vmem:[#allocation20] ss:$2 sm:$0xf]
    %v272 = vld [vmem:[#allocation17 + $0x4] sm:$0x1]
    %273 = vadd.xlane.f32.xlu0 %v267
    %v274 = vpop.xlane.xlu0 %273
    %275 = vadd.xlane.f32.xlu0 %v268
    %v276 = vpop.xlane.xlu0 %275
    %v277 = vmul.f32 %v274, %v238
    %v278 = vmul.f32 %v276, %v238
    %v279 = vsub.f32 %v267, %v277
    %v280 = vsub.f32 %v268, %v278
    %v281 = vmul.f32 %v279, %v279
    %v282 = vmul.f32 %v280, %v280
    %283 = vadd.xlane.f32.xlu0 %v281
    %v284 = vpop.xlane.xlu0 %283
    %285 = vadd.xlane.f32.xlu0 %v282
    %v286 = vpop.xlane.xlu0 %285
    %v287 = vmul.f32 %v284, %v238
    %v288 = vmul.f32 %v286, %v238
    %v289 = vadd.f32 %v287, 1e-05
    %v290 = vadd.f32 %v288, 1e-05
    %v291 = vrsqrt.pop %v289
    %v292 = vrsqrt.pop %v290
    %v293 = vmul.f32 %v279, %v291
    %v294 = vmul.f32 %v280, %v292
    %v295 = vlaneseq
    %v296 = vshrl.u32 %v295, 7
    %v297 = vsub.s32 0, %v296
    %v298 = vrot.slane %v269, %v297
    %v299 = vmul.f32 %v293, %v298
    %v300 = vmul.f32 %v294, %v298
    %v301 = vlaneseq
    %v302 = vshrl.u32 %v301, 7
    %v303 = vsub.s32 0, %v302
    %v304 = vrot.slane %v270, %v303
    %v305 = vadd.f32 %v299, %v304
    %v306 = vadd.f32 %v300, %v304
    %v307 = vpack.c.bf16 %v306, %v305
    %v308 = vld [vmem:[#allocation5] sm:$0xff]
    %v309 = vld [vmem:[#allocation5 + $0x8] sm:$0xff]
    %v310 = vld [vmem:[#allocation5 + $0x10] sm:$0xff]
    %v311 = vld [vmem:[#allocation5 + $0x18] sm:$0xff]
    %v312 = vld [vmem:[#allocation5 + $0x20] sm:$0xff]
    %v313 = vld [vmem:[#allocation5 + $0x28] sm:$0xff]
    %v314 = vld [vmem:[#allocation5 + $0x30] sm:$0xff]
    %v315 = vld [vmem:[#allocation5 + $0x38] sm:$0xff]
    %v316 = vld [vmem:[#allocation5 + $0x40] sm:$0xff]
    %v317 = vld [vmem:[#allocation5 + $0x48] sm:$0xff]
    %v318 = vld [vmem:[#allocation5 + $0x50] sm:$0xff]
    %v319 = vld [vmem:[#allocation5 + $0x58] sm:$0xff]
    %v320 = vld [vmem:[#allocation5 + $0x60] sm:$0xff]
    %v321 = vld [vmem:[#allocation5 + $0x68] sm:$0xff]
    %v322 = vld [vmem:[#allocation5 + $0x70] sm:$0xff]
    %v323 = vld [vmem:[#allocation5 + $0x78] sm:$0xff]
    %v324 = vld [vmem:[#allocation5 + $0x80] sm:$0xff]
    %v325 = vld [vmem:[#allocation5 + $0x88] sm:$0xff]
    %v326 = vld [vmem:[#allocation5 + $0x90] sm:$0xff]
    %v327 = vld [vmem:[#allocation5 + $0x98] sm:$0xff]
    %v328 = vld [vmem:[#allocation5 + $0xa0] sm:$0xff]
    %v329 = vld [vmem:[#allocation5 + $0xa8] sm:$0xff]
    %v330 = vld [vmem:[#allocation5 + $0xb0] sm:$0xff]
    %v331 = vld [vmem:[#allocation5 + $0xb8] sm:$0xff]
    %v332 = vld [vmem:[#allocation5 + $0xc0] sm:$0xff]
    %v333 = vld [vmem:[#allocation5 + $0xc8] sm:$0xff]
    %v334 = vld [vmem:[#allocation5 + $0xd0] sm:$0xff]
    %v335 = vld [vmem:[#allocation5 + $0xd8] sm:$0xff]
    %v336 = vld [vmem:[#allocation5 + $0xe0] sm:$0xff]
    %v337 = vld [vmem:[#allocation5 + $0xe8] sm:$0xff]
    %v338 = vld [vmem:[#allocation5 + $0xf0] sm:$0xff]
    %v339 = vld [vmem:[#allocation5 + $0xf8] sm:$0xff]
    %v341 = vlaneseq
    %v342 = vshrl.u32 %v341, 7
    %v343 = vsub.s32 0, %v342
    %v344 = vrot.slane %v271, %v343
    %v345 = vlaneseq
    %v346 = vshrl.u32 %v345, 7
    %v347 = vsub.s32 1, %v346
    %v348 = vrot.slane %v271, %v347
    %v349 = vlaneseq
    %v350 = vshrl.u32 %v349, 7
    %v351 = vsub.s32 2, %v350
    %v352 = vrot.slane %v271, %v351
    %v353 = vlaneseq
    %v354 = vshrl.u32 %v353, 7
    %v355 = vsub.s32 3, %v354
    %v356 = vrot.slane %v271, %v355
    %v393 = vunpack.c.l.b16 %v308
    %v394 = vunpack.c.h.b16 %v308
    %v395 = vunpack.c.l.b16 %v309
    %v396 = vunpack.c.h.b16 %v309
    %v397 = vunpack.c.l.b16 %v310
    %v398 = vunpack.c.h.b16 %v310
    %v399 = vunpack.c.l.b16 %v311
    %v400 = vunpack.c.h.b16 %v311
    %v401 = vunpack.c.l.b16 %v312
    %v402 = vunpack.c.h.b16 %v312
    %v403 = vunpack.c.l.b16 %v313
    %v404 = vunpack.c.h.b16 %v313
    %v405 = vunpack.c.l.b16 %v314
    %v406 = vunpack.c.h.b16 %v314
    %v407 = vunpack.c.l.b16 %v315
    %v408 = vunpack.c.h.b16 %v315
    %v409 = vunpack.c.l.b16 %v316
    %v410 = vunpack.c.h.b16 %v316
    %v411 = vunpack.c.l.b16 %v317
    %v412 = vunpack.c.h.b16 %v317
    %v413 = vunpack.c.l.b16 %v318
    %v414 = vunpack.c.h.b16 %v318
    %v415 = vunpack.c.l.b16 %v319
    %v416 = vunpack.c.h.b16 %v319
    %v417 = vunpack.c.l.b16 %v320
    %v418 = vunpack.c.h.b16 %v320
    %v419 = vunpack.c.l.b16 %v321
    %v420 = vunpack.c.h.b16 %v321
    %v421 = vunpack.c.l.b16 %v322
    %v422 = vunpack.c.h.b16 %v322
    %v423 = vunpack.c.l.b16 %v323
    %v424 = vunpack.c.h.b16 %v323
    %v425 = vunpack.c.l.b16 %v324
    %v426 = vunpack.c.h.b16 %v324
    %v427 = vunpack.c.l.b16 %v325
    %v428 = vunpack.c.h.b16 %v325
    %v429 = vunpack.c.l.b16 %v326
    %v430 = vunpack.c.h.b16 %v326
    %v431 = vunpack.c.l.b16 %v327
    %v432 = vunpack.c.h.b16 %v327
    %v433 = vunpack.c.l.b16 %v328
    %v434 = vunpack.c.h.b16 %v328
    %v435 = vunpack.c.l.b16 %v329
    %v436 = vunpack.c.h.b16 %v329
    %v437 = vunpack.c.l.b16 %v330
    %v438 = vunpack.c.h.b16 %v330
    %v439 = vunpack.c.l.b16 %v331
    %v440 = vunpack.c.h.b16 %v331
    %v441 = vunpack.c.l.b16 %v332
    %v442 = vunpack.c.h.b16 %v332
    %v443 = vunpack.c.l.b16 %v333
    %v444 = vunpack.c.h.b16 %v333
    %v445 = vunpack.c.l.b16 %v334
    %v446 = vunpack.c.h.b16 %v334
    %v447 = vunpack.c.l.b16 %v335
    %v448 = vunpack.c.h.b16 %v335
    %v449 = vunpack.c.l.b16 %v336
    %v450 = vunpack.c.h.b16 %v336
    %v451 = vunpack.c.l.b16 %v337
    %v452 = vunpack.c.h.b16 %v337
    %v453 = vunpack.c.l.b16 %v338
    %v454 = vunpack.c.h.b16 %v338
    %v455 = vunpack.c.l.b16 %v339
    %v456 = vunpack.c.h.b16 %v339
    %v457 = vpack.c.b16 %v397, %v393
    %v458 = vpack.c.b16 %v398, %v394
    %v459 = vpack.c.b16 %v399, %v395
    %v460 = vpack.c.b16 %v400, %v396
    %v461 = vpack.c.b16 %v405, %v401
    %v462 = vpack.c.b16 %v406, %v402
    %v463 = vpack.c.b16 %v407, %v403
    %v464 = vpack.c.b16 %v408, %v404
    %v465 = vpack.c.b16 %v413, %v409
    %v466 = vpack.c.b16 %v414, %v410
    %v467 = vpack.c.b16 %v415, %v411
    %v468 = vpack.c.b16 %v416, %v412
    %v469 = vpack.c.b16 %v421, %v417
    %v470 = vpack.c.b16 %v422, %v418
    %v471 = vpack.c.b16 %v423, %v419
    %v472 = vpack.c.b16 %v424, %v420
    %v473 = vpack.c.b16 %v429, %v425
    %v474 = vpack.c.b16 %v430, %v426
    %v475 = vpack.c.b16 %v431, %v427
    %v476 = vpack.c.b16 %v432, %v428
    %v477 = vpack.c.b16 %v437, %v433
    %v478 = vpack.c.b16 %v438, %v434
    %v479 = vpack.c.b16 %v439, %v435
    %v480 = vpack.c.b16 %v440, %v436
    %v481 = vpack.c.b16 %v445, %v441
    %v482 = vpack.c.b16 %v446, %v442
    %v483 = vpack.c.b16 %v447, %v443
    %v484 = vpack.c.b16 %v448, %v444
    %v485 = vpack.c.b16 %v453, %v449
    %v486 = vpack.c.b16 %v454, %v450
    %v487 = vpack.c.b16 %v455, %v451
    %v488 = vpack.c.b16 %v456, %v452
    %521 = vmatprep.subr.bf16.mxu0 %v486
    %522 = vmatpush1.bf16.msra.mxu0 %v485
    %523 = vmatprep.subr.bf16.mxu0 %v482
    %524 = vmatpush1.bf16.msra.mxu0 %v481
    %525 = vmatprep.subr.bf16.mxu0 %v478
    %526 = vmatpush1.bf16.msra.mxu0 %v477
    %527 = vmatprep.subr.bf16.mxu0 %v474
    %528 = vmatpush1.bf16.msra.mxu0 %v473
    %529 = vmatprep.subr.bf16.mxu0 %v470
    %530 = vmatpush1.bf16.msra.mxu0 %v469
    %531 = vmatprep.subr.bf16.mxu0 %v466
    %532 = vmatpush1.bf16.msra.mxu0 %v465
    %533 = vmatprep.subr.bf16.mxu0 %v462
    %534 = vmatpush1.bf16.msra.mxu0 %v461
    %535 = vmatprep.subr.bf16.mxu0 %v458
    %536 = vmatpush1.bf16.msra.mxu0 %v457
    %537 = vmatprep.subr.bf16.mxu0 0
    %538 = vmatpush2.bf16.msra.mxu0 0
    %539 = vmatprep.subr.bf16.mxu0 0
    %540 = vmatpush2.bf16.msra.mxu0 0
    %541 = vmatprep.subr.bf16.mxu0 0
    %542 = vmatpush2.bf16.msra.mxu0 0
    %543 = vmatprep.subr.bf16.mxu0 0
    %544 = vmatpush2.bf16.msra.mxu0 0
    %545 = vmatprep.subr.bf16.mxu0 0
    %546 = vmatpush2.bf16.msra.mxu0 0
    %547 = vmatprep.subr.bf16.mxu0 0
    %548 = vmatpush2.bf16.msra.mxu0 0
    %549 = vmatprep.subr.bf16.mxu0 0
    %550 = vmatpush2.bf16.msra.mxu0 0
    %551 = vmatprep.subr.bf16.mxu0 0
    %552 = vmatpush2.bf16.msra.mxu0 0
    %553 = vmatprep.mubr.bf16.mxu0 0
    %554 = vmatmul.mubr.bf16.gmra.mxu0 %v307
    %v555 = vpop.f32.mrf.mxu0
    %v556 = vadd.f32 %v344, %v555
    %v557 = vpop.f32.mrf.mxu0
    %v558 = vadd.f32 %v348, %v557
    %v559 = vpop.f32.mrf.mxu0
    %v560 = vadd.f32 %v344, %v559
    %v561 = vpop.f32.mrf.mxu0
    %v562 = vadd.f32 %v348, %v561
    %563 = vdwg.mxu0
    %564 = vmatprep.subr.bf16.mxu0 %v488
    %565 = vmatpush1.bf16.msra.mxu0 %v487
    %566 = vmatprep.subr.bf16.mxu0 %v484
    %567 = vmatpush1.bf16.msra.mxu0 %v483
    %568 = vmatprep.subr.bf16.mxu0 %v480
    %569 = vmatpush1.bf16.msra.mxu0 %v479
    %570 = vmatprep.subr.bf16.mxu0 %v476
    %571 = vmatpush1.bf16.msra.mxu0 %v475
    %572 = vmatprep.subr.bf16.mxu0 %v472
    %573 = vmatpush1.bf16.msra.mxu0 %v471
    %574 = vmatprep.subr.bf16.mxu0 %v468
    %575 = vmatpush1.bf16.msra.mxu0 %v467
    %576 = vmatprep.subr.bf16.mxu0 %v464
    %577 = vmatpush1.bf16.msra.mxu0 %v463
    %578 = vmatprep.subr.bf16.mxu0 %v460
    %579 = vmatpush1.bf16.msra.mxu0 %v459
    %580 = vmatprep.subr.bf16.mxu0 0
    %581 = vmatpush2.bf16.msra.mxu0 0
    %582 = vmatprep.subr.bf16.mxu0 0
    %583 = vmatpush2.bf16.msra.mxu0 0
    %584 = vmatprep.subr.bf16.mxu0 0
    %585 = vmatpush2.bf16.msra.mxu0 0
    %586 = vmatprep.subr.bf16.mxu0 0
    %587 = vmatpush2.bf16.msra.mxu0 0
    %588 = vmatprep.subr.bf16.mxu0 0
    %589 = vmatpush2.bf16.msra.mxu0 0
    %590 = vmatprep.subr.bf16.mxu0 0
    %591 = vmatpush2.bf16.msra.mxu0 0
    %592 = vmatprep.subr.bf16.mxu0 0
    %593 = vmatpush2.bf16.msra.mxu0 0
    %594 = vmatprep.subr.bf16.mxu0 0
    %595 = vmatpush2.bf16.msra.mxu0 0
    %596 = vmatprep.mubr.bf16.mxu0 0
    %597 = vmatmul.mubr.bf16.gmra.mxu0 %v307
    %v598 = vpop.f32.mrf.mxu0
    %v599 = vadd.f32 %v352, %v598
    %v600 = vpop.f32.mrf.mxu0
    %v601 = vadd.f32 %v356, %v600
    %v602 = vpop.f32.mrf.mxu0
    %v603 = vadd.f32 %v352, %v602
    %v604 = vpop.f32.mrf.mxu0
    %v605 = vadd.f32 %v356, %v604
    %606 = vdwg.mxu0
    %v607 = vmul.f32 %v556, 0.5
    %v608 = vmul.f32 %v558, 0.5
    %v609 = vmul.f32 %v599, 0.5
    %v610 = vmul.f32 %v601, 0.5
    %v611 = vmul.f32 %v560, 0.5
    %v612 = vmul.f32 %v562, 0.5
    %v613 = vmul.f32 %v603, 0.5
    %v614 = vmul.f32 %v605, 0.5
    %v615 = vtanh.pop %v607
    %v616 = vtanh.pop %v608
    %v617 = vtanh.pop %v609
    %v618 = vtanh.pop %v610
    %v619 = vtanh.pop %v611
    %v620 = vtanh.pop %v612
    %v621 = vtanh.pop %v613
    %v622 = vtanh.pop %v614
    %v623 = vmul.f32 %v615, 0.5
    %v624 = vmul.f32 %v616, 0.5
    %v625 = vmul.f32 %v617, 0.5
    %v626 = vmul.f32 %v618, 0.5
    %v627 = vmul.f32 %v619, 0.5
    %v628 = vmul.f32 %v620, 0.5
    %v629 = vmul.f32 %v621, 0.5
    %v630 = vmul.f32 %v622, 0.5
    %v631 = vadd.f32 %v623, 0.5
    %v632 = vadd.f32 %v624, 0.5
    %v633 = vadd.f32 %v625, 0.5
    %v634 = vadd.f32 %v626, 0.5
    %v635 = vadd.f32 %v627, 0.5
    %v636 = vadd.f32 %v628, 0.5
    %v637 = vadd.f32 %v629, 0.5
    %v638 = vadd.f32 %v630, 0.5
    %v639 = vmul.f32 %v556, %v631
    %v640 = vmul.f32 %v558, %v632
    %v641 = vmul.f32 %v599, %v633
    %v642 = vmul.f32 %v601, %v634
    %v643 = vmul.f32 %v560, %v635
    %v644 = vmul.f32 %v562, %v636
    %v645 = vmul.f32 %v603, %v637
    %v646 = vmul.f32 %v605, %v638
    %v647 = vpack.c.bf16 %v643, %v639
    %v648 = vpack.c.bf16 %v644, %v640
    %v649 = vpack.c.bf16 %v645, %v641
    %v650 = vpack.c.bf16 %v646, %v642
    %v651 = vld [vmem:[#allocation7] sm:$0xf]
    %v652 = vld [vmem:[#allocation7 + $0x4] sm:$0xf]
    %v653 = vld [vmem:[#allocation7 + $0x8] sm:$0xf]
    %v654 = vld [vmem:[#allocation7 + $0xc] sm:$0xf]
    %v655 = vld [vmem:[#allocation7 + $0x10] sm:$0xf]
    %v656 = vld [vmem:[#allocation7 + $0x14] sm:$0xf]
    %v657 = vld [vmem:[#allocation7 + $0x18] sm:$0xf]
    %v658 = vld [vmem:[#allocation7 + $0x1c] sm:$0xf]
    %v659 = vld [vmem:[#allocation7 + $0x20] sm:$0xf]
    %v660 = vld [vmem:[#allocation7 + $0x24] sm:$0xf]
    %v661 = vld [vmem:[#allocation7 + $0x28] sm:$0xf]
    %v662 = vld [vmem:[#allocation7 + $0x2c] sm:$0xf]
    %v663 = vld [vmem:[#allocation7 + $0x30] sm:$0xf]
    %v664 = vld [vmem:[#allocation7 + $0x34] sm:$0xf]
    %v665 = vld [vmem:[#allocation7 + $0x38] sm:$0xf]
    %v666 = vld [vmem:[#allocation7 + $0x3c] sm:$0xf]
    %v667 = vld [vmem:[#allocation7 + $0x40] sm:$0xf]
    %v668 = vld [vmem:[#allocation7 + $0x44] sm:$0xf]
    %v669 = vld [vmem:[#allocation7 + $0x48] sm:$0xf]
    %v670 = vld [vmem:[#allocation7 + $0x4c] sm:$0xf]
    %v671 = vld [vmem:[#allocation7 + $0x50] sm:$0xf]
    %v672 = vld [vmem:[#allocation7 + $0x54] sm:$0xf]
    %v673 = vld [vmem:[#allocation7 + $0x58] sm:$0xf]
    %v674 = vld [vmem:[#allocation7 + $0x5c] sm:$0xf]
    %v675 = vld [vmem:[#allocation7 + $0x60] sm:$0xf]
    %v676 = vld [vmem:[#allocation7 + $0x64] sm:$0xf]
    %v677 = vld [vmem:[#allocation7 + $0x68] sm:$0xf]
    %v678 = vld [vmem:[#allocation7 + $0x6c] sm:$0xf]
    %v679 = vld [vmem:[#allocation7 + $0x70] sm:$0xf]
    %v680 = vld [vmem:[#allocation7 + $0x74] sm:$0xf]
    %v681 = vld [vmem:[#allocation7 + $0x78] sm:$0xf]
    %v682 = vld [vmem:[#allocation7 + $0x7c] sm:$0xf]
    %v683 = vld [vmem:[#allocation7 + $0x80] sm:$0xf]
    %v684 = vld [vmem:[#allocation7 + $0x84] sm:$0xf]
    %v685 = vld [vmem:[#allocation7 + $0x88] sm:$0xf]
    %v686 = vld [vmem:[#allocation7 + $0x8c] sm:$0xf]
    %v687 = vld [vmem:[#allocation7 + $0x90] sm:$0xf]
    %v688 = vld [vmem:[#allocation7 + $0x94] sm:$0xf]
    %v689 = vld [vmem:[#allocation7 + $0x98] sm:$0xf]
    %v690 = vld [vmem:[#allocation7 + $0x9c] sm:$0xf]
    %v691 = vld [vmem:[#allocation7 + $0xa0] sm:$0xf]
    %v692 = vld [vmem:[#allocation7 + $0xa4] sm:$0xf]
    %v693 = vld [vmem:[#allocation7 + $0xa8] sm:$0xf]
    %v694 = vld [vmem:[#allocation7 + $0xac] sm:$0xf]
    %v695 = vld [vmem:[#allocation7 + $0xb0] sm:$0xf]
    %v696 = vld [vmem:[#allocation7 + $0xb4] sm:$0xf]
    %v697 = vld [vmem:[#allocation7 + $0xb8] sm:$0xf]
    %v698 = vld [vmem:[#allocation7 + $0xbc] sm:$0xf]
    %v699 = vld [vmem:[#allocation7 + $0xc0] sm:$0xf]
    %v700 = vld [vmem:[#allocation7 + $0xc4] sm:$0xf]
    %v701 = vld [vmem:[#allocation7 + $0xc8] sm:$0xf]
    %v702 = vld [vmem:[#allocation7 + $0xcc] sm:$0xf]
    %v703 = vld [vmem:[#allocation7 + $0xd0] sm:$0xf]
    %v704 = vld [vmem:[#allocation7 + $0xd4] sm:$0xf]
    %v705 = vld [vmem:[#allocation7 + $0xd8] sm:$0xf]
    %v706 = vld [vmem:[#allocation7 + $0xdc] sm:$0xf]
    %v707 = vld [vmem:[#allocation7 + $0xe0] sm:$0xf]
    %v708 = vld [vmem:[#allocation7 + $0xe4] sm:$0xf]
    %v709 = vld [vmem:[#allocation7 + $0xe8] sm:$0xf]
    %v710 = vld [vmem:[#allocation7 + $0xec] sm:$0xf]
    %v711 = vld [vmem:[#allocation7 + $0xf0] sm:$0xf]
    %v712 = vld [vmem:[#allocation7 + $0xf4] sm:$0xf]
    %v713 = vld [vmem:[#allocation7 + $0xf8] sm:$0xf]
    %v714 = vld [vmem:[#allocation7 + $0xfc] sm:$0xf]
    %v715 = vlaneseq
    %v716 = vshrl.u32 %v715, 7
    %v717 = vsub.s32 0, %v716
    %v718 = vrot.slane %v272, %v717
    %v783 = vunpack.c.l.b16 %v651
    %v784 = vunpack.c.l.b16 %v652
    %v785 = vunpack.c.l.b16 %v653
    %v786 = vunpack.c.l.b16 %v654
    %v787 = vunpack.c.l.b16 %v655
    %v788 = vunpack.c.l.b16 %v656
    %v789 = vunpack.c.l.b16 %v657
    %v790 = vunpack.c.l.b16 %v658
    %v791 = vunpack.c.l.b16 %v659
    %v792 = vunpack.c.l.b16 %v660
    %v793 = vunpack.c.l.b16 %v661
    %v794 = vunpack.c.l.b16 %v662
    %v795 = vunpack.c.l.b16 %v663
    %v796 = vunpack.c.l.b16 %v664
    %v797 = vunpack.c.l.b16 %v665
    %v798 = vunpack.c.l.b16 %v666
    %v799 = vunpack.c.l.b16 %v667
    %v800 = vunpack.c.l.b16 %v668
    %v801 = vunpack.c.l.b16 %v669
    %v802 = vunpack.c.l.b16 %v670
    %v803 = vunpack.c.l.b16 %v671
    %v804 = vunpack.c.l.b16 %v672
    %v805 = vunpack.c.l.b16 %v673
    %v806 = vunpack.c.l.b16 %v674
    %v807 = vunpack.c.l.b16 %v675
    %v808 = vunpack.c.l.b16 %v676
    %v809 = vunpack.c.l.b16 %v677
    %v810 = vunpack.c.l.b16 %v678
    %v811 = vunpack.c.l.b16 %v679
    %v812 = vunpack.c.l.b16 %v680
    %v813 = vunpack.c.l.b16 %v681
    %v814 = vunpack.c.l.b16 %v682
    %v815 = vunpack.c.l.b16 %v683
    %v816 = vunpack.c.l.b16 %v684
    %v817 = vunpack.c.l.b16 %v685
    %v818 = vunpack.c.l.b16 %v686
    %v819 = vunpack.c.l.b16 %v687
    %v820 = vunpack.c.l.b16 %v688
    %v821 = vunpack.c.l.b16 %v689
    %v822 = vunpack.c.l.b16 %v690
    %v823 = vunpack.c.l.b16 %v691
    %v824 = vunpack.c.l.b16 %v692
    %v825 = vunpack.c.l.b16 %v693
    %v826 = vunpack.c.l.b16 %v694
    %v827 = vunpack.c.l.b16 %v695
    %v828 = vunpack.c.l.b16 %v696
    %v829 = vunpack.c.l.b16 %v697
    %v830 = vunpack.c.l.b16 %v698
    %v831 = vunpack.c.l.b16 %v699
    %v832 = vunpack.c.l.b16 %v700
    %v833 = vunpack.c.l.b16 %v701
    %v834 = vunpack.c.l.b16 %v702
    %v835 = vunpack.c.l.b16 %v703
    %v836 = vunpack.c.l.b16 %v704
    %v837 = vunpack.c.l.b16 %v705
    %v838 = vunpack.c.l.b16 %v706
    %v839 = vunpack.c.l.b16 %v707
    %v840 = vunpack.c.l.b16 %v708
    %v841 = vunpack.c.l.b16 %v709
    %v842 = vunpack.c.l.b16 %v710
    %v843 = vunpack.c.l.b16 %v711
    %v844 = vunpack.c.l.b16 %v712
    %v845 = vunpack.c.l.b16 %v713
    %v846 = vunpack.c.l.b16 %v714
    %v847 = vpack.c.b16 %v784, %v783
    %v848 = vpack.c.b16 %v786, %v785
    %v849 = vpack.c.b16 %v788, %v787
    %v850 = vpack.c.b16 %v790, %v789
    %v851 = vpack.c.b16 %v792, %v791
    %v852 = vpack.c.b16 %v794, %v793
    %v853 = vpack.c.b16 %v796, %v795
    %v854 = vpack.c.b16 %v798, %v797
    %v855 = vpack.c.b16 %v800, %v799
    %v856 = vpack.c.b16 %v802, %v801
    %v857 = vpack.c.b16 %v804, %v803
    %v858 = vpack.c.b16 %v806, %v805
    %v859 = vpack.c.b16 %v808, %v807
    %v860 = vpack.c.b16 %v810, %v809
    %v861 = vpack.c.b16 %v812, %v811
    %v862 = vpack.c.b16 %v814, %v813
    %v863 = vpack.c.b16 %v816, %v815
    %v864 = vpack.c.b16 %v818, %v817
    %v865 = vpack.c.b16 %v820, %v819
    %v866 = vpack.c.b16 %v822, %v821
    %v867 = vpack.c.b16 %v824, %v823
    %v868 = vpack.c.b16 %v826, %v825
    %v869 = vpack.c.b16 %v828, %v827
    %v870 = vpack.c.b16 %v830, %v829
    %v871 = vpack.c.b16 %v832, %v831
    %v872 = vpack.c.b16 %v834, %v833
    %v873 = vpack.c.b16 %v836, %v835
    %v874 = vpack.c.b16 %v838, %v837
    %v875 = vpack.c.b16 %v840, %v839
    %v876 = vpack.c.b16 %v842, %v841
    %v877 = vpack.c.b16 %v844, %v843
    %v878 = vpack.c.b16 %v846, %v845
    %911 = vmatprep.subr.bf16.mxu0 0
    %912 = vmatpush1.bf16.msra.mxu0 %v854
    %913 = vmatprep.subr.bf16.mxu0 0
    %914 = vmatpush1.bf16.msra.mxu0 %v853
    %915 = vmatprep.subr.bf16.mxu0 0
    %916 = vmatpush1.bf16.msra.mxu0 %v852
    %917 = vmatprep.subr.bf16.mxu0 0
    %918 = vmatpush1.bf16.msra.mxu0 %v851
    %919 = vmatprep.subr.bf16.mxu0 0
    %920 = vmatpush1.bf16.msra.mxu0 %v850
    %921 = vmatprep.subr.bf16.mxu0 0
    %922 = vmatpush1.bf16.msra.mxu0 %v849
    %923 = vmatprep.subr.bf16.mxu0 0
    %924 = vmatpush1.bf16.msra.mxu0 %v848
    %925 = vmatprep.subr.bf16.mxu0 0
    %926 = vmatpush1.bf16.msra.mxu0 %v847
    %927 = vmatprep.subr.bf16.mxu0 0
    %928 = vmatpush2.bf16.msra.mxu0 %v862
    %929 = vmatprep.subr.bf16.mxu0 0
    %930 = vmatpush2.bf16.msra.mxu0 %v861
    %931 = vmatprep.subr.bf16.mxu0 0
    %932 = vmatpush2.bf16.msra.mxu0 %v860
    %933 = vmatprep.subr.bf16.mxu0 0
    %934 = vmatpush2.bf16.msra.mxu0 %v859
    %935 = vmatprep.subr.bf16.mxu0 0
    %936 = vmatpush2.bf16.msra.mxu0 %v858
    %937 = vmatprep.subr.bf16.mxu0 0
    %938 = vmatpush2.bf16.msra.mxu0 %v857
    %939 = vmatprep.subr.bf16.mxu0 0
    %940 = vmatpush2.bf16.msra.mxu0 %v856
    %941 = vmatprep.subr.bf16.mxu0 0
    %942 = vmatpush2.bf16.msra.mxu0 %v855
    %943 = vmatprep.mubr.bf16.mxu0 %v648
    %944 = vmatmul.mubr.bf16.gmra.mxu0 %v647
    %v945 = vpop.f32.mrf.mxu0
    %v946 = vadd.f32 %v718, %v945
    %v947 = vpop.f32.mrf.mxu0
    %v948 = vpop.f32.mrf.mxu0
    %v949 = vadd.f32 %v718, %v948
    %v950 = vpop.f32.mrf.mxu0
    %951 = vdwg.mxu0
    %952 = vmatprep.subr.bf16.mxu0 0
    %953 = vmatpush1.bf16.msra.mxu0 %v870
    %954 = vmatprep.subr.bf16.mxu0 0
    %955 = vmatpush1.bf16.msra.mxu0 %v869
    %956 = vmatprep.subr.bf16.mxu0 0
    %957 = vmatpush1.bf16.msra.mxu0 %v868
    %958 = vmatprep.subr.bf16.mxu0 0
    %959 = vmatpush1.bf16.msra.mxu0 %v867
    %960 = vmatprep.subr.bf16.mxu0 0
    %961 = vmatpush1.bf16.msra.mxu0 %v866
    %962 = vmatprep.subr.bf16.mxu0 0
    %963 = vmatpush1.bf16.msra.mxu0 %v865
    %964 = vmatprep.subr.bf16.mxu0 0
    %965 = vmatpush1.bf16.msra.mxu0 %v864
    %966 = vmatprep.subr.bf16.mxu0 0
    %967 = vmatpush1.bf16.msra.mxu0 %v863
    %968 = vmatprep.subr.bf16.mxu0 0
    %969 = vmatpush2.bf16.msra.mxu0 %v878
    %970 = vmatprep.subr.bf16.mxu0 0
    %971 = vmatpush2.bf16.msra.mxu0 %v877
    %972 = vmatprep.subr.bf16.mxu0 0
    %973 = vmatpush2.bf16.msra.mxu0 %v876
    %974 = vmatprep.subr.bf16.mxu0 0
    %975 = vmatpush2.bf16.msra.mxu0 %v875
    %976 = vmatprep.subr.bf16.mxu0 0
    %977 = vmatpush2.bf16.msra.mxu0 %v874
    %978 = vmatprep.subr.bf16.mxu0 0
    %979 = vmatpush2.bf16.msra.mxu0 %v873
    %980 = vmatprep.subr.bf16.mxu0 0
    %981 = vmatpush2.bf16.msra.mxu0 %v872
    %982 = vmatprep.subr.bf16.mxu0 0
    %983 = vmatpush2.bf16.msra.mxu0 %v871
    %984 = vmatprep.mubr.bf16.mxu0 %v650
    %985 = vmatmul.mubr.bf16.gmra.mxu0 %v649
    %v986 = vpop.f32.mrf.mxu0
    %v987 = vadd.f32 %v946, %v986
    %v988 = vpop.f32.mrf.mxu0
    %v989 = vpop.f32.mrf.mxu0
    %v990 = vadd.f32 %v949, %v989
    %v991 = vpop.f32.mrf.mxu0
    %992 = vdwg.mxu0
    %v993 = vmul.f32 %v987, 0.5
    %v994 = vmul.f32 %v990, 0.5
    %v995 = vadd.f32 %v230, %v993
    %v996 = vadd.f32 %v231, %v994
    %v997 = vld [vmem:[#allocation17 + $0x5] sm:$0x1]
    %v998 = vld [vmem:[#allocation17 + $0x6] sm:$0x1]
    %999 = vadd.xlane.f32.xlu0 %v995
    %v1000 = vpop.xlane.xlu0 %999
    %1001 = vadd.xlane.f32.xlu0 %v996
    %v1002 = vpop.xlane.xlu0 %1001
    %v1003 = vmul.f32 %v1000, %v238
    %v1004 = vmul.f32 %v1002, %v238
    %v1005 = vsub.f32 %v995, %v1003
    %v1006 = vsub.f32 %v996, %v1004
    %v1007 = vmul.f32 %v1005, %v1005
    %v1008 = vmul.f32 %v1006, %v1006
    %1009 = vadd.xlane.f32.xlu0 %v1007
    %v1010 = vpop.xlane.xlu0 %1009
    %1011 = vadd.xlane.f32.xlu0 %v1008
    %v1012 = vpop.xlane.xlu0 %1011
    %v1013 = vmul.f32 %v1010, %v238
    %v1014 = vmul.f32 %v1012, %v238
    %v1015 = vadd.f32 %v1013, 1e-05
    %v1016 = vadd.f32 %v1014, 1e-05
    %v1017 = vrsqrt.pop %v1015
    %v1018 = vrsqrt.pop %v1016
    %v1019 = vmul.f32 %v1005, %v1017
    %v1020 = vmul.f32 %v1006, %v1018
    %v1021 = vlaneseq
    %v1022 = vshrl.u32 %v1021, 7
    %v1023 = vsub.s32 0, %v1022
    %v1024 = vrot.slane %v997, %v1023
    %v1025 = vmul.f32 %v1019, %v1024
    %v1026 = vmul.f32 %v1020, %v1024
    %v1027 = vlaneseq
    %v1028 = vshrl.u32 %v1027, 7
    %v1029 = vsub.s32 0, %v1028
    %v1030 = vrot.slane %v998, %v1029
    %v1031 = vadd.f32 %v1025, %v1030
    %v1032 = vadd.f32 %v1026, %v1030
    %v1033 = vpack.c.bf16 %v1032, %v1031
    %v1034 = vld [vmem:[%s3] sm:$0xff]
    %v1035 = vld [vmem:[%s3 + $0x8] sm:$0xf]
    %v1036 = vld [vmem:[%s3 + $0xc] sm:$0xff]
    %v1037 = vld [vmem:[%s3 + $0x14] sm:$0xf]
    %v1038 = vld [vmem:[%s3 + $0x18] sm:$0xff]
    %v1039 = vld [vmem:[%s3 + $0x20] sm:$0xf]
    %v1040 = vld [vmem:[%s3 + $0x24] sm:$0xff]
    %v1041 = vld [vmem:[%s3 + $0x2c] sm:$0xf]
    %v1042 = vld [vmem:[%s3 + $0x30] sm:$0xff]
    %v1043 = vld [vmem:[%s3 + $0x38] sm:$0xf]
    %v1044 = vld [vmem:[%s3 + $0x3c] sm:$0xff]
    %v1045 = vld [vmem:[%s3 + $0x44] sm:$0xf]
    %v1046 = vld [vmem:[%s3 + $0x48] sm:$0xff]
    %v1047 = vld [vmem:[%s3 + $0x50] sm:$0xf]
    %v1048 = vld [vmem:[%s3 + $0x54] sm:$0xff]
    %v1049 = vld [vmem:[%s3 + $0x5c] sm:$0xf]
    %v1050 = vld [vmem:[%s3 + $0x60] sm:$0xff]
    %v1051 = vld [vmem:[%s3 + $0x68] sm:$0xf]
    %v1052 = vld [vmem:[%s3 + $0x6c] sm:$0xff]
    %v1053 = vld [vmem:[%s3 + $0x74] sm:$0xf]
    %v1054 = vld [vmem:[%s3 + $0x78] sm:$0xff]
    %v1055 = vld [vmem:[%s3 + $0x80] sm:$0xf]
    %v1056 = vld [vmem:[%s3 + $0x84] sm:$0xff]
    %v1057 = vld [vmem:[%s3 + $0x8c] sm:$0xf]
    %v1058 = vld [vmem:[%s3 + $0x90] sm:$0xff]
    %v1059 = vld [vmem:[%s3 + $0x98] sm:$0xf]
    %v1060 = vld [vmem:[%s3 + $0x9c] sm:$0xff]
    %v1061 = vld [vmem:[%s3 + $0xa4] sm:$0xf]
    %v1062 = vld [vmem:[%s3 + $0xa8] sm:$0xff]
    %v1063 = vld [vmem:[%s3 + $0xb0] sm:$0xf]
    %v1064 = vld [vmem:[%s3 + $0xb4] sm:$0xff]
    %v1065 = vld [vmem:[%s3 + $0xbc] sm:$0xf]
    %v1066 = vld [vmem:[%s13] sm:$0x7]
    %v1068 = vlaneseq
    %v1069 = vshrl.u32 %v1068, 7
    %v1070 = vsub.s32 0, %v1069
    %v1071 = vrot.slane %v1066, %v1070
    %v1072 = vlaneseq
    %v1073 = vshrl.u32 %v1072, 7
    %v1074 = vsub.s32 1, %v1073
    %v1075 = vrot.slane %v1066, %v1074
    %v1076 = vlaneseq
    %v1077 = vshrl.u32 %v1076, 7
    %v1078 = vsub.s32 2, %v1077
    %v1079 = vrot.slane %v1066, %v1078
    %v1115 = vunpack.c.l.b16 %v1034
    %v1116 = vunpack.c.h.b16 %v1034
    %v1117 = vunpack.c.l.b16 %v1035
    %v1118 = vunpack.c.l.b16 %v1036
    %v1119 = vunpack.c.h.b16 %v1036
    %v1120 = vunpack.c.l.b16 %v1037
    %v1121 = vunpack.c.l.b16 %v1038
    %v1122 = vunpack.c.h.b16 %v1038
    %v1123 = vunpack.c.l.b16 %v1039
    %v1124 = vunpack.c.l.b16 %v1040
    %v1125 = vunpack.c.h.b16 %v1040
    %v1126 = vunpack.c.l.b16 %v1041
    %v1127 = vunpack.c.l.b16 %v1042
    %v1128 = vunpack.c.h.b16 %v1042
    %v1129 = vunpack.c.l.b16 %v1043
    %v1130 = vunpack.c.l.b16 %v1044
    %v1131 = vunpack.c.h.b16 %v1044
    %v1132 = vunpack.c.l.b16 %v1045
    %v1133 = vunpack.c.l.b16 %v1046
    %v1134 = vunpack.c.h.b16 %v1046
    %v1135 = vunpack.c.l.b16 %v1047
    %v1136 = vunpack.c.l.b16 %v1048
    %v1137 = vunpack.c.h.b16 %v1048
    %v1138 = vunpack.c.l.b16 %v1049
    %v1139 = vunpack.c.l.b16 %v1050
    %v1140 = vunpack.c.h.b16 %v1050
    %v1141 = vunpack.c.l.b16 %v1051
    %v1142 = vunpack.c.l.b16 %v1052
    %v1143 = vunpack.c.h.b16 %v1052
    %v1144 = vunpack.c.l.b16 %v1053
    %v1145 = vunpack.c.l.b16 %v1054
    %v1146 = vunpack.c.h.b16 %v1054
    %v1147 = vunpack.c.l.b16 %v1055
    %v1148 = vunpack.c.l.b16 %v1056
    %v1149 = vunpack.c.h.b16 %v1056
    %v1150 = vunpack.c.l.b16 %v1057
    %v1151 = vunpack.c.l.b16 %v1058
    %v1152 = vunpack.c.h.b16 %v1058
    %v1153 = vunpack.c.l.b16 %v1059
    %v1154 = vunpack.c.l.b16 %v1060
    %v1155 = vunpack.c.h.b16 %v1060
    %v1156 = vunpack.c.l.b16 %v1061
    %v1157 = vunpack.c.l.b16 %v1062
    %v1158 = vunpack.c.h.b16 %v1062
    %v1159 = vunpack.c.l.b16 %v1063
    %v1160 = vunpack.c.l.b16 %v1064
    %v1161 = vunpack.c.h.b16 %v1064
    %v1162 = vunpack.c.l.b16 %v1065
    %v1163 = vpack.c.b16 %v1118, %v1115
    %v1164 = vpack.c.b16 %v1119, %v1116
    %v1165 = vpack.c.b16 %v1120, %v1117
    %v1166 = vpack.c.b16 %v1124, %v1121
    %v1167 = vpack.c.b16 %v1125, %v1122
    %v1168 = vpack.c.b16 %v1126, %v1123
    %v1169 = vpack.c.b16 %v1130, %v1127
    %v1170 = vpack.c.b16 %v1131, %v1128
    %v1171 = vpack.c.b16 %v1132, %v1129
    %v1172 = vpack.c.b16 %v1136, %v1133
    %v1173 = vpack.c.b16 %v1137, %v1134
    %v1174 = vpack.c.b16 %v1138, %v1135
    %v1175 = vpack.c.b16 %v1142, %v1139
    %v1176 = vpack.c.b16 %v1143, %v1140
    %v1177 = vpack.c.b16 %v1144, %v1141
    %v1178 = vpack.c.b16 %v1148, %v1145
    %v1179 = vpack.c.b16 %v1149, %v1146
    %v1180 = vpack.c.b16 %v1150, %v1147
    %v1181 = vpack.c.b16 %v1154, %v1151
    %v1182 = vpack.c.b16 %v1155, %v1152
    %v1183 = vpack.c.b16 %v1156, %v1153
    %v1184 = vpack.c.b16 %v1160, %v1157
    %v1185 = vpack.c.b16 %v1161, %v1158
    %v1186 = vpack.c.b16 %v1162, %v1159
    %1211 = vmatprep.subr.bf16.mxu0 %v1185
    %1212 = vmatpush1.bf16.msra.mxu0 %v1184
    %1213 = vmatprep.subr.bf16.mxu0 %v1182
    %1214 = vmatpush1.bf16.msra.mxu0 %v1181
    %1215 = vmatprep.subr.bf16.mxu0 %v1179
    %1216 = vmatpush1.bf16.msra.mxu0 %v1178
    %1217 = vmatprep.subr.bf16.mxu0 %v1176
    %1218 = vmatpush1.bf16.msra.mxu0 %v1175
    %1219 = vmatprep.subr.bf16.mxu0 %v1173
    %1220 = vmatpush1.bf16.msra.mxu0 %v1172
    %1221 = vmatprep.subr.bf16.mxu0 %v1170
    %1222 = vmatpush1.bf16.msra.mxu0 %v1169
    %1223 = vmatprep.subr.bf16.mxu0 %v1167
    %1224 = vmatpush1.bf16.msra.mxu0 %v1166
    %1225 = vmatprep.subr.bf16.mxu0 %v1164
    %1226 = vmatpush1.bf16.msra.mxu0 %v1163
    %1227 = vmatprep.subr.bf16.mxu0 0
    %1228 = vmatpush2.bf16.msra.mxu0 0
    %1229 = vmatprep.subr.bf16.mxu0 0
    %1230 = vmatpush2.bf16.msra.mxu0 0
    %1231 = vmatprep.subr.bf16.mxu0 0
    %1232 = vmatpush2.bf16.msra.mxu0 0
    %1233 = vmatprep.subr.bf16.mxu0 0
    %1234 = vmatpush2.bf16.msra.mxu0 0
    %1235 = vmatprep.subr.bf16.mxu0 0
    %1236 = vmatpush2.bf16.msra.mxu0 0
    %1237 = vmatprep.subr.bf16.mxu0 0
    %1238 = vmatpush2.bf16.msra.mxu0 0
    %1239 = vmatprep.subr.bf16.mxu0 0
    %1240 = vmatpush2.bf16.msra.mxu0 0
    %1241 = vmatprep.subr.bf16.mxu0 0
    %1242 = vmatpush2.bf16.msra.mxu0 0
    %1243 = vmatprep.mubr.bf16.mxu0 0
    %1244 = vmatmul.mubr.bf16.gmra.mxu0 %v1033
    %v1245 = vpop.f32.mrf.mxu0
    %v1246 = vadd.f32 %v1071, %v1245
    %v1247 = vpop.f32.mrf.mxu0
    %v1248 = vadd.f32 %v1075, %v1247
    %v1249 = vpop.f32.mrf.mxu0
    %v1250 = vadd.f32 %v1071, %v1249
    %v1251 = vpop.f32.mrf.mxu0
    %v1252 = vadd.f32 %v1075, %v1251
    %1253 = vdwg.mxu0
    %1254 = vmatprep.subr.bf16.mxu0 0
    %1255 = vmatpush1.bf16.msra.mxu0 %v1186
    %1256 = vmatprep.subr.bf16.mxu0 0
    %1257 = vmatpush1.bf16.msra.mxu0 %v1183
    %1258 = vmatprep.subr.bf16.mxu0 0
    %1259 = vmatpush1.bf16.msra.mxu0 %v1180
    %1260 = vmatprep.subr.bf16.mxu0 0
    %1261 = vmatpush1.bf16.msra.mxu0 %v1177
    %1262 = vmatprep.subr.bf16.mxu0 0
    %1263 = vmatpush1.bf16.msra.mxu0 %v1174
    %1264 = vmatprep.subr.bf16.mxu0 0
    %1265 = vmatpush1.bf16.msra.mxu0 %v1171
    %1266 = vmatprep.subr.bf16.mxu0 0
    %1267 = vmatpush1.bf16.msra.mxu0 %v1168
    %1268 = vmatprep.subr.bf16.mxu0 0
    %1269 = vmatpush1.bf16.msra.mxu0 %v1165
    %1270 = vmatprep.subr.bf16.mxu0 0
    %1271 = vmatpush2.bf16.msra.mxu0 0
    %1272 = vmatprep.subr.bf16.mxu0 0
    %1273 = vmatpush2.bf16.msra.mxu0 0
    %1274 = vmatprep.subr.bf16.mxu0 0
    %1275 = vmatpush2.bf16.msra.mxu0 0
    %1276 = vmatprep.subr.bf16.mxu0 0
    %1277 = vmatpush2.bf16.msra.mxu0 0
    %1278 = vmatprep.subr.bf16.mxu0 0
    %1279 = vmatpush2.bf16.msra.mxu0 0
    %1280 = vmatprep.subr.bf16.mxu0 0
    %1281 = vmatpush2.bf16.msra.mxu0 0
    %1282 = vmatprep.subr.bf16.mxu0 0
    %1283 = vmatpush2.bf16.msra.mxu0 0
    %1284 = vmatprep.subr.bf16.mxu0 0
    %1285 = vmatpush2.bf16.msra.mxu0 0
    %1286 = vmatprep.mubr.bf16.mxu0 0
    %1287 = vmatmul.mubr.bf16.gmra.mxu0 %v1033
    %v1288 = vpop.f32.mrf.mxu0
    %v1289 = vadd.f32 %v1079, %v1288
    %v1290 = vpop.f32.mrf.mxu0
    %v1291 = vpop.f32.mrf.mxu0
    %v1292 = vadd.f32 %v1079, %v1291
    %v1293 = vpop.f32.mrf.mxu0
    %1294 = vdwg.mxu0
    %1295 = vxpose.xlu0.b32.start [1/16] %v1248, 128
    %1296 = vxpose.xlu0.b32.cont [2/16] %v1252, 128
    %1297 = vxpose.xlu0.b32.cont [3/16] 0.0, 128
    %1298 = vxpose.xlu0.b32.cont [4/16] 0.0, 128
    %1299 = vxpose.xlu0.b32.cont [5/16] 0.0, 128
    %1300 = vxpose.xlu0.b32.cont [6/16] 0.0, 128
    %1301 = vxpose.xlu0.b32.cont [7/16] 0.0, 128
    %1302 = vxpose.xlu0.b32.cont [8/16] 0.0, 128
    %1303 = vxpose.xlu0.b32.cont [9/16] 0.0, 128
    %1304 = vxpose.xlu0.b32.cont [10/16] 0.0, 128
    %1305 = vxpose.xlu0.b32.cont [11/16] 0.0, 128
    %1306 = vxpose.xlu0.b32.cont [12/16] 0.0, 128
    %1307 = vxpose.xlu0.b32.cont [13/16] 0.0, 128
    %1308 = vxpose.xlu0.b32.cont [14/16] 0.0, 128
    %1309 = vxpose.xlu0.b32.cont [15/16] 0.0, 128
    %1310 = vxpose.xlu0.b32.end [16/16] 0.0, 128
    %v1311 = vpop.trf.xlu0
    %v1312 = vpop.trf.xlu0
    %v1313 = vpop.trf.xlu0
    %v1314 = vpop.trf.xlu0
    %v1315 = vpop.trf.xlu0
    %v1316 = vpop.trf.xlu0
    %v1317 = vpop.trf.xlu0
    %v1318 = vpop.trf.xlu0
    %v1319 = vpop.trf.xlu0
    %v1320 = vpop.trf.xlu0
    %v1321 = vpop.trf.xlu0
    %v1322 = vpop.trf.xlu0
    %v1323 = vpop.trf.xlu0
    %v1324 = vpop.trf.xlu0
    %v1325 = vpop.trf.xlu0
    %v1326 = vpop.trf.xlu0
    %1343 = vrot.lane.b32.xlu0 %v1311, 16
    %v1344 = vpop.permute.xlu0 %1343
    %1345 = vrot.lane.b32.xlu0 %v1312, 16
    %v1346 = vpop.permute.xlu0 %1345
    %1347 = vrot.lane.b32.xlu0 %v1313, 16
    %v1348 = vpop.permute.xlu0 %1347
    %1349 = vrot.lane.b32.xlu0 %v1314, 16
    %v1350 = vpop.permute.xlu0 %1349
    %1351 = vrot.lane.b32.xlu0 %v1315, 16
    %v1352 = vpop.permute.xlu0 %1351
    %1353 = vrot.lane.b32.xlu0 %v1316, 16
    %v1354 = vpop.permute.xlu0 %1353
    %1355 = vrot.lane.b32.xlu0 %v1317, 16
    %v1356 = vpop.permute.xlu0 %1355
    %1357 = vrot.lane.b32.xlu0 %v1318, 16
    %v1358 = vpop.permute.xlu0 %1357
    %1359 = vrot.lane.b32.xlu0 %v1319, 16
    %v1360 = vpop.permute.xlu0 %1359
    %1361 = vrot.lane.b32.xlu0 %v1320, 16
    %v1362 = vpop.permute.xlu0 %1361
    %1363 = vrot.lane.b32.xlu0 %v1321, 16
    %v1364 = vpop.permute.xlu0 %1363
    %1365 = vrot.lane.b32.xlu0 %v1322, 16
    %v1366 = vpop.permute.xlu0 %1365
    %1367 = vrot.lane.b32.xlu0 %v1323, 16
    %v1368 = vpop.permute.xlu0 %1367
    %1369 = vrot.lane.b32.xlu0 %v1324, 16
    %v1370 = vpop.permute.xlu0 %1369
    %1371 = vrot.lane.b32.xlu0 %v1325, 16
    %v1372 = vpop.permute.xlu0 %1371
    %1373 = vrot.lane.b32.xlu0 %v1326, 16
    %v1374 = vpop.permute.xlu0 %1373
    %1391 = vrot.lane.b32.xlu0 %v1311, 32
    %v1392 = vpop.permute.xlu0 %1391
    %1393 = vrot.lane.b32.xlu0 %v1312, 32
    %v1394 = vpop.permute.xlu0 %1393
    %1395 = vrot.lane.b32.xlu0 %v1313, 32
    %v1396 = vpop.permute.xlu0 %1395
    %1397 = vrot.lane.b32.xlu0 %v1314, 32
    %v1398 = vpop.permute.xlu0 %1397
    %1399 = vrot.lane.b32.xlu0 %v1315, 32
    %v1400 = vpop.permute.xlu0 %1399
    %1401 = vrot.lane.b32.xlu0 %v1316, 32
    %v1402 = vpop.permute.xlu0 %1401
    %1403 = vrot.lane.b32.xlu0 %v1317, 32
    %v1404 = vpop.permute.xlu0 %1403
    %1405 = vrot.lane.b32.xlu0 %v1318, 32
    %v1406 = vpop.permute.xlu0 %1405
    %1407 = vrot.lane.b32.xlu0 %v1319, 32
    %v1408 = vpop.permute.xlu0 %1407
    %1409 = vrot.lane.b32.xlu0 %v1320, 32
    %v1410 = vpop.permute.xlu0 %1409
    %1411 = vrot.lane.b32.xlu0 %v1321, 32
    %v1412 = vpop.permute.xlu0 %1411
    %1413 = vrot.lane.b32.xlu0 %v1322, 32
    %v1414 = vpop.permute.xlu0 %1413
    %1415 = vrot.lane.b32.xlu0 %v1323, 32
    %v1416 = vpop.permute.xlu0 %1415
    %1417 = vrot.lane.b32.xlu0 %v1324, 32
    %v1418 = vpop.permute.xlu0 %1417
    %1419 = vrot.lane.b32.xlu0 %v1325, 32
    %v1420 = vpop.permute.xlu0 %1419
    %1421 = vrot.lane.b32.xlu0 %v1326, 32
    %v1422 = vpop.permute.xlu0 %1421
    %1439 = vrot.lane.b32.xlu0 %v1311, 48
    %v1440 = vpop.permute.xlu0 %1439
    %1441 = vrot.lane.b32.xlu0 %v1312, 48
    %v1442 = vpop.permute.xlu0 %1441
    %1443 = vrot.lane.b32.xlu0 %v1313, 48
    %v1444 = vpop.permute.xlu0 %1443
    %1445 = vrot.lane.b32.xlu0 %v1314, 48
    %v1446 = vpop.permute.xlu0 %1445
    %1447 = vrot.lane.b32.xlu0 %v1315, 48
    %v1448 = vpop.permute.xlu0 %1447
    %1449 = vrot.lane.b32.xlu0 %v1316, 48
    %v1450 = vpop.permute.xlu0 %1449
    %1451 = vrot.lane.b32.xlu0 %v1317, 48
    %v1452 = vpop.permute.xlu0 %1451
    %1453 = vrot.lane.b32.xlu0 %v1318, 48
    %v1454 = vpop.permute.xlu0 %1453
    %1455 = vrot.lane.b32.xlu0 %v1319, 48
    %v1456 = vpop.permute.xlu0 %1455
    %1457 = vrot.lane.b32.xlu0 %v1320, 48
    %v1458 = vpop.permute.xlu0 %1457
    %1459 = vrot.lane.b32.xlu0 %v1321, 48
    %v1460 = vpop.permute.xlu0 %1459
    %1461 = vrot.lane.b32.xlu0 %v1322, 48
    %v1462 = vpop.permute.xlu0 %1461
    %1463 = vrot.lane.b32.xlu0 %v1323, 48
    %v1464 = vpop.permute.xlu0 %1463
    %1465 = vrot.lane.b32.xlu0 %v1324, 48
    %v1466 = vpop.permute.xlu0 %1465
    %1467 = vrot.lane.b32.xlu0 %v1325, 48
    %v1468 = vpop.permute.xlu0 %1467
    %1469 = vrot.lane.b32.xlu0 %v1326, 48
    %v1470 = vpop.permute.xlu0 %1469
    %vm1487 = vcmask 130048
    %v1488 = vsel %vm1487, %v1311, %v1344
    %v1489 = vsel %vm1487, %v1312, %v1346
    %v1490 = vsel %vm1487, %v1313, %v1348
    %v1491 = vsel %vm1487, %v1314, %v1350
    %v1492 = vsel %vm1487, %v1315, %v1352
    %v1493 = vsel %vm1487, %v1316, %v1354
    %v1494 = vsel %vm1487, %v1317, %v1356
    %v1495 = vsel %vm1487, %v1318, %v1358
    %v1496 = vsel %vm1487, %v1319, %v1360
    %v1497 = vsel %vm1487, %v1320, %v1362
    %v1498 = vsel %vm1487, %v1321, %v1364
    %v1499 = vsel %vm1487, %v1322, %v1366
    %v1500 = vsel %vm1487, %v1323, %v1368
    %v1501 = vsel %vm1487, %v1324, %v1370
    %v1502 = vsel %vm1487, %v1325, %v1372
    %v1503 = vsel %vm1487, %v1326, %v1374
    %vm1504 = vcmask 261120
    %v1505 = vsel %vm1504, %v1488, %v1392
    %v1506 = vsel %vm1504, %v1489, %v1394
    %v1507 = vsel %vm1504, %v1490, %v1396
    %v1508 = vsel %vm1504, %v1491, %v1398
    %v1509 = vsel %vm1504, %v1492, %v1400
    %v1510 = vsel %vm1504, %v1493, %v1402
    %v1511 = vsel %vm1504, %v1494, %v1404
    %v1512 = vsel %vm1504, %v1495, %v1406
    %v1513 = vsel %vm1504, %v1496, %v1408
    %v1514 = vsel %vm1504, %v1497, %v1410
    %v1515 = vsel %vm1504, %v1498, %v1412
    %v1516 = vsel %vm1504, %v1499, %v1414
    %v1517 = vsel %vm1504, %v1500, %v1416
    %v1518 = vsel %vm1504, %v1501, %v1418
    %v1519 = vsel %vm1504, %v1502, %v1420
    %v1520 = vsel %vm1504, %v1503, %v1422
    %vm1521 = vcmask 392192
    %v1522 = vsel %vm1521, %v1505, %v1440
    %v1523 = vsel %vm1521, %v1506, %v1442
    %v1524 = vsel %vm1521, %v1507, %v1444
    %v1525 = vsel %vm1521, %v1508, %v1446
    %v1526 = vsel %vm1521, %v1509, %v1448
    %v1527 = vsel %vm1521, %v1510, %v1450
    %v1528 = vsel %vm1521, %v1511, %v1452
    %v1529 = vsel %vm1521, %v1512, %v1454
    %v1530 = vsel %vm1521, %v1513, %v1456
    %v1531 = vsel %vm1521, %v1514, %v1458
    %v1532 = vsel %vm1521, %v1515, %v1460
    %v1533 = vsel %vm1521, %v1516, %v1462
    %v1534 = vsel %vm1521, %v1517, %v1464
    %v1535 = vsel %vm1521, %v1518, %v1466
    %v1536 = vsel %vm1521, %v1519, %v1468
    %v1537 = vsel %vm1521, %v1520, %v1470
    %v1538 = vld [vmem:[%s14] sm:$0xff]
    %v1539 = vld [vmem:[%s14 + $0x8] sm:$0xff]
    %v1540 = vld [vmem:[%s14 + $0x10] sm:$0xff]
    %v1541 = vld [vmem:[%s14 + $0x18] sm:$0xff]
    %v1542 = vld [vmem:[%s14 + $0x20] sm:$0xff]
    %v1543 = vld [vmem:[%s14 + $0x28] sm:$0xff]
    %v1544 = vld [vmem:[%s14 + $0x30] sm:$0xff]
    %v1545 = vld [vmem:[%s14 + $0x38] sm:$0xff]
    %v1546 = vld [vmem:[%s14 + $0x40] sm:$0xff]
    %v1547 = vld [vmem:[%s14 + $0x48] sm:$0xff]
    %v1548 = vld [vmem:[%s14 + $0x50] sm:$0xff]
    %v1549 = vld [vmem:[%s14 + $0x58] sm:$0xff]
    %v1550 = vld [vmem:[%s14 + $0x60] sm:$0xff]
    %v1551 = vld [vmem:[%s14 + $0x68] sm:$0xff]
    %v1552 = vld [vmem:[%s14 + $0x70] sm:$0xff]
    %v1553 = vld [vmem:[%s14 + $0x78] sm:$0xff]
    %v1554 = vmul.f32 %v1522, %v1538
    %v1555 = vmul.f32 %v1523, %v1539
    %v1556 = vmul.f32 %v1524, %v1540
    %v1557 = vmul.f32 %v1525, %v1541
    %v1558 = vmul.f32 %v1526, %v1542
    %v1559 = vmul.f32 %v1527, %v1543
    %v1560 = vmul.f32 %v1528, %v1544
    %v1561 = vmul.f32 %v1529, %v1545
    %v1562 = vmul.f32 %v1530, %v1546
    %v1563 = vmul.f32 %v1531, %v1547
    %v1564 = vmul.f32 %v1532, %v1548
    %v1565 = vmul.f32 %v1533, %v1549
    %v1566 = vmul.f32 %v1534, %v1550
    %v1567 = vmul.f32 %v1535, %v1551
    %v1568 = vmul.f32 %v1536, %v1552
    %v1569 = vmul.f32 %v1537, %v1553
    %v1570 = vld [vmem:[#allocation22] sm:$0xff]
    %v1571 = vld [vmem:[#allocation22 + $0x8] sm:$0xff]
    %v1572 = vld [vmem:[#allocation22 + $0x10] sm:$0xff]
    %v1573 = vld [vmem:[#allocation22 + $0x18] sm:$0xff]
    %v1574 = vld [vmem:[#allocation22 + $0x20] sm:$0xff]
    %v1575 = vld [vmem:[#allocation22 + $0x28] sm:$0xff]
    %v1576 = vld [vmem:[#allocation22 + $0x30] sm:$0xff]
    %v1577 = vld [vmem:[#allocation22 + $0x38] sm:$0xff]
    %v1578 = vmul.f32 %v1289, %v1570
    %v1579 = vmul.f32 %v1292, %v1571
    %v1580 = vmul.f32 %v1289, %v1572
    %v1581 = vmul.f32 %v1292, %v1573
    %v1582 = vmul.f32 %v1289, %v1574
    %v1583 = vmul.f32 %v1292, %v1575
    %v1584 = vmul.f32 %v1289, %v1576
    %v1585 = vmul.f32 %v1292, %v1577
    %v1586 = vld [vmem:[%s16] sm:$0xff]
    %v1587 = vld [vmem:[%s16 + $0x8] sm:$0xff]
    %1588 = vmatprep.subr.mxu0 0.0
    %1589 = vmatpush1.msra.mxu0 %v1569
    %1590 = vmatprep.subr.mxu0 0.0
    %1591 = vmatpush1.msra.mxu0 %v1568
    %1592 = vmatprep.subr.mxu0 0.0
    %1593 = vmatpush1.msra.mxu0 %v1567
    %1594 = vmatprep.subr.mxu0 0.0
    %1595 = vmatpush1.msra.mxu0 %v1566
    %1596 = vmatprep.subr.mxu0 0.0
    %1597 = vmatpush1.msra.mxu0 %v1565
    %1598 = vmatprep.subr.mxu0 0.0
    %1599 = vmatpush1.msra.mxu0 %v1564
    %1600 = vmatprep.subr.mxu0 0.0
    %1601 = vmatpush1.msra.mxu0 %v1563
    %1602 = vmatprep.subr.mxu0 0.0
    %1603 = vmatpush1.msra.mxu0 %v1562
    %1604 = vmatprep.subr.mxu0 0.0
    %1605 = vmatpush1.msra.mxu0 %v1561
    %1606 = vmatprep.subr.mxu0 0.0
    %1607 = vmatpush1.msra.mxu0 %v1560
    %1608 = vmatprep.subr.mxu0 0.0
    %1609 = vmatpush1.msra.mxu0 %v1559
    %1610 = vmatprep.subr.mxu0 0.0
    %1611 = vmatpush1.msra.mxu0 %v1558
    %1612 = vmatprep.subr.mxu0 0.0
    %1613 = vmatpush1.msra.mxu0 %v1557
    %1614 = vmatprep.subr.mxu0 0.0
    %1615 = vmatpush1.msra.mxu0 %v1556
    %1616 = vmatprep.subr.mxu0 0.0
    %1617 = vmatpush1.msra.mxu0 %v1555
    %1618 = vmatprep.subr.mxu0 0.0
    %1619 = vmatpush1.msra.mxu0 %v1554
    %1620 = vmatprep.subr.mxu0 0.0
    %1621 = vmatpush2.msra.mxu0 0.0
    %1622 = vmatprep.subr.mxu0 0.0
    %1623 = vmatpush2.msra.mxu0 0.0
    %1624 = vmatprep.subr.mxu0 0.0
    %1625 = vmatpush2.msra.mxu0 0.0
    %1626 = vmatprep.subr.mxu0 0.0
    %1627 = vmatpush2.msra.mxu0 0.0
    %1628 = vmatprep.subr.mxu0 0.0
    %1629 = vmatpush2.msra.mxu0 0.0
    %1630 = vmatprep.subr.mxu0 0.0
    %1631 = vmatpush2.msra.mxu0 0.0
    %1632 = vmatprep.subr.mxu0 0.0
    %1633 = vmatpush2.msra.mxu0 0.0
    %1634 = vmatprep.subr.mxu0 0.0
    %1635 = vmatpush2.msra.mxu0 0.0
    %1636 = vmatprep.subr.mxu0 0.0
    %1637 = vmatpush2.msra.mxu0 0.0
    %1638 = vmatprep.subr.mxu0 0.0
    %1639 = vmatpush2.msra.mxu0 0.0
    %1640 = vmatprep.subr.mxu0 0.0
    %1641 = vmatpush2.msra.mxu0 0.0
    %1642 = vmatprep.subr.mxu0 0.0
    %1643 = vmatpush2.msra.mxu0 0.0
    %1644 = vmatprep.subr.mxu0 0.0
    %1645 = vmatpush2.msra.mxu0 0.0
    %1646 = vmatprep.subr.mxu0 0.0
    %1647 = vmatpush2.msra.mxu0 0.0
    %1648 = vmatprep.subr.mxu0 0.0
    %1649 = vmatpush2.msra.mxu0 0.0
    %1650 = vmatprep.subr.mxu0 0.0
    %1651 = vmatpush2.msra.mxu0 0.0
    %1652 = vmatprep.mubr.f32.mxu0 0.0
    %1653 = vmatmul.mubr.f32.gmra.mxu0 %v1246
    %v1654 = vpop.f32.mrf.mxu0
    %v1655 = vadd.f32 %v1586, %v1654
    %v1656 = vpop.f32.mrf.mxu0
    %1657 = vmatprep.mubr.f32.mxu0 0.0
    %1658 = vmatmul.mubr.f32.gmra.mxu0 %v1250
    %v1659 = vpop.f32.mrf.mxu0
    %v1660 = vadd.f32 %v1587, %v1659
    %v1661 = vpop.f32.mrf.mxu0
    %1662 = vdwg.mxu0
    %v1663 = vsel %vm1487, %v1655, -inf
    %1664 = vmax.xlane.f32.xlu0 %v1663
    %v1665 = vpop.xlane.xlu0 %1664
    %v1666 = vsel %vm1487, %v1660, -inf
    %1667 = vmax.xlane.f32.xlu0 %v1666
    %v1668 = vpop.xlane.xlu0 %1667
    %v1669 = vsub.f32 %v1655, %v1665
    %v1670 = vsub.f32 %v1660, %v1668
    %v1671 = vmul.f32 %v1669, 1.442695
    %v1672 = vpow.pop %v1671
    %v1673 = vmul.f32 %v1670, 1.442695
    %v1674 = vpow.pop %v1673
    %v1675 = vsel %vm1487, %v1672, 0.0
    %1676 = vadd.xlane.f32.xlu0 %v1675
    %v1677 = vpop.xlane.xlu0 %1676
    %v1678 = vsel %vm1487, %v1674, 0.0
    %1679 = vadd.xlane.f32.xlu0 %v1678
    %v1680 = vpop.xlane.xlu0 %1679
    %v1681 = vrcp.pop %v1677
    %v1682 = vrcp.pop %v1680
    %v1683 = vmul.f32 %v1672, %v1681
    %v1684 = vmul.f32 %v1674, %v1682
    %vm1685 = vcmask 261248
    %v1686 = vsel %vm1685, %v1655, -inf
    %1687 = vmax.xlane.f32.xlu0 %v1686
    %v1688 = vpop.xlane.xlu0 %1687
    %v1689 = vsel %vm1685, %v1660, -inf
    %1690 = vmax.xlane.f32.xlu0 %v1689
    %v1691 = vpop.xlane.xlu0 %1690
    %v1692 = vsub.f32 %v1655, %v1688
    %v1693 = vsub.f32 %v1660, %v1691
    %v1694 = vmul.f32 %v1692, 1.442695
    %v1695 = vpow.pop %v1694
    %v1696 = vmul.f32 %v1693, 1.442695
    %v1697 = vpow.pop %v1696
    %1700 = vrot.lane.b32.xlu0 %v1695, 112
    %v1701 = vpop.permute.xlu0 %1700
    %1702 = vrot.lane.b32.xlu0 %v1697, 112
    %v1703 = vpop.permute.xlu0 %1702
    %v1706 = vsel %vm1487, %v1701, 0.0
    %1707 = vadd.xlane.f32.xlu0 %v1706
    %v1708 = vpop.xlane.xlu0 %1707
    %v1709 = vsel %vm1487, %v1703, 0.0
    %1710 = vadd.xlane.f32.xlu0 %v1709
    %v1711 = vpop.xlane.xlu0 %1710
    %v1712 = vrcp.pop %v1708
    %v1713 = vrcp.pop %v1711
    %v1714 = vmul.f32 %v1695, %v1712
    %v1715 = vmul.f32 %v1697, %v1713
    %vm1716 = vcmask 392448
    %v1717 = vsel %vm1716, %v1655, -inf
    %1718 = vmax.xlane.f32.xlu0 %v1717
    %v1719 = vpop.xlane.xlu0 %1718
    %v1720 = vsel %vm1716, %v1660, -inf
    %1721 = vmax.xlane.f32.xlu0 %v1720
    %v1722 = vpop.xlane.xlu0 %1721
    %v1723 = vsub.f32 %v1655, %v1719
    %v1724 = vsub.f32 %v1660, %v1722
    %v1725 = vmul.f32 %v1723, 1.442695
    %v1726 = vpow.pop %v1725
    %v1727 = vmul.f32 %v1724, 1.442695
    %v1728 = vpow.pop %v1727
    %1731 = vrot.lane.b32.xlu0 %v1726, 96
    %v1732 = vpop.permute.xlu0 %1731
    %1733 = vrot.lane.b32.xlu0 %v1728, 96
    %v1734 = vpop.permute.xlu0 %1733
    %v1737 = vsel %vm1487, %v1732, 0.0
    %1738 = vadd.xlane.f32.xlu0 %v1737
    %v1739 = vpop.xlane.xlu0 %1738
    %v1740 = vsel %vm1487, %v1734, 0.0
    %1741 = vadd.xlane.f32.xlu0 %v1740
    %v1742 = vpop.xlane.xlu0 %1741
    %v1743 = vrcp.pop %v1739
    %v1744 = vrcp.pop %v1742
    %v1745 = vmul.f32 %v1726, %v1743
    %v1746 = vmul.f32 %v1728, %v1744
    %vm1747 = vcmask 523648
    %v1748 = vsel %vm1747, %v1655, -inf
    %1749 = vmax.xlane.f32.xlu0 %v1748
    %v1750 = vpop.xlane.xlu0 %1749
    %v1751 = vsel %vm1747, %v1660, -inf
    %1752 = vmax.xlane.f32.xlu0 %v1751
    %v1753 = vpop.xlane.xlu0 %1752
    %v1754 = vsub.f32 %v1655, %v1750
    %v1755 = vsub.f32 %v1660, %v1753
    %v1756 = vmul.f32 %v1754, 1.442695
    %v1757 = vpow.pop %v1756
    %v1758 = vmul.f32 %v1755, 1.442695
    %v1759 = vpow.pop %v1758
    %1762 = vrot.lane.b32.xlu0 %v1757, 80
    %v1763 = vpop.permute.xlu0 %1762
    %1764 = vrot.lane.b32.xlu0 %v1759, 80
    %v1765 = vpop.permute.xlu0 %1764
    %v1768 = vsel %vm1487, %v1763, 0.0
    %1769 = vadd.xlane.f32.xlu0 %v1768
    %v1770 = vpop.xlane.xlu0 %1769
    %v1771 = vsel %vm1487, %v1765, 0.0
    %1772 = vadd.xlane.f32.xlu0 %v1771
    %v1773 = vpop.xlane.xlu0 %1772
    %v1774 = vrcp.pop %v1770
    %v1775 = vrcp.pop %v1773
    %v1776 = vmul.f32 %v1757, %v1774
    %v1777 = vmul.f32 %v1759, %v1775
    %v1778 = vsel %vm1487, %v1683, %v1714
    %v1779 = vsel %vm1487, %v1684, %v1715
    %v1780 = vsel %vm1504, %v1778, %v1745
    %v1781 = vsel %vm1504, %v1779, %v1746
    %v1782 = vsel %vm1521, %v1780, %v1776
    %v1783 = vsel %vm1521, %v1781, %v1777
    %vm1784 = vcmask 523264
    %v1786 = vsel %vm1784, %v1782, 0
    %v1789 = vsel %vm1784, %v1783, 0
    %1791 = vmatprep.subr.mxu0 0.0
    %1792 = vmatpush1.msra.mxu0 0.0
    %1793 = vmatprep.subr.mxu0 0.0
    %1794 = vmatpush1.msra.mxu0 0.0
    %1795 = vmatprep.subr.mxu0 0.0
    %1796 = vmatpush1.msra.mxu0 0.0
    %1797 = vmatprep.subr.mxu0 0.0
    %1798 = vmatpush1.msra.mxu0 0.0
    %1799 = vmatprep.subr.mxu0 0.0
    %1800 = vmatpush1.msra.mxu0 0.0
    %1801 = vmatprep.subr.mxu0 0.0
    %1802 = vmatpush1.msra.mxu0 0.0
    %1803 = vmatprep.subr.mxu0 0.0
    %1804 = vmatpush1.msra.mxu0 0.0
    %1805 = vmatprep.subr.mxu0 0.0
    %1806 = vmatpush1.msra.mxu0 0.0
    %1807 = vmatprep.subr.mxu0 0.0
    %1808 = vmatpush1.msra.mxu0 %v1585
    %1809 = vmatprep.subr.mxu0 0.0
    %1810 = vmatpush1.msra.mxu0 %v1584
    %1811 = vmatprep.subr.mxu0 0.0
    %1812 = vmatpush1.msra.mxu0 %v1583
    %1813 = vmatprep.subr.mxu0 0.0
    %1814 = vmatpush1.msra.mxu0 %v1582
    %1815 = vmatprep.subr.mxu0 0.0
    %1816 = vmatpush1.msra.mxu0 %v1581
    %1817 = vmatprep.subr.mxu0 0.0
    %1818 = vmatpush1.msra.mxu0 %v1580
    %1819 = vmatprep.subr.mxu0 0.0
    %1820 = vmatpush1.msra.mxu0 %v1579
    %1821 = vmatprep.subr.mxu0 0.0
    %1822 = vmatpush1.msra.mxu0 %v1578
    %1823 = vmatprep.subr.mxu0 0.0
    %1824 = vmatpush2.msra.mxu0 0.0
    %1825 = vmatprep.subr.mxu0 0.0
    %1826 = vmatpush2.msra.mxu0 0.0
    %1827 = vmatprep.subr.mxu0 0.0
    %1828 = vmatpush2.msra.mxu0 0.0
    %1829 = vmatprep.subr.mxu0 0.0
    %1830 = vmatpush2.msra.mxu0 0.0
    %1831 = vmatprep.subr.mxu0 0.0
    %1832 = vmatpush2.msra.mxu0 0.0
    %1833 = vmatprep.subr.mxu0 0.0
    %1834 = vmatpush2.msra.mxu0 0.0
    %1835 = vmatprep.subr.mxu0 0.0
    %1836 = vmatpush2.msra.mxu0 0.0
    %1837 = vmatprep.subr.mxu0 0.0
    %1838 = vmatpush2.msra.mxu0 0.0
    %1839 = vmatprep.subr.mxu0 0.0
    %1840 = vmatpush2.msra.mxu0 0.0
    %1841 = vmatprep.subr.mxu0 0.0
    %1842 = vmatpush2.msra.mxu0 0.0
    %1843 = vmatprep.subr.mxu0 0.0
    %1844 = vmatpush2.msra.mxu0 0.0
    %1845 = vmatprep.subr.mxu0 0.0
    %1846 = vmatpush2.msra.mxu0 0.0
    %1847 = vmatprep.subr.mxu0 0.0
    %1848 = vmatpush2.msra.mxu0 0.0
    %1849 = vmatprep.subr.mxu0 0.0
    %1850 = vmatpush2.msra.mxu0 0.0
    %1851 = vmatprep.subr.mxu0 0.0
    %1852 = vmatpush2.msra.mxu0 0.0
    %1853 = vmatprep.subr.mxu0 0.0
    %1854 = vmatpush2.msra.mxu0 0.0
    %1855 = vmatprep.mubr.f32.mxu0 0.0
    %1856 = vmatmul.mubr.f32.gmra.mxu0 %v1786
    %v1857 = vpop.f32.mrf.mxu0
    %v1858 = vadd.f32 0.0, %v1857
    %v1859 = vpop.f32.mrf.mxu0
    %1860 = vmatprep.mubr.f32.mxu0 0.0
    %1861 = vmatmul.mubr.f32.gmra.mxu0 %v1789
    %v1862 = vpop.f32.mrf.mxu0
    %v1863 = vadd.f32 0.0, %v1862
    %v1864 = vpop.f32.mrf.mxu0
    %1865 = vdwg.mxu0
    %v1866 = vpack.c.bf16 %v1863, %v1858
    %v1867 = vld [vmem:[#allocation8] sm:$0xf]
    %v1868 = vld [vmem:[#allocation8 + $0x4] sm:$0xf]
    %v1869 = vld [vmem:[#allocation8 + $0x8] sm:$0xf]
    %v1870 = vld [vmem:[#allocation8 + $0xc] sm:$0xf]
    %v1871 = vld [vmem:[#allocation8 + $0x10] sm:$0xf]
    %v1872 = vld [vmem:[#allocation8 + $0x14] sm:$0xf]
    %v1873 = vld [vmem:[#allocation8 + $0x18] sm:$0xf]
    %v1874 = vld [vmem:[#allocation8 + $0x1c] sm:$0xf]
    %v1875 = vld [vmem:[#allocation8 + $0x20] sm:$0xf]
    %v1876 = vld [vmem:[#allocation8 + $0x24] sm:$0xf]
    %v1877 = vld [vmem:[#allocation8 + $0x28] sm:$0xf]
    %v1878 = vld [vmem:[#allocation8 + $0x2c] sm:$0xf]
    %v1879 = vld [vmem:[#allocation8 + $0x30] sm:$0xf]
    %v1880 = vld [vmem:[#allocation8 + $0x34] sm:$0xf]
    %v1881 = vld [vmem:[#allocation8 + $0x38] sm:$0xf]
    %v1882 = vld [vmem:[#allocation8 + $0x3c] sm:$0xf]
    %v1883 = vld [vmem:[#allocation17 + $0x7] sm:$0x1]
    %v1884 = vlaneseq
    %v1885 = vshrl.u32 %v1884, 7
    %v1886 = vsub.s32 0, %v1885
    %v1887 = vrot.slane %v1883, %v1886
    %v1904 = vunpack.c.l.b16 %v1867
    %v1905 = vunpack.c.l.b16 %v1868
    %v1906 = vunpack.c.l.b16 %v1869
    %v1907 = vunpack.c.l.b16 %v1870
    %v1908 = vunpack.c.l.b16 %v1871
    %v1909 = vunpack.c.l.b16 %v1872
    %v1910 = vunpack.c.l.b16 %v1873
    %v1911 = vunpack.c.l.b16 %v1874
    %v1912 = vunpack.c.l.b16 %v1875
    %v1913 = vunpack.c.l.b16 %v1876
    %v1914 = vunpack.c.l.b16 %v1877
    %v1915 = vunpack.c.l.b16 %v1878
    %v1916 = vunpack.c.l.b16 %v1879
    %v1917 = vunpack.c.l.b16 %v1880
    %v1918 = vunpack.c.l.b16 %v1881
    %v1919 = vunpack.c.l.b16 %v1882
    %v1920 = vpack.c.b16 %v1905, %v1904
    %v1921 = vpack.c.b16 %v1907, %v1906
    %v1922 = vpack.c.b16 %v1909, %v1908
    %v1923 = vpack.c.b16 %v1911, %v1910
    %v1924 = vpack.c.b16 %v1913, %v1912
    %v1925 = vpack.c.b16 %v1915, %v1914
    %v1926 = vpack.c.b16 %v1917, %v1916
    %v1927 = vpack.c.b16 %v1919, %v1918
    %1936 = vmatprep.subr.bf16.mxu0 0
    %1937 = vmatpush1.bf16.msra.mxu0 %v1927
    %1938 = vmatprep.subr.bf16.mxu0 0
    %1939 = vmatpush1.bf16.msra.mxu0 %v1926
    %1940 = vmatprep.subr.bf16.mxu0 0
    %1941 = vmatpush1.bf16.msra.mxu0 %v1925
    %1942 = vmatprep.subr.bf16.mxu0 0
    %1943 = vmatpush1.bf16.msra.mxu0 %v1924
    %1944 = vmatprep.subr.bf16.mxu0 0
    %1945 = vmatpush1.bf16.msra.mxu0 %v1923
    %1946 = vmatprep.subr.bf16.mxu0 0
    %1947 = vmatpush1.bf16.msra.mxu0 %v1922
    %1948 = vmatprep.subr.bf16.mxu0 0
    %1949 = vmatpush1.bf16.msra.mxu0 %v1921
    %1950 = vmatprep.subr.bf16.mxu0 0
    %1951 = vmatpush1.bf16.msra.mxu0 %v1920
    %1952 = vmatprep.subr.bf16.mxu0 0
    %1953 = vmatpush2.bf16.msra.mxu0 0
    %1954 = vmatprep.subr.bf16.mxu0 0
    %1955 = vmatpush2.bf16.msra.mxu0 0
    %1956 = vmatprep.subr.bf16.mxu0 0
    %1957 = vmatpush2.bf16.msra.mxu0 0
    %1958 = vmatprep.subr.bf16.mxu0 0
    %1959 = vmatpush2.bf16.msra.mxu0 0
    %1960 = vmatprep.subr.bf16.mxu0 0
    %1961 = vmatpush2.bf16.msra.mxu0 0
    %1962 = vmatprep.subr.bf16.mxu0 0
    %1963 = vmatpush2.bf16.msra.mxu0 0
    %1964 = vmatprep.subr.bf16.mxu0 0
    %1965 = vmatpush2.bf16.msra.mxu0 0
    %1966 = vmatprep.subr.bf16.mxu0 0
    %1967 = vmatpush2.bf16.msra.mxu0 0
    %1968 = vmatprep.mubr.bf16.mxu0 0
    %1969 = vmatmul.mubr.bf16.gmra.mxu0 %v1866
    %v1970 = vpop.f32.mrf.mxu0
    %v1971 = vadd.f32 %v1887, %v1970
    %v1972 = vpop.f32.mrf.mxu0
    %v1973 = vpop.f32.mrf.mxu0
    %v1974 = vadd.f32 %v1887, %v1973
    %v1975 = vpop.f32.mrf.mxu0
    %1976 = vdwg.mxu0
    %v1977 = vadd.f32 %v995, %v1971
    %v1978 = vadd.f32 %v996, %v1974
    %v1979 = vld [vmem:[#allocation17 + $0x8] sm:$0x1]
    %v1980 = vld [vmem:[#allocation17 + $0x9] sm:$0x1]
    %1981 = vadd.xlane.f32.xlu0 %v1977
    %v1982 = vpop.xlane.xlu0 %1981
    %1983 = vadd.xlane.f32.xlu0 %v1978
    %v1984 = vpop.xlane.xlu0 %1983
    %v1985 = vmul.f32 %v1982, %v238
    %v1986 = vmul.f32 %v1984, %v238
    %v1987 = vsub.f32 %v1977, %v1985
    %v1988 = vsub.f32 %v1978, %v1986
    %v1989 = vmul.f32 %v1987, %v1987
    %v1990 = vmul.f32 %v1988, %v1988
    %1991 = vadd.xlane.f32.xlu0 %v1989
    %v1992 = vpop.xlane.xlu0 %1991
    %1993 = vadd.xlane.f32.xlu0 %v1990
    %v1994 = vpop.xlane.xlu0 %1993
    %v1995 = vmul.f32 %v1992, %v238
    %v1996 = vmul.f32 %v1994, %v238
    %v1997 = vadd.f32 %v1995, 1e-05
    %v1998 = vadd.f32 %v1996, 1e-05
    %v1999 = vrsqrt.pop %v1997
    %v2000 = vrsqrt.pop %v1998
    %v2001 = vmul.f32 %v1987, %v1999
    %v2002 = vmul.f32 %v1988, %v2000
    %v2003 = vlaneseq
    %v2004 = vshrl.u32 %v2003, 7
    %v2005 = vsub.s32 0, %v2004
    %v2006 = vrot.slane %v1979, %v2005
    %v2007 = vmul.f32 %v2001, %v2006
    %v2008 = vmul.f32 %v2002, %v2006
    %v2009 = vlaneseq
    %v2010 = vshrl.u32 %v2009, 7
    %v2011 = vsub.s32 0, %v2010
    %v2012 = vrot.slane %v1980, %v2011
    %v2013 = vadd.f32 %v2007, %v2012
    %v2014 = vadd.f32 %v2008, %v2012
    %v2015 = vpack.c.bf16 %v2014, %v2013
    %v2016 = vld [vmem:[#allocation10] sm:$0xff]
    %v2017 = vld [vmem:[#allocation10 + $0x8] sm:$0xff]
    %v2018 = vld [vmem:[#allocation10 + $0x10] sm:$0xff]
    %v2019 = vld [vmem:[#allocation10 + $0x18] sm:$0xff]
    %v2020 = vld [vmem:[#allocation10 + $0x20] sm:$0xff]
    %v2021 = vld [vmem:[#allocation10 + $0x28] sm:$0xff]
    %v2022 = vld [vmem:[#allocation10 + $0x30] sm:$0xff]
    %v2023 = vld [vmem:[#allocation10 + $0x38] sm:$0xff]
    %v2024 = vld [vmem:[#allocation10 + $0x40] sm:$0xff]
    %v2025 = vld [vmem:[#allocation10 + $0x48] sm:$0xff]
    %v2026 = vld [vmem:[#allocation10 + $0x50] sm:$0xff]
    %v2027 = vld [vmem:[#allocation10 + $0x58] sm:$0xff]
    %v2028 = vld [vmem:[#allocation10 + $0x60] sm:$0xff]
    %v2029 = vld [vmem:[#allocation10 + $0x68] sm:$0xff]
    %v2030 = vld [vmem:[#allocation10 + $0x70] sm:$0xff]
    %v2031 = vld [vmem:[#allocation10 + $0x78] sm:$0xff]
    %v2032 = vld [vmem:[#allocation19] ss:$4 sm:$0x3]
    %v2034 = vlaneseq
    %v2035 = vshrl.u32 %v2034, 7
    %v2036 = vsub.s32 0, %v2035
    %v2037 = vrot.slane %v2032, %v2036
    %v2038 = vlaneseq
    %v2039 = vshrl.u32 %v2038, 7
    %v2040 = vsub.s32 1, %v2039
    %v2041 = vrot.slane %v2032, %v2040
    %v2060 = vunpack.c.l.b16 %v2016
    %v2061 = vunpack.c.h.b16 %v2016
    %v2062 = vunpack.c.l.b16 %v2017
    %v2063 = vunpack.c.h.b16 %v2017
    %v2064 = vunpack.c.l.b16 %v2018
    %v2065 = vunpack.c.h.b16 %v2018
    %v2066 = vunpack.c.l.b16 %v2019
    %v2067 = vunpack.c.h.b16 %v2019
    %v2068 = vunpack.c.l.b16 %v2020
    %v2069 = vunpack.c.h.b16 %v2020
    %v2070 = vunpack.c.l.b16 %v2021
    %v2071 = vunpack.c.h.b16 %v2021
    %v2072 = vunpack.c.l.b16 %v2022
    %v2073 = vunpack.c.h.b16 %v2022
    %v2074 = vunpack.c.l.b16 %v2023
    %v2075 = vunpack.c.h.b16 %v2023
    %v2076 = vunpack.c.l.b16 %v2024
    %v2077 = vunpack.c.h.b16 %v2024
    %v2078 = vunpack.c.l.b16 %v2025
    %v2079 = vunpack.c.h.b16 %v2025
    %v2080 = vunpack.c.l.b16 %v2026
    %v2081 = vunpack.c.h.b16 %v2026
    %v2082 = vunpack.c.l.b16 %v2027
    %v2083 = vunpack.c.h.b16 %v2027
    %v2084 = vunpack.c.l.b16 %v2028
    %v2085 = vunpack.c.h.b16 %v2028
    %v2086 = vunpack.c.l.b16 %v2029
    %v2087 = vunpack.c.h.b16 %v2029
    %v2088 = vunpack.c.l.b16 %v2030
    %v2089 = vunpack.c.h.b16 %v2030
    %v2090 = vunpack.c.l.b16 %v2031
    %v2091 = vunpack.c.h.b16 %v2031
    %v2092 = vpack.c.b16 %v2062, %v2060
    %v2093 = vpack.c.b16 %v2063, %v2061
    %v2094 = vpack.c.b16 %v2066, %v2064
    %v2095 = vpack.c.b16 %v2067, %v2065
    %v2096 = vpack.c.b16 %v2070, %v2068
    %v2097 = vpack.c.b16 %v2071, %v2069
    %v2098 = vpack.c.b16 %v2074, %v2072
    %v2099 = vpack.c.b16 %v2075, %v2073
    %v2100 = vpack.c.b16 %v2078, %v2076
    %v2101 = vpack.c.b16 %v2079, %v2077
    %v2102 = vpack.c.b16 %v2082, %v2080
    %v2103 = vpack.c.b16 %v2083, %v2081
    %v2104 = vpack.c.b16 %v2086, %v2084
    %v2105 = vpack.c.b16 %v2087, %v2085
    %v2106 = vpack.c.b16 %v2090, %v2088
    %v2107 = vpack.c.b16 %v2091, %v2089
    %2124 = vmatprep.subr.bf16.mxu0 %v2107
    %2125 = vmatpush1.bf16.msra.mxu0 %v2106
    %2126 = vmatprep.subr.bf16.mxu0 %v2105
    %2127 = vmatpush1.bf16.msra.mxu0 %v2104
    %2128 = vmatprep.subr.bf16.mxu0 %v2103
    %2129 = vmatpush1.bf16.msra.mxu0 %v2102
    %2130 = vmatprep.subr.bf16.mxu0 %v2101
    %2131 = vmatpush1.bf16.msra.mxu0 %v2100
    %2132 = vmatprep.subr.bf16.mxu0 %v2099
    %2133 = vmatpush1.bf16.msra.mxu0 %v2098
    %2134 = vmatprep.subr.bf16.mxu0 %v2097
    %2135 = vmatpush1.bf16.msra.mxu0 %v2096
    %2136 = vmatprep.subr.bf16.mxu0 %v2095
    %2137 = vmatpush1.bf16.msra.mxu0 %v2094
    %2138 = vmatprep.subr.bf16.mxu0 %v2093
    %2139 = vmatpush1.bf16.msra.mxu0 %v2092
    %2140 = vmatprep.subr.bf16.mxu0 0
    %2141 = vmatpush2.bf16.msra.mxu0 0
    %2142 = vmatprep.subr.bf16.mxu0 0
    %2143 = vmatpush2.bf16.msra.mxu0 0
    %2144 = vmatprep.subr.bf16.mxu0 0
    %2145 = vmatpush2.bf16.msra.mxu0 0
    %2146 = vmatprep.subr.bf16.mxu0 0
    %2147 = vmatpush2.bf16.msra.mxu0 0
    %2148 = vmatprep.subr.bf16.mxu0 0
    %2149 = vmatpush2.bf16.msra.mxu0 0
    %2150 = vmatprep.subr.bf16.mxu0 0
    %2151 = vmatpush2.bf16.msra.mxu0 0
    %2152 = vmatprep.subr.bf16.mxu0 0
    %2153 = vmatpush2.bf16.msra.mxu0 0
    %2154 = vmatprep.subr.bf16.mxu0 0
    %2155 = vmatpush2.bf16.msra.mxu0 0
    %2156 = vmatprep.mubr.bf16.mxu0 0
    %2157 = vmatmul.mubr.bf16.gmra.mxu0 %v2015
    %v2158 = vpop.f32.mrf.mxu0
    %v2159 = vadd.f32 %v2037, %v2158
    %v2160 = vpop.f32.mrf.mxu0
    %v2161 = vadd.f32 %v2041, %v2160
    %v2162 = vpop.f32.mrf.mxu0
    %v2163 = vadd.f32 %v2037, %v2162
    %v2164 = vpop.f32.mrf.mxu0
    %v2165 = vadd.f32 %v2041, %v2164
    %2166 = vdwg.mxu0
    %v2167 = vld [vmem:[#allocation11] sm:$0xff]
    %v2168 = vld [vmem:[#allocation11 + $0x8] sm:$0xff]
    %v2169 = vlaneseq
    %v2170 = vshrl.u32 %v2169, 7
    %v2171 = vsub.s32 0, %v2170
    %v2172 = vrot.slane %v2159, %v2171
    %v2173 = vlaneseq
    %v2174 = vshrl.u32 %v2173, 7
    %v2175 = vsub.s32 0, %v2174
    %v2176 = vrot.slane %v2161, %v2175
    %v2177 = vmul.f32 %v2172, %v2167
    %v2178 = vmul.f32 %v2176, %v2168
    %v2179 = vld [vmem:[#allocation11 + $0x10] sm:$0xff]
    %v2180 = vld [vmem:[#allocation11 + $0x18] sm:$0xff]
    %v2181 = vlaneseq
    %v2182 = vshrl.u32 %v2181, 7
    %v2183 = vsub.s32 1, %v2182
    %v2184 = vrot.slane %v2159, %v2183
    %v2185 = vlaneseq
    %v2186 = vshrl.u32 %v2185, 7
    %v2187 = vsub.s32 1, %v2186
    %v2188 = vrot.slane %v2161, %v2187
    %v2189 = vmul.f32 %v2184, %v2179
    %v2190 = vmul.f32 %v2188, %v2180
    %v2191 = vadd.f32 %v2177, %v2189
    %v2192 = vadd.f32 %v2178, %v2190
    %v2193 = vld [vmem:[#allocation11 + $0x20] sm:$0xff]
    %v2194 = vld [vmem:[#allocation11 + $0x28] sm:$0xff]
    %v2195 = vlaneseq
    %v2196 = vshrl.u32 %v2195, 7
    %v2197 = vsub.s32 2, %v2196
    %v2198 = vrot.slane %v2159, %v2197
    %v2199 = vlaneseq
    %v2200 = vshrl.u32 %v2199, 7
    %v2201 = vsub.s32 2, %v2200
    %v2202 = vrot.slane %v2161, %v2201
    %v2203 = vmul.f32 %v2198, %v2193
    %v2204 = vmul.f32 %v2202, %v2194
    %v2205 = vadd.f32 %v2191, %v2203
    %v2206 = vadd.f32 %v2192, %v2204
    %v2207 = vld [vmem:[#allocation11 + $0x30] sm:$0xff]
    %v2208 = vld [vmem:[#allocation11 + $0x38] sm:$0xff]
    %v2209 = vlaneseq
    %v2210 = vshrl.u32 %v2209, 7
    %v2211 = vsub.s32 3, %v2210
    %v2212 = vrot.slane %v2159, %v2211
    %v2213 = vlaneseq
    %v2214 = vshrl.u32 %v2213, 7
    %v2215 = vsub.s32 3, %v2214
    %v2216 = vrot.slane %v2161, %v2215
    %v2217 = vmul.f32 %v2212, %v2207
    %v2218 = vmul.f32 %v2216, %v2208
    %v2219 = vadd.f32 %v2205, %v2217
    %v2220 = vadd.f32 %v2206, %v2218
    %v2221 = vld [vmem:[#allocation11 + $0x40] sm:$0xff]
    %v2222 = vld [vmem:[#allocation11 + $0x48] sm:$0xff]
    %v2223 = vlaneseq
    %v2224 = vshrl.u32 %v2223, 7
    %v2225 = vsub.s32 4, %v2224
    %v2226 = vrot.slane %v2159, %v2225
    %v2227 = vlaneseq
    %v2228 = vshrl.u32 %v2227, 7
    %v2229 = vsub.s32 4, %v2228
    %v2230 = vrot.slane %v2161, %v2229
    %v2231 = vmul.f32 %v2226, %v2221
    %v2232 = vmul.f32 %v2230, %v2222
    %v2233 = vadd.f32 %v2219, %v2231
    %v2234 = vadd.f32 %v2220, %v2232
    %v2235 = vld [vmem:[#allocation11 + $0x50] sm:$0xff]
    %v2236 = vld [vmem:[#allocation11 + $0x58] sm:$0xff]
    %v2237 = vlaneseq
    %v2238 = vshrl.u32 %v2237, 7
    %v2239 = vsub.s32 5, %v2238
    %v2240 = vrot.slane %v2159, %v2239
    %v2241 = vlaneseq
    %v2242 = vshrl.u32 %v2241, 7
    %v2243 = vsub.s32 5, %v2242
    %v2244 = vrot.slane %v2161, %v2243
    %v2245 = vmul.f32 %v2240, %v2235
    %v2246 = vmul.f32 %v2244, %v2236
    %v2247 = vadd.f32 %v2233, %v2245
    %v2248 = vadd.f32 %v2234, %v2246
    %v2249 = vld [vmem:[#allocation11 + $0x60] sm:$0xff]
    %v2250 = vld [vmem:[#allocation11 + $0x68] sm:$0xff]
    %v2251 = vlaneseq
    %v2252 = vshrl.u32 %v2251, 7
    %v2253 = vsub.s32 6, %v2252
    %v2254 = vrot.slane %v2159, %v2253
    %v2255 = vlaneseq
    %v2256 = vshrl.u32 %v2255, 7
    %v2257 = vsub.s32 6, %v2256
    %v2258 = vrot.slane %v2161, %v2257
    %v2259 = vmul.f32 %v2254, %v2249
    %v2260 = vmul.f32 %v2258, %v2250
    %v2261 = vadd.f32 %v2247, %v2259
    %v2262 = vadd.f32 %v2248, %v2260
    %v2263 = vld [vmem:[#allocation11 + $0x70] sm:$0xff]
    %v2264 = vld [vmem:[#allocation11 + $0x78] sm:$0xff]
    %v2265 = vlaneseq
    %v2266 = vshrl.u32 %v2265, 7
    %v2267 = vsub.s32 7, %v2266
    %v2268 = vrot.slane %v2159, %v2267
    %v2269 = vlaneseq
    %v2270 = vshrl.u32 %v2269, 7
    %v2271 = vsub.s32 7, %v2270
    %v2272 = vrot.slane %v2161, %v2271
    %v2273 = vmul.f32 %v2268, %v2263
    %v2274 = vmul.f32 %v2272, %v2264
    %v2275 = vadd.f32 %v2261, %v2273
    %v2276 = vadd.f32 %v2262, %v2274
    %v2277 = vlaneseq
    %v2278 = vshrl.u32 %v2277, 7
    %v2279 = vsub.s32 0, %v2278
    %v2280 = vrot.slane %v2163, %v2279
    %v2281 = vlaneseq
    %v2282 = vshrl.u32 %v2281, 7
    %v2283 = vsub.s32 0, %v2282
    %v2284 = vrot.slane %v2165, %v2283
    %v2285 = vmul.f32 %v2280, %v2167
    %v2286 = vmul.f32 %v2284, %v2168
    %v2287 = vlaneseq
    %v2288 = vshrl.u32 %v2287, 7
    %v2289 = vsub.s32 1, %v2288
    %v2290 = vrot.slane %v2163, %v2289
    %v2291 = vlaneseq
    %v2292 = vshrl.u32 %v2291, 7
    %v2293 = vsub.s32 1, %v2292
    %v2294 = vrot.slane %v2165, %v2293
    %v2295 = vmul.f32 %v2290, %v2179
    %v2296 = vmul.f32 %v2294, %v2180
    %v2297 = vadd.f32 %v2285, %v2295
    %v2298 = vadd.f32 %v2286, %v2296
    %v2299 = vlaneseq
    %v2300 = vshrl.u32 %v2299, 7
    %v2301 = vsub.s32 2, %v2300
    %v2302 = vrot.slane %v2163, %v2301
    %v2303 = vlaneseq
    %v2304 = vshrl.u32 %v2303, 7
    %v2305 = vsub.s32 2, %v2304
    %v2306 = vrot.slane %v2165, %v2305
    %v2307 = vmul.f32 %v2302, %v2193
    %v2308 = vmul.f32 %v2306, %v2194
    %v2309 = vadd.f32 %v2297, %v2307
    %v2310 = vadd.f32 %v2298, %v2308
    %v2311 = vlaneseq
    %v2312 = vshrl.u32 %v2311, 7
    %v2313 = vsub.s32 3, %v2312
    %v2314 = vrot.slane %v2163, %v2313
    %v2315 = vlaneseq
    %v2316 = vshrl.u32 %v2315, 7
    %v2317 = vsub.s32 3, %v2316
    %v2318 = vrot.slane %v2165, %v2317
    %v2319 = vmul.f32 %v2314, %v2207
    %v2320 = vmul.f32 %v2318, %v2208
    %v2321 = vadd.f32 %v2309, %v2319
    %v2322 = vadd.f32 %v2310, %v2320
    %v2323 = vlaneseq
    %v2324 = vshrl.u32 %v2323, 7
    %v2325 = vsub.s32 4, %v2324
    %v2326 = vrot.slane %v2163, %v2325
    %v2327 = vlaneseq
    %v2328 = vshrl.u32 %v2327, 7
    %v2329 = vsub.s32 4, %v2328
    %v2330 = vrot.slane %v2165, %v2329
    %v2331 = vmul.f32 %v2326, %v2221
    %v2332 = vmul.f32 %v2330, %v2222
    %v2333 = vadd.f32 %v2321, %v2331
    %v2334 = vadd.f32 %v2322, %v2332
    %v2335 = vlaneseq
    %v2336 = vshrl.u32 %v2335, 7
    %v2337 = vsub.s32 5, %v2336
    %v2338 = vrot.slane %v2163, %v2337
    %v2339 = vlaneseq
    %v2340 = vshrl.u32 %v2339, 7
    %v2341 = vsub.s32 5, %v2340
    %v2342 = vrot.slane %v2165, %v2341
    %v2343 = vmul.f32 %v2338, %v2235
    %v2344 = vmul.f32 %v2342, %v2236
    %v2345 = vadd.f32 %v2333, %v2343
    %v2346 = vadd.f32 %v2334, %v2344
    %v2347 = vlaneseq
    %v2348 = vshrl.u32 %v2347, 7
    %v2349 = vsub.s32 6, %v2348
    %v2350 = vrot.slane %v2163, %v2349
    %v2351 = vlaneseq
    %v2352 = vshrl.u32 %v2351, 7
    %v2353 = vsub.s32 6, %v2352
    %v2354 = vrot.slane %v2165, %v2353
    %v2355 = vmul.f32 %v2350, %v2249
    %v2356 = vmul.f32 %v2354, %v2250
    %v2357 = vadd.f32 %v2345, %v2355
    %v2358 = vadd.f32 %v2346, %v2356
    %v2359 = vlaneseq
    %v2360 = vshrl.u32 %v2359, 7
    %v2361 = vsub.s32 7, %v2360
    %v2362 = vrot.slane %v2163, %v2361
    %v2363 = vlaneseq
    %v2364 = vshrl.u32 %v2363, 7
    %v2365 = vsub.s32 7, %v2364
    %v2366 = vrot.slane %v2165, %v2365
    %v2367 = vmul.f32 %v2362, %v2263
    %v2368 = vmul.f32 %v2366, %v2264
    %v2369 = vadd.f32 %v2357, %v2367
    %v2370 = vadd.f32 %v2358, %v2368
    %s2371 = scalar_lea.vmem [#allocation19], 1
    %v2372 = vld [vmem:[%s2371] ss:$4 sm:$0x3]
    %v2374 = vlaneseq
    %v2375 = vshrl.u32 %v2374, 7
    %v2376 = vsub.s32 0, %v2375
    %v2377 = vrot.slane %v2372, %v2376
    %v2378 = vlaneseq
    %v2379 = vshrl.u32 %v2378, 7
    %v2380 = vsub.s32 1, %v2379
    %v2381 = vrot.slane %v2372, %v2380
    %v2384 = vmul.f32 %v2275, %v2377
    %v2385 = vmul.f32 %v2276, %v2381
    %v2386 = vmul.f32 %v2369, %v2377
    %v2387 = vmul.f32 %v2370, %v2381
    %s2388 = scalar_lea.vmem [#allocation19], 2
    %v2389 = vld [vmem:[%s2388] ss:$4 sm:$0x3]
    %v2391 = vlaneseq
    %v2392 = vshrl.u32 %v2391, 7
    %v2393 = vsub.s32 0, %v2392
    %v2394 = vrot.slane %v2389, %v2393
    %v2395 = vlaneseq
    %v2396 = vshrl.u32 %v2395, 7
    %v2397 = vsub.s32 1, %v2396
    %v2398 = vrot.slane %v2389, %v2397
    %v2401 = vadd.f32 %v2384, %v2394
    %v2402 = vadd.f32 %v2385, %v2398
    %v2403 = vadd.f32 %v2386, %v2394
    %v2404 = vadd.f32 %v2387, %v2398
    %v2405 = vmul.f32 %v2401, 0.5
    %v2406 = vmul.f32 %v2402, 0.5
    %v2407 = vmul.f32 %v2403, 0.5
    %v2408 = vmul.f32 %v2404, 0.5
    %v2409 = vtanh.pop %v2405
    %v2410 = vtanh.pop %v2406
    %v2411 = vtanh.pop %v2407
    %v2412 = vtanh.pop %v2408
    %v2413 = vmul.f32 %v2409, 0.5
    %v2414 = vmul.f32 %v2410, 0.5
    %v2415 = vmul.f32 %v2411, 0.5
    %v2416 = vmul.f32 %v2412, 0.5
    %v2417 = vadd.f32 %v2413, 0.5
    %v2418 = vadd.f32 %v2414, 0.5
    %v2419 = vadd.f32 %v2415, 0.5
    %v2420 = vadd.f32 %v2416, 0.5
    %v2421 = vmul.f32 %v2401, %v2417
    %v2422 = vmul.f32 %v2402, %v2418
    %v2423 = vmul.f32 %v2403, %v2419
    %v2424 = vmul.f32 %v2404, %v2420
    %v2425 = vpack.c.bf16 %v2423, %v2421
    %v2426 = vpack.c.bf16 %v2424, %v2422
    %v2427 = vld [vmem:[#allocation13] sm:$0xf]
    %v2428 = vld [vmem:[#allocation13 + $0x4] sm:$0xf]
    %v2429 = vld [vmem:[#allocation13 + $0x8] sm:$0xf]
    %v2430 = vld [vmem:[#allocation13 + $0xc] sm:$0xf]
    %v2431 = vld [vmem:[#allocation13 + $0x10] sm:$0xf]
    %v2432 = vld [vmem:[#allocation13 + $0x14] sm:$0xf]
    %v2433 = vld [vmem:[#allocation13 + $0x18] sm:$0xf]
    %v2434 = vld [vmem:[#allocation13 + $0x1c] sm:$0xf]
    %v2435 = vld [vmem:[#allocation13 + $0x20] sm:$0xf]
    %v2436 = vld [vmem:[#allocation13 + $0x24] sm:$0xf]
    %v2437 = vld [vmem:[#allocation13 + $0x28] sm:$0xf]
    %v2438 = vld [vmem:[#allocation13 + $0x2c] sm:$0xf]
    %v2439 = vld [vmem:[#allocation13 + $0x30] sm:$0xf]
    %v2440 = vld [vmem:[#allocation13 + $0x34] sm:$0xf]
    %v2441 = vld [vmem:[#allocation13 + $0x38] sm:$0xf]
    %v2442 = vld [vmem:[#allocation13 + $0x3c] sm:$0xf]
    %v2443 = vld [vmem:[#allocation13 + $0x40] sm:$0xf]
    %v2444 = vld [vmem:[#allocation13 + $0x44] sm:$0xf]
    %v2445 = vld [vmem:[#allocation13 + $0x48] sm:$0xf]
    %v2446 = vld [vmem:[#allocation13 + $0x4c] sm:$0xf]
    %v2447 = vld [vmem:[#allocation13 + $0x50] sm:$0xf]
    %v2448 = vld [vmem:[#allocation13 + $0x54] sm:$0xf]
    %v2449 = vld [vmem:[#allocation13 + $0x58] sm:$0xf]
    %v2450 = vld [vmem:[#allocation13 + $0x5c] sm:$0xf]
    %v2451 = vld [vmem:[#allocation13 + $0x60] sm:$0xf]
    %v2452 = vld [vmem:[#allocation13 + $0x64] sm:$0xf]
    %v2453 = vld [vmem:[#allocation13 + $0x68] sm:$0xf]
    %v2454 = vld [vmem:[#allocation13 + $0x6c] sm:$0xf]
    %v2455 = vld [vmem:[#allocation13 + $0x70] sm:$0xf]
    %v2456 = vld [vmem:[#allocation13 + $0x74] sm:$0xf]
    %v2457 = vld [vmem:[#allocation13 + $0x78] sm:$0xf]
    %v2458 = vld [vmem:[#allocation13 + $0x7c] sm:$0xf]
    %v2459 = vld [vmem:[#allocation17 + $0xa] sm:$0x1]
    %v2460 = vlaneseq
    %v2461 = vshrl.u32 %v2460, 7
    %v2462 = vsub.s32 0, %v2461
    %v2463 = vrot.slane %v2459, %v2462
    %v2496 = vunpack.c.l.b16 %v2427
    %v2497 = vunpack.c.l.b16 %v2428
    %v2498 = vunpack.c.l.b16 %v2429
    %v2499 = vunpack.c.l.b16 %v2430
    %v2500 = vunpack.c.l.b16 %v2431
    %v2501 = vunpack.c.l.b16 %v2432
    %v2502 = vunpack.c.l.b16 %v2433
    %v2503 = vunpack.c.l.b16 %v2434
    %v2504 = vunpack.c.l.b16 %v2435
    %v2505 = vunpack.c.l.b16 %v2436
    %v2506 = vunpack.c.l.b16 %v2437
    %v2507 = vunpack.c.l.b16 %v2438
    %v2508 = vunpack.c.l.b16 %v2439
    %v2509 = vunpack.c.l.b16 %v2440
    %v2510 = vunpack.c.l.b16 %v2441
    %v2511 = vunpack.c.l.b16 %v2442
    %v2512 = vunpack.c.l.b16 %v2443
    %v2513 = vunpack.c.l.b16 %v2444
    %v2514 = vunpack.c.l.b16 %v2445
    %v2515 = vunpack.c.l.b16 %v2446
    %v2516 = vunpack.c.l.b16 %v2447
    %v2517 = vunpack.c.l.b16 %v2448
    %v2518 = vunpack.c.l.b16 %v2449
    %v2519 = vunpack.c.l.b16 %v2450
    %v2520 = vunpack.c.l.b16 %v2451
    %v2521 = vunpack.c.l.b16 %v2452
    %v2522 = vunpack.c.l.b16 %v2453
    %v2523 = vunpack.c.l.b16 %v2454
    %v2524 = vunpack.c.l.b16 %v2455
    %v2525 = vunpack.c.l.b16 %v2456
    %v2526 = vunpack.c.l.b16 %v2457
    %v2527 = vunpack.c.l.b16 %v2458
    %v2528 = vpack.c.b16 %v2497, %v2496
    %v2529 = vpack.c.b16 %v2499, %v2498
    %v2530 = vpack.c.b16 %v2501, %v2500
    %v2531 = vpack.c.b16 %v2503, %v2502
    %v2532 = vpack.c.b16 %v2505, %v2504
    %v2533 = vpack.c.b16 %v2507, %v2506
    %v2534 = vpack.c.b16 %v2509, %v2508
    %v2535 = vpack.c.b16 %v2511, %v2510
    %v2536 = vpack.c.b16 %v2513, %v2512
    %v2537 = vpack.c.b16 %v2515, %v2514
    %v2538 = vpack.c.b16 %v2517, %v2516
    %v2539 = vpack.c.b16 %v2519, %v2518
    %v2540 = vpack.c.b16 %v2521, %v2520
    %v2541 = vpack.c.b16 %v2523, %v2522
    %v2542 = vpack.c.b16 %v2525, %v2524
    %v2543 = vpack.c.b16 %v2527, %v2526
    %2560 = vmatprep.subr.bf16.mxu0 0
    %2561 = vmatpush1.bf16.msra.mxu0 %v2535
    %2562 = vmatprep.subr.bf16.mxu0 0
    %2563 = vmatpush1.bf16.msra.mxu0 %v2534
    %2564 = vmatprep.subr.bf16.mxu0 0
    %2565 = vmatpush1.bf16.msra.mxu0 %v2533
    %2566 = vmatprep.subr.bf16.mxu0 0
    %2567 = vmatpush1.bf16.msra.mxu0 %v2532
    %2568 = vmatprep.subr.bf16.mxu0 0
    %2569 = vmatpush1.bf16.msra.mxu0 %v2531
    %2570 = vmatprep.subr.bf16.mxu0 0
    %2571 = vmatpush1.bf16.msra.mxu0 %v2530
    %2572 = vmatprep.subr.bf16.mxu0 0
    %2573 = vmatpush1.bf16.msra.mxu0 %v2529
    %2574 = vmatprep.subr.bf16.mxu0 0
    %2575 = vmatpush1.bf16.msra.mxu0 %v2528
    %2576 = vmatprep.subr.bf16.mxu0 0
    %2577 = vmatpush2.bf16.msra.mxu0 %v2543
    %2578 = vmatprep.subr.bf16.mxu0 0
    %2579 = vmatpush2.bf16.msra.mxu0 %v2542
    %2580 = vmatprep.subr.bf16.mxu0 0
    %2581 = vmatpush2.bf16.msra.mxu0 %v2541
    %2582 = vmatprep.subr.bf16.mxu0 0
    %2583 = vmatpush2.bf16.msra.mxu0 %v2540
    %2584 = vmatprep.subr.bf16.mxu0 0
    %2585 = vmatpush2.bf16.msra.mxu0 %v2539
    %2586 = vmatprep.subr.bf16.mxu0 0
    %2587 = vmatpush2.bf16.msra.mxu0 %v2538
    %2588 = vmatprep.subr.bf16.mxu0 0
    %2589 = vmatpush2.bf16.msra.mxu0 %v2537
    %2590 = vmatprep.subr.bf16.mxu0 0
    %2591 = vmatpush2.bf16.msra.mxu0 %v2536
    %2592 = vmatprep.mubr.bf16.mxu0 %v2426
    %2593 = vmatmul.mubr.bf16.gmra.mxu0 %v2425
    %v2594 = vpop.f32.mrf.mxu0
    %v2595 = vadd.f32 %v2463, %v2594
    %v2596 = vpop.f32.mrf.mxu0
    %v2597 = vpop.f32.mrf.mxu0
    %v2598 = vadd.f32 %v2463, %v2597
    %v2599 = vpop.f32.mrf.mxu0
    %2600 = vdwg.mxu0
    %v2601 = vadd.f32 %v1977, %v2595
    %v2602 = vadd.f32 %v1978, %v2598
    %v2603 = vld [vmem:[#allocation17 + $0xb] sm:$0x1]
    %v2604 = vld [vmem:[#allocation17 + $0xc] sm:$0x1]
    %2605 = vadd.xlane.f32.xlu0 %v2601
    %v2606 = vpop.xlane.xlu0 %2605
    %2607 = vadd.xlane.f32.xlu0 %v2602
    %v2608 = vpop.xlane.xlu0 %2607
    %v2609 = vmul.f32 %v2606, %v238
    %v2610 = vmul.f32 %v2608, %v238
    %v2611 = vsub.f32 %v2601, %v2609
    %v2612 = vsub.f32 %v2602, %v2610
    %v2613 = vmul.f32 %v2611, %v2611
    %v2614 = vmul.f32 %v2612, %v2612
    %2615 = vadd.xlane.f32.xlu0 %v2613
    %v2616 = vpop.xlane.xlu0 %2615
    %2617 = vadd.xlane.f32.xlu0 %v2614
    %v2618 = vpop.xlane.xlu0 %2617
    %v2619 = vmul.f32 %v2616, %v238
    %v2620 = vmul.f32 %v2618, %v238
    %v2621 = vadd.f32 %v2619, 1e-05
    %v2622 = vadd.f32 %v2620, 1e-05
    %v2623 = vrsqrt.pop %v2621
    %v2624 = vrsqrt.pop %v2622
    %v2625 = vmul.f32 %v2611, %v2623
    %v2626 = vmul.f32 %v2612, %v2624
    %v2627 = vlaneseq
    %v2628 = vshrl.u32 %v2627, 7
    %v2629 = vsub.s32 0, %v2628
    %v2630 = vrot.slane %v2603, %v2629
    %v2631 = vmul.f32 %v2625, %v2630
    %v2632 = vmul.f32 %v2626, %v2630
    %v2633 = vlaneseq
    %v2634 = vshrl.u32 %v2633, 7
    %v2635 = vsub.s32 0, %v2634
    %v2636 = vrot.slane %v2604, %v2635
    %v2637 = vadd.f32 %v2631, %v2636
    %v2638 = vadd.f32 %v2632, %v2636
    %v2639 = vld [vmem:[#allocation17 + $0xd] sm:$0x1]
    %v2640 = vld [vmem:[#allocation17 + $0xe] sm:$0x1]
    %s2641 = scalar_lea.vmem [#allocation20], 1
    %v2642 = vld [vmem:[%s2641] ss:$2 sm:$0xf]
    %v2643 = vld [vmem:[#allocation17 + $0xf] sm:$0x1]
    %2644 = vadd.xlane.f32.xlu0 %v2637
    %v2645 = vpop.xlane.xlu0 %2644
    %2646 = vadd.xlane.f32.xlu0 %v2638
    %v2647 = vpop.xlane.xlu0 %2646
    %v2648 = vmul.f32 %v2645, %v238
    %v2649 = vmul.f32 %v2647, %v238
    %v2650 = vsub.f32 %v2637, %v2648
    %v2651 = vsub.f32 %v2638, %v2649
    %v2652 = vmul.f32 %v2650, %v2650
    %v2653 = vmul.f32 %v2651, %v2651
    %2654 = vadd.xlane.f32.xlu0 %v2652
    %v2655 = vpop.xlane.xlu0 %2654
    %2656 = vadd.xlane.f32.xlu0 %v2653
    %v2657 = vpop.xlane.xlu0 %2656
    %v2658 = vmul.f32 %v2655, %v238
    %v2659 = vmul.f32 %v2657, %v238
    %v2660 = vadd.f32 %v2658, 1e-05
    %v2661 = vadd.f32 %v2659, 1e-05
    %v2662 = vrsqrt.pop %v2660
    %v2663 = vrsqrt.pop %v2661
    %v2664 = vmul.f32 %v2650, %v2662
    %v2665 = vmul.f32 %v2651, %v2663
    %v2666 = vlaneseq
    %v2667 = vshrl.u32 %v2666, 7
    %v2668 = vsub.s32 0, %v2667
    %v2669 = vrot.slane %v2639, %v2668
    %v2670 = vmul.f32 %v2664, %v2669
    %v2671 = vmul.f32 %v2665, %v2669
    %v2672 = vlaneseq
    %v2673 = vshrl.u32 %v2672, 7
    %v2674 = vsub.s32 0, %v2673
    %v2675 = vrot.slane %v2640, %v2674
    %v2676 = vadd.f32 %v2670, %v2675
    %v2677 = vadd.f32 %v2671, %v2675
    %v2678 = vpack.c.bf16 %v2677, %v2676
    %v2679 = vld [vmem:[#allocation14] sm:$0xff]
    %v2680 = vld [vmem:[#allocation14 + $0x8] sm:$0xff]
    %v2681 = vld [vmem:[#allocation14 + $0x10] sm:$0xff]
    %v2682 = vld [vmem:[#allocation14 + $0x18] sm:$0xff]
    %v2683 = vld [vmem:[#allocation14 + $0x20] sm:$0xff]
    %v2684 = vld [vmem:[#allocation14 + $0x28] sm:$0xff]
    %v2685 = vld [vmem:[#allocation14 + $0x30] sm:$0xff]
    %v2686 = vld [vmem:[#allocation14 + $0x38] sm:$0xff]
    %v2687 = vld [vmem:[#allocation14 + $0x40] sm:$0xff]
    %v2688 = vld [vmem:[#allocation14 + $0x48] sm:$0xff]
    %v2689 = vld [vmem:[#allocation14 + $0x50] sm:$0xff]
    %v2690 = vld [vmem:[#allocation14 + $0x58] sm:$0xff]
    %v2691 = vld [vmem:[#allocation14 + $0x60] sm:$0xff]
    %v2692 = vld [vmem:[#allocation14 + $0x68] sm:$0xff]
    %v2693 = vld [vmem:[#allocation14 + $0x70] sm:$0xff]
    %v2694 = vld [vmem:[#allocation14 + $0x78] sm:$0xff]
    %v2695 = vld [vmem:[#allocation14 + $0x80] sm:$0xff]
    %v2696 = vld [vmem:[#allocation14 + $0x88] sm:$0xff]
    %v2697 = vld [vmem:[#allocation14 + $0x90] sm:$0xff]
    %v2698 = vld [vmem:[#allocation14 + $0x98] sm:$0xff]
    %v2699 = vld [vmem:[#allocation14 + $0xa0] sm:$0xff]
    %v2700 = vld [vmem:[#allocation14 + $0xa8] sm:$0xff]
    %v2701 = vld [vmem:[#allocation14 + $0xb0] sm:$0xff]
    %v2702 = vld [vmem:[#allocation14 + $0xb8] sm:$0xff]
    %v2703 = vld [vmem:[#allocation14 + $0xc0] sm:$0xff]
    %v2704 = vld [vmem:[#allocation14 + $0xc8] sm:$0xff]
    %v2705 = vld [vmem:[#allocation14 + $0xd0] sm:$0xff]
    %v2706 = vld [vmem:[#allocation14 + $0xd8] sm:$0xff]
    %v2707 = vld [vmem:[#allocation14 + $0xe0] sm:$0xff]
    %v2708 = vld [vmem:[#allocation14 + $0xe8] sm:$0xff]
    %v2709 = vld [vmem:[#allocation14 + $0xf0] sm:$0xff]
    %v2710 = vld [vmem:[#allocation14 + $0xf8] sm:$0xff]
    %v2712 = vlaneseq
    %v2713 = vshrl.u32 %v2712, 7
    %v2714 = vsub.s32 0, %v2713
    %v2715 = vrot.slane %v2642, %v2714
    %v2716 = vlaneseq
    %v2717 = vshrl.u32 %v2716, 7
    %v2718 = vsub.s32 1, %v2717
    %v2719 = vrot.slane %v2642, %v2718
    %v2720 = vlaneseq
    %v2721 = vshrl.u32 %v2720, 7
    %v2722 = vsub.s32 2, %v2721
    %v2723 = vrot.slane %v2642, %v2722
    %v2724 = vlaneseq
    %v2725 = vshrl.u32 %v2724, 7
    %v2726 = vsub.s32 3, %v2725
    %v2727 = vrot.slane %v2642, %v2726
    %v2764 = vunpack.c.l.b16 %v2679
    %v2765 = vunpack.c.h.b16 %v2679
    %v2766 = vunpack.c.l.b16 %v2680
    %v2767 = vunpack.c.h.b16 %v2680
    %v2768 = vunpack.c.l.b16 %v2681
    %v2769 = vunpack.c.h.b16 %v2681
    %v2770 = vunpack.c.l.b16 %v2682
    %v2771 = vunpack.c.h.b16 %v2682
    %v2772 = vunpack.c.l.b16 %v2683
    %v2773 = vunpack.c.h.b16 %v2683
    %v2774 = vunpack.c.l.b16 %v2684
    %v2775 = vunpack.c.h.b16 %v2684
    %v2776 = vunpack.c.l.b16 %v2685
    %v2777 = vunpack.c.h.b16 %v2685
    %v2778 = vunpack.c.l.b16 %v2686
    %v2779 = vunpack.c.h.b16 %v2686
    %v2780 = vunpack.c.l.b16 %v2687
    %v2781 = vunpack.c.h.b16 %v2687
    %v2782 = vunpack.c.l.b16 %v2688
    %v2783 = vunpack.c.h.b16 %v2688
    %v2784 = vunpack.c.l.b16 %v2689
    %v2785 = vunpack.c.h.b16 %v2689
    %v2786 = vunpack.c.l.b16 %v2690
    %v2787 = vunpack.c.h.b16 %v2690
    %v2788 = vunpack.c.l.b16 %v2691
    %v2789 = vunpack.c.h.b16 %v2691
    %v2790 = vunpack.c.l.b16 %v2692
    %v2791 = vunpack.c.h.b16 %v2692
    %v2792 = vunpack.c.l.b16 %v2693
    %v2793 = vunpack.c.h.b16 %v2693
    %v2794 = vunpack.c.l.b16 %v2694
    %v2795 = vunpack.c.h.b16 %v2694
    %v2796 = vunpack.c.l.b16 %v2695
    %v2797 = vunpack.c.h.b16 %v2695
    %v2798 = vunpack.c.l.b16 %v2696
    %v2799 = vunpack.c.h.b16 %v2696
    %v2800 = vunpack.c.l.b16 %v2697
    %v2801 = vunpack.c.h.b16 %v2697
    %v2802 = vunpack.c.l.b16 %v2698
    %v2803 = vunpack.c.h.b16 %v2698
    %v2804 = vunpack.c.l.b16 %v2699
    %v2805 = vunpack.c.h.b16 %v2699
    %v2806 = vunpack.c.l.b16 %v2700
    %v2807 = vunpack.c.h.b16 %v2700
    %v2808 = vunpack.c.l.b16 %v2701
    %v2809 = vunpack.c.h.b16 %v2701
    %v2810 = vunpack.c.l.b16 %v2702
    %v2811 = vunpack.c.h.b16 %v2702
    %v2812 = vunpack.c.l.b16 %v2703
    %v2813 = vunpack.c.h.b16 %v2703
    %v2814 = vunpack.c.l.b16 %v2704
    %v2815 = vunpack.c.h.b16 %v2704
    %v2816 = vunpack.c.l.b16 %v2705
    %v2817 = vunpack.c.h.b16 %v2705
    %v2818 = vunpack.c.l.b16 %v2706
    %v2819 = vunpack.c.h.b16 %v2706
    %v2820 = vunpack.c.l.b16 %v2707
    %v2821 = vunpack.c.h.b16 %v2707
    %v2822 = vunpack.c.l.b16 %v2708
    %v2823 = vunpack.c.h.b16 %v2708
    %v2824 = vunpack.c.l.b16 %v2709
    %v2825 = vunpack.c.h.b16 %v2709
    %v2826 = vunpack.c.l.b16 %v2710
    %v2827 = vunpack.c.h.b16 %v2710
    %v2828 = vpack.c.b16 %v2768, %v2764
    %v2829 = vpack.c.b16 %v2769, %v2765
    %v2830 = vpack.c.b16 %v2770, %v2766
    %v2831 = vpack.c.b16 %v2771, %v2767
    %v2832 = vpack.c.b16 %v2776, %v2772
    %v2833 = vpack.c.b16 %v2777, %v2773
    %v2834 = vpack.c.b16 %v2778, %v2774
    %v2835 = vpack.c.b16 %v2779, %v2775
    %v2836 = vpack.c.b16 %v2784, %v2780
    %v2837 = vpack.c.b16 %v2785, %v2781
    %v2838 = vpack.c.b16 %v2786, %v2782
    %v2839 = vpack.c.b16 %v2787, %v2783
    %v2840 = vpack.c.b16 %v2792, %v2788
    %v2841 = vpack.c.b16 %v2793, %v2789
    %v2842 = vpack.c.b16 %v2794, %v2790
    %v2843 = vpack.c.b16 %v2795, %v2791
    %v2844 = vpack.c.b16 %v2800, %v2796
    %v2845 = vpack.c.b16 %v2801, %v2797
    %v2846 = vpack.c.b16 %v2802, %v2798
    %v2847 = vpack.c.b16 %v2803, %v2799
    %v2848 = vpack.c.b16 %v2808, %v2804
    %v2849 = vpack.c.b16 %v2809, %v2805
    %v2850 = vpack.c.b16 %v2810, %v2806
    %v2851 = vpack.c.b16 %v2811, %v2807
    %v2852 = vpack.c.b16 %v2816, %v2812
    %v2853 = vpack.c.b16 %v2817, %v2813
    %v2854 = vpack.c.b16 %v2818, %v2814
    %v2855 = vpack.c.b16 %v2819, %v2815
    %v2856 = vpack.c.b16 %v2824, %v2820
    %v2857 = vpack.c.b16 %v2825, %v2821
    %v2858 = vpack.c.b16 %v2826, %v2822
    %v2859 = vpack.c.b16 %v2827, %v2823
    %2892 = vmatprep.subr.bf16.mxu0 %v2857
    %2893 = vmatpush1.bf16.msra.mxu0 %v2856
    %2894 = vmatprep.subr.bf16.mxu0 %v2853
    %2895 = vmatpush1.bf16.msra.mxu0 %v2852
    %2896 = vmatprep.subr.bf16.mxu0 %v2849
    %2897 = vmatpush1.bf16.msra.mxu0 %v2848
    %2898 = vmatprep.subr.bf16.mxu0 %v2845
    %2899 = vmatpush1.bf16.msra.mxu0 %v2844
    %2900 = vmatprep.subr.bf16.mxu0 %v2841
    %2901 = vmatpush1.bf16.msra.mxu0 %v2840
    %2902 = vmatprep.subr.bf16.mxu0 %v2837
    %2903 = vmatpush1.bf16.msra.mxu0 %v2836
    %2904 = vmatprep.subr.bf16.mxu0 %v2833
    %2905 = vmatpush1.bf16.msra.mxu0 %v2832
    %2906 = vmatprep.subr.bf16.mxu0 %v2829
    %2907 = vmatpush1.bf16.msra.mxu0 %v2828
    %2908 = vmatprep.subr.bf16.mxu0 0
    %2909 = vmatpush2.bf16.msra.mxu0 0
    %2910 = vmatprep.subr.bf16.mxu0 0
    %2911 = vmatpush2.bf16.msra.mxu0 0
    %2912 = vmatprep.subr.bf16.mxu0 0
    %2913 = vmatpush2.bf16.msra.mxu0 0
    %2914 = vmatprep.subr.bf16.mxu0 0
    %2915 = vmatpush2.bf16.msra.mxu0 0
    %2916 = vmatprep.subr.bf16.mxu0 0
    %2917 = vmatpush2.bf16.msra.mxu0 0
    %2918 = vmatprep.subr.bf16.mxu0 0
    %2919 = vmatpush2.bf16.msra.mxu0 0
    %2920 = vmatprep.subr.bf16.mxu0 0
    %2921 = vmatpush2.bf16.msra.mxu0 0
    %2922 = vmatprep.subr.bf16.mxu0 0
    %2923 = vmatpush2.bf16.msra.mxu0 0
    %2924 = vmatprep.mubr.bf16.mxu0 0
    %2925 = vmatmul.mubr.bf16.gmra.mxu0 %v2678
    %v2926 = vpop.f32.mrf.mxu0
    %v2927 = vadd.f32 %v2715, %v2926
    %v2928 = vpop.f32.mrf.mxu0
    %v2929 = vadd.f32 %v2719, %v2928
    %v2930 = vpop.f32.mrf.mxu0
    %v2931 = vadd.f32 %v2715, %v2930
    %v2932 = vpop.f32.mrf.mxu0
    %v2933 = vadd.f32 %v2719, %v2932
    %2934 = vdwg.mxu0
    %2935 = vmatprep.subr.bf16.mxu0 %v2859
    %2936 = vmatpush1.bf16.msra.mxu0 %v2858
    %2937 = vmatprep.subr.bf16.mxu0 %v2855
    %2938 = vmatpush1.bf16.msra.mxu0 %v2854
    %2939 = vmatprep.subr.bf16.mxu0 %v2851
    %2940 = vmatpush1.bf16.msra.mxu0 %v2850
    %2941 = vmatprep.subr.bf16.mxu0 %v2847
    %2942 = vmatpush1.bf16.msra.mxu0 %v2846
    %2943 = vmatprep.subr.bf16.mxu0 %v2843
    %2944 = vmatpush1.bf16.msra.mxu0 %v2842
    %2945 = vmatprep.subr.bf16.mxu0 %v2839
    %2946 = vmatpush1.bf16.msra.mxu0 %v2838
    %2947 = vmatprep.subr.bf16.mxu0 %v2835
    %2948 = vmatpush1.bf16.msra.mxu0 %v2834
    %2949 = vmatprep.subr.bf16.mxu0 %v2831
    %2950 = vmatpush1.bf16.msra.mxu0 %v2830
    %2951 = vmatprep.subr.bf16.mxu0 0
    %2952 = vmatpush2.bf16.msra.mxu0 0
    %2953 = vmatprep.subr.bf16.mxu0 0
    %2954 = vmatpush2.bf16.msra.mxu0 0
    %2955 = vmatprep.subr.bf16.mxu0 0
    %2956 = vmatpush2.bf16.msra.mxu0 0
    %2957 = vmatprep.subr.bf16.mxu0 0
    %2958 = vmatpush2.bf16.msra.mxu0 0
    %2959 = vmatprep.subr.bf16.mxu0 0
    %2960 = vmatpush2.bf16.msra.mxu0 0
    %2961 = vmatprep.subr.bf16.mxu0 0
    %2962 = vmatpush2.bf16.msra.mxu0 0
    %2963 = vmatprep.subr.bf16.mxu0 0
    %2964 = vmatpush2.bf16.msra.mxu0 0
    %2965 = vmatprep.subr.bf16.mxu0 0
    %2966 = vmatpush2.bf16.msra.mxu0 0
    %2967 = vmatprep.mubr.bf16.mxu0 0
    %2968 = vmatmul.mubr.bf16.gmra.mxu0 %v2678
    %v2969 = vpop.f32.mrf.mxu0
    %v2970 = vadd.f32 %v2723, %v2969
    %v2971 = vpop.f32.mrf.mxu0
    %v2972 = vadd.f32 %v2727, %v2971
    %v2973 = vpop.f32.mrf.mxu0
    %v2974 = vadd.f32 %v2723, %v2973
    %v2975 = vpop.f32.mrf.mxu0
    %v2976 = vadd.f32 %v2727, %v2975
    %2977 = vdwg.mxu0
    %v2978 = vmul.f32 %v2927, 0.5
    %v2979 = vmul.f32 %v2929, 0.5
    %v2980 = vmul.f32 %v2970, 0.5
    %v2981 = vmul.f32 %v2972, 0.5
    %v2982 = vmul.f32 %v2931, 0.5
    %v2983 = vmul.f32 %v2933, 0.5
    %v2984 = vmul.f32 %v2974, 0.5
    %v2985 = vmul.f32 %v2976, 0.5
    %v2986 = vtanh.pop %v2978
    %v2987 = vtanh.pop %v2979
    %v2988 = vtanh.pop %v2980
    %v2989 = vtanh.pop %v2981
    %v2990 = vtanh.pop %v2982
    %v2991 = vtanh.pop %v2983
    %v2992 = vtanh.pop %v2984
    %v2993 = vtanh.pop %v2985
    %v2994 = vmul.f32 %v2986, 0.5
    %v2995 = vmul.f32 %v2987, 0.5
    %v2996 = vmul.f32 %v2988, 0.5
    %v2997 = vmul.f32 %v2989, 0.5
    %v2998 = vmul.f32 %v2990, 0.5
    %v2999 = vmul.f32 %v2991, 0.5
    %v3000 = vmul.f32 %v2992, 0.5
    %v3001 = vmul.f32 %v2993, 0.5
    %v3002 = vadd.f32 %v2994, 0.5
    %v3003 = vadd.f32 %v2995, 0.5
    %v3004 = vadd.f32 %v2996, 0.5
    %v3005 = vadd.f32 %v2997, 0.5
    %v3006 = vadd.f32 %v2998, 0.5
    %v3007 = vadd.f32 %v2999, 0.5
    %v3008 = vadd.f32 %v3000, 0.5
    %v3009 = vadd.f32 %v3001, 0.5
    %v3010 = vmul.f32 %v2927, %v3002
    %v3011 = vmul.f32 %v2929, %v3003
    %v3012 = vmul.f32 %v2970, %v3004
    %v3013 = vmul.f32 %v2972, %v3005
    %v3014 = vmul.f32 %v2931, %v3006
    %v3015 = vmul.f32 %v2933, %v3007
    %v3016 = vmul.f32 %v2974, %v3008
    %v3017 = vmul.f32 %v2976, %v3009
    %v3018 = vpack.c.bf16 %v3014, %v3010
    %v3019 = vpack.c.bf16 %v3015, %v3011
    %v3020 = vpack.c.bf16 %v3016, %v3012
    %v3021 = vpack.c.bf16 %v3017, %v3013
    %v3022 = vld [vmem:[#allocation16] sm:$0xf]
    %v3023 = vld [vmem:[#allocation16 + $0x4] sm:$0xf]
    %v3024 = vld [vmem:[#allocation16 + $0x8] sm:$0xf]
    %v3025 = vld [vmem:[#allocation16 + $0xc] sm:$0xf]
    %v3026 = vld [vmem:[#allocation16 + $0x10] sm:$0xf]
    %v3027 = vld [vmem:[#allocation16 + $0x14] sm:$0xf]
    %v3028 = vld [vmem:[#allocation16 + $0x18] sm:$0xf]
    %v3029 = vld [vmem:[#allocation16 + $0x1c] sm:$0xf]
    %v3030 = vld [vmem:[#allocation16 + $0x20] sm:$0xf]
    %v3031 = vld [vmem:[#allocation16 + $0x24] sm:$0xf]
    %v3032 = vld [vmem:[#allocation16 + $0x28] sm:$0xf]
    %v3033 = vld [vmem:[#allocation16 + $0x2c] sm:$0xf]
    %v3034 = vld [vmem:[#allocation16 + $0x30] sm:$0xf]
    %v3035 = vld [vmem:[#allocation16 + $0x34] sm:$0xf]
    %v3036 = vld [vmem:[#allocation16 + $0x38] sm:$0xf]
    %v3037 = vld [vmem:[#allocation16 + $0x3c] sm:$0xf]
    %v3038 = vld [vmem:[#allocation16 + $0x40] sm:$0xf]
    %v3039 = vld [vmem:[#allocation16 + $0x44] sm:$0xf]
    %v3040 = vld [vmem:[#allocation16 + $0x48] sm:$0xf]
    %v3041 = vld [vmem:[#allocation16 + $0x4c] sm:$0xf]
    %v3042 = vld [vmem:[#allocation16 + $0x50] sm:$0xf]
    %v3043 = vld [vmem:[#allocation16 + $0x54] sm:$0xf]
    %v3044 = vld [vmem:[#allocation16 + $0x58] sm:$0xf]
    %v3045 = vld [vmem:[#allocation16 + $0x5c] sm:$0xf]
    %v3046 = vld [vmem:[#allocation16 + $0x60] sm:$0xf]
    %v3047 = vld [vmem:[#allocation16 + $0x64] sm:$0xf]
    %v3048 = vld [vmem:[#allocation16 + $0x68] sm:$0xf]
    %v3049 = vld [vmem:[#allocation16 + $0x6c] sm:$0xf]
    %v3050 = vld [vmem:[#allocation16 + $0x70] sm:$0xf]
    %v3051 = vld [vmem:[#allocation16 + $0x74] sm:$0xf]
    %v3052 = vld [vmem:[#allocation16 + $0x78] sm:$0xf]
    %v3053 = vld [vmem:[#allocation16 + $0x7c] sm:$0xf]
    %v3054 = vld [vmem:[#allocation16 + $0x80] sm:$0xf]
    %v3055 = vld [vmem:[#allocation16 + $0x84] sm:$0xf]
    %v3056 = vld [vmem:[#allocation16 + $0x88] sm:$0xf]
    %v3057 = vld [vmem:[#allocation16 + $0x8c] sm:$0xf]
    %v3058 = vld [vmem:[#allocation16 + $0x90] sm:$0xf]
    %v3059 = vld [vmem:[#allocation16 + $0x94] sm:$0xf]
    %v3060 = vld [vmem:[#allocation16 + $0x98] sm:$0xf]
    %v3061 = vld [vmem:[#allocation16 + $0x9c] sm:$0xf]
    %v3062 = vld [vmem:[#allocation16 + $0xa0] sm:$0xf]
    %v3063 = vld [vmem:[#allocation16 + $0xa4] sm:$0xf]
    %v3064 = vld [vmem:[#allocation16 + $0xa8] sm:$0xf]
    %v3065 = vld [vmem:[#allocation16 + $0xac] sm:$0xf]
    %v3066 = vld [vmem:[#allocation16 + $0xb0] sm:$0xf]
    %v3067 = vld [vmem:[#allocation16 + $0xb4] sm:$0xf]
    %v3068 = vld [vmem:[#allocation16 + $0xb8] sm:$0xf]
    %v3069 = vld [vmem:[#allocation16 + $0xbc] sm:$0xf]
    %v3070 = vld [vmem:[#allocation16 + $0xc0] sm:$0xf]
    %v3071 = vld [vmem:[#allocation16 + $0xc4] sm:$0xf]
    %v3072 = vld [vmem:[#allocation16 + $0xc8] sm:$0xf]
    %v3073 = vld [vmem:[#allocation16 + $0xcc] sm:$0xf]
    %v3074 = vld [vmem:[#allocation16 + $0xd0] sm:$0xf]
    %v3075 = vld [vmem:[#allocation16 + $0xd4] sm:$0xf]
    %v3076 = vld [vmem:[#allocation16 + $0xd8] sm:$0xf]
    %v3077 = vld [vmem:[#allocation16 + $0xdc] sm:$0xf]
    %v3078 = vld [vmem:[#allocation16 + $0xe0] sm:$0xf]
    %v3079 = vld [vmem:[#allocation16 + $0xe4] sm:$0xf]
    %v3080 = vld [vmem:[#allocation16 + $0xe8] sm:$0xf]
    %v3081 = vld [vmem:[#allocation16 + $0xec] sm:$0xf]
    %v3082 = vld [vmem:[#allocation16 + $0xf0] sm:$0xf]
    %v3083 = vld [vmem:[#allocation16 + $0xf4] sm:$0xf]
    %v3084 = vld [vmem:[#allocation16 + $0xf8] sm:$0xf]
    %v3085 = vld [vmem:[#allocation16 + $0xfc] sm:$0xf]
    %v3086 = vlaneseq
    %v3087 = vshrl.u32 %v3086, 7
    %v3088 = vsub.s32 0, %v3087
    %v3089 = vrot.slane %v2643, %v3088
    %v3154 = vunpack.c.l.b16 %v3022
    %v3155 = vunpack.c.l.b16 %v3023
    %v3156 = vunpack.c.l.b16 %v3024
    %v3157 = vunpack.c.l.b16 %v3025
    %v3158 = vunpack.c.l.b16 %v3026
    %v3159 = vunpack.c.l.b16 %v3027
    %v3160 = vunpack.c.l.b16 %v3028
    %v3161 = vunpack.c.l.b16 %v3029
    %v3162 = vunpack.c.l.b16 %v3030
    %v3163 = vunpack.c.l.b16 %v3031
    %v3164 = vunpack.c.l.b16 %v3032
    %v3165 = vunpack.c.l.b16 %v3033
    %v3166 = vunpack.c.l.b16 %v3034
    %v3167 = vunpack.c.l.b16 %v3035
    %v3168 = vunpack.c.l.b16 %v3036
    %v3169 = vunpack.c.l.b16 %v3037
    %v3170 = vunpack.c.l.b16 %v3038
    %v3171 = vunpack.c.l.b16 %v3039
    %v3172 = vunpack.c.l.b16 %v3040
    %v3173 = vunpack.c.l.b16 %v3041
    %v3174 = vunpack.c.l.b16 %v3042
    %v3175 = vunpack.c.l.b16 %v3043
    %v3176 = vunpack.c.l.b16 %v3044
    %v3177 = vunpack.c.l.b16 %v3045
    %v3178 = vunpack.c.l.b16 %v3046
    %v3179 = vunpack.c.l.b16 %v3047
    %v3180 = vunpack.c.l.b16 %v3048
    %v3181 = vunpack.c.l.b16 %v3049
    %v3182 = vunpack.c.l.b16 %v3050
    %v3183 = vunpack.c.l.b16 %v3051
    %v3184 = vunpack.c.l.b16 %v3052
    %v3185 = vunpack.c.l.b16 %v3053
    %v3186 = vunpack.c.l.b16 %v3054
    %v3187 = vunpack.c.l.b16 %v3055
    %v3188 = vunpack.c.l.b16 %v3056
    %v3189 = vunpack.c.l.b16 %v3057
    %v3190 = vunpack.c.l.b16 %v3058
    %v3191 = vunpack.c.l.b16 %v3059
    %v3192 = vunpack.c.l.b16 %v3060
    %v3193 = vunpack.c.l.b16 %v3061
    %v3194 = vunpack.c.l.b16 %v3062
    %v3195 = vunpack.c.l.b16 %v3063
    %v3196 = vunpack.c.l.b16 %v3064
    %v3197 = vunpack.c.l.b16 %v3065
    %v3198 = vunpack.c.l.b16 %v3066
    %v3199 = vunpack.c.l.b16 %v3067
    %v3200 = vunpack.c.l.b16 %v3068
    %v3201 = vunpack.c.l.b16 %v3069
    %v3202 = vunpack.c.l.b16 %v3070
    %v3203 = vunpack.c.l.b16 %v3071
    %v3204 = vunpack.c.l.b16 %v3072
    %v3205 = vunpack.c.l.b16 %v3073
    %v3206 = vunpack.c.l.b16 %v3074
    %v3207 = vunpack.c.l.b16 %v3075
    %v3208 = vunpack.c.l.b16 %v3076
    %v3209 = vunpack.c.l.b16 %v3077
    %v3210 = vunpack.c.l.b16 %v3078
    %v3211 = vunpack.c.l.b16 %v3079
    %v3212 = vunpack.c.l.b16 %v3080
    %v3213 = vunpack.c.l.b16 %v3081
    %v3214 = vunpack.c.l.b16 %v3082
    %v3215 = vunpack.c.l.b16 %v3083
    %v3216 = vunpack.c.l.b16 %v3084
    %v3217 = vunpack.c.l.b16 %v3085
    %v3218 = vpack.c.b16 %v3155, %v3154
    %v3219 = vpack.c.b16 %v3157, %v3156
    %v3220 = vpack.c.b16 %v3159, %v3158
    %v3221 = vpack.c.b16 %v3161, %v3160
    %v3222 = vpack.c.b16 %v3163, %v3162
    %v3223 = vpack.c.b16 %v3165, %v3164
    %v3224 = vpack.c.b16 %v3167, %v3166
    %v3225 = vpack.c.b16 %v3169, %v3168
    %v3226 = vpack.c.b16 %v3171, %v3170
    %v3227 = vpack.c.b16 %v3173, %v3172
    %v3228 = vpack.c.b16 %v3175, %v3174
    %v3229 = vpack.c.b16 %v3177, %v3176
    %v3230 = vpack.c.b16 %v3179, %v3178
    %v3231 = vpack.c.b16 %v3181, %v3180
    %v3232 = vpack.c.b16 %v3183, %v3182
    %v3233 = vpack.c.b16 %v3185, %v3184
    %v3234 = vpack.c.b16 %v3187, %v3186
    %v3235 = vpack.c.b16 %v3189, %v3188
    %v3236 = vpack.c.b16 %v3191, %v3190
    %v3237 = vpack.c.b16 %v3193, %v3192
    %v3238 = vpack.c.b16 %v3195, %v3194
    %v3239 = vpack.c.b16 %v3197, %v3196
    %v3240 = vpack.c.b16 %v3199, %v3198
    %v3241 = vpack.c.b16 %v3201, %v3200
    %v3242 = vpack.c.b16 %v3203, %v3202
    %v3243 = vpack.c.b16 %v3205, %v3204
    %v3244 = vpack.c.b16 %v3207, %v3206
    %v3245 = vpack.c.b16 %v3209, %v3208
    %v3246 = vpack.c.b16 %v3211, %v3210
    %v3247 = vpack.c.b16 %v3213, %v3212
    %v3248 = vpack.c.b16 %v3215, %v3214
    %v3249 = vpack.c.b16 %v3217, %v3216
    %3282 = vmatprep.subr.bf16.mxu0 0
    %3283 = vmatpush1.bf16.msra.mxu0 %v3225
    %3284 = vmatprep.subr.bf16.mxu0 0
    %3285 = vmatpush1.bf16.msra.mxu0 %v3224
    %3286 = vmatprep.subr.bf16.mxu0 0
    %3287 = vmatpush1.bf16.msra.mxu0 %v3223
    %3288 = vmatprep.subr.bf16.mxu0 0
    %3289 = vmatpush1.bf16.msra.mxu0 %v3222
    %3290 = vmatprep.subr.bf16.mxu0 0
    %3291 = vmatpush1.bf16.msra.mxu0 %v3221
    %3292 = vmatprep.subr.bf16.mxu0 0
    %3293 = vmatpush1.bf16.msra.mxu0 %v3220
    %3294 = vmatprep.subr.bf16.mxu0 0
    %3295 = vmatpush1.bf16.msra.mxu0 %v3219
    %3296 = vmatprep.subr.bf16.mxu0 0
    %3297 = vmatpush1.bf16.msra.mxu0 %v3218
    %3298 = vmatprep.subr.bf16.mxu0 0
    %3299 = vmatpush2.bf16.msra.mxu0 %v3233
    %3300 = vmatprep.subr.bf16.mxu0 0
    %3301 = vmatpush2.bf16.msra.mxu0 %v3232
    %3302 = vmatprep.subr.bf16.mxu0 0
    %3303 = vmatpush2.bf16.msra.mxu0 %v3231
    %3304 = vmatprep.subr.bf16.mxu0 0
    %3305 = vmatpush2.bf16.msra.mxu0 %v3230
    %3306 = vmatprep.subr.bf16.mxu0 0
    %3307 = vmatpush2.bf16.msra.mxu0 %v3229
    %3308 = vmatprep.subr.bf16.mxu0 0
    %3309 = vmatpush2.bf16.msra.mxu0 %v3228
    %3310 = vmatprep.subr.bf16.mxu0 0
    %3311 = vmatpush2.bf16.msra.mxu0 %v3227
    %3312 = vmatprep.subr.bf16.mxu0 0
    %3313 = vmatpush2.bf16.msra.mxu0 %v3226
    %3314 = vmatprep.mubr.bf16.mxu0 %v3019
    %3315 = vmatmul.mubr.bf16.gmra.mxu0 %v3018
    %v3316 = vpop.f32.mrf.mxu0
    %v3317 = vadd.f32 %v3089, %v3316
    %v3318 = vpop.f32.mrf.mxu0
    %v3319 = vpop.f32.mrf.mxu0
    %v3320 = vadd.f32 %v3089, %v3319
    %v3321 = vpop.f32.mrf.mxu0
    %3322 = vdwg.mxu0
    %3323 = vmatprep.subr.bf16.mxu0 0
    %3324 = vmatpush1.bf16.msra.mxu0 %v3241
    %3325 = vmatprep.subr.bf16.mxu0 0
    %3326 = vmatpush1.bf16.msra.mxu0 %v3240
    %3327 = vmatprep.subr.bf16.mxu0 0
    %3328 = vmatpush1.bf16.msra.mxu0 %v3239
    %3329 = vmatprep.subr.bf16.mxu0 0
    %3330 = vmatpush1.bf16.msra.mxu0 %v3238
    %3331 = vmatprep.subr.bf16.mxu0 0
    %3332 = vmatpush1.bf16.msra.mxu0 %v3237
    %3333 = vmatprep.subr.bf16.mxu0 0
    %3334 = vmatpush1.bf16.msra.mxu0 %v3236
    %3335 = vmatprep.subr.bf16.mxu0 0
    %3336 = vmatpush1.bf16.msra.mxu0 %v3235
    %3337 = vmatprep.subr.bf16.mxu0 0
    %3338 = vmatpush1.bf16.msra.mxu0 %v3234
    %3339 = vmatprep.subr.bf16.mxu0 0
    %3340 = vmatpush2.bf16.msra.mxu0 %v3249
    %3341 = vmatprep.subr.bf16.mxu0 0
    %3342 = vmatpush2.bf16.msra.mxu0 %v3248
    %3343 = vmatprep.subr.bf16.mxu0 0
    %3344 = vmatpush2.bf16.msra.mxu0 %v3247
    %3345 = vmatprep.subr.bf16.mxu0 0
    %3346 = vmatpush2.bf16.msra.mxu0 %v3246
    %3347 = vmatprep.subr.bf16.mxu0 0
    %3348 = vmatpush2.bf16.msra.mxu0 %v3245
    %3349 = vmatprep.subr.bf16.mxu0 0
    %3350 = vmatpush2.bf16.msra.mxu0 %v3244
    %3351 = vmatprep.subr.bf16.mxu0 0
    %3352 = vmatpush2.bf16.msra.mxu0 %v3243
    %3353 = vmatprep.subr.bf16.mxu0 0
    %3354 = vmatpush2.bf16.msra.mxu0 %v3242
    %3355 = vmatprep.mubr.bf16.mxu0 %v3021
    %3356 = vmatmul.mubr.bf16.gmra.mxu0 %v3020
    %v3357 = vpop.f32.mrf.mxu0
    %v3358 = vadd.f32 %v3317, %v3357
    %v3359 = vpop.f32.mrf.mxu0
    %v3360 = vpop.f32.mrf.mxu0
    %v3361 = vadd.f32 %v3320, %v3360
    %v3362 = vpop.f32.mrf.mxu0
    %3363 = vdwg.mxu0
    %v3364 = vmul.f32 %v3358, 0.5
    %v3365 = vmul.f32 %v3361, 0.5
    %v3366 = vadd.f32 %v2601, %v3364
    %v3367 = vadd.f32 %v2602, %v3365
    %v3368 = vld [vmem:[#allocation17 + $0x10] sm:$0x1]
    %v3369 = vld [vmem:[#allocation17 + $0x11] sm:$0x1]
    %3370 = vadd.xlane.f32.xlu0 %v3366
    %v3371 = vpop.xlane.xlu0 %3370
    %3372 = vadd.xlane.f32.xlu0 %v3367
    %v3373 = vpop.xlane.xlu0 %3372
    %v3374 = vmul.f32 %v3371, %v238
    %v3375 = vmul.f32 %v3373, %v238
    %v3376 = vsub.f32 %v3366, %v3374
    %v3377 = vsub.f32 %v3367, %v3375
    %v3378 = vmul.f32 %v3376, %v3376
    %v3379 = vmul.f32 %v3377, %v3377
    %3380 = vadd.xlane.f32.xlu0 %v3378
    %v3381 = vpop.xlane.xlu0 %3380
    %3382 = vadd.xlane.f32.xlu0 %v3379
    %v3383 = vpop.xlane.xlu0 %3382
    %v3384 = vmul.f32 %v3381, %v238
    %v3385 = vmul.f32 %v3383, %v238
    %v3386 = vadd.f32 %v3384, 1e-05
    %v3387 = vadd.f32 %v3385, 1e-05
    %v3388 = vrsqrt.pop %v3386
    %v3389 = vrsqrt.pop %v3387
    %v3390 = vmul.f32 %v3376, %v3388
    %v3391 = vmul.f32 %v3377, %v3389
    %v3392 = vlaneseq
    %v3393 = vshrl.u32 %v3392, 7
    %v3394 = vsub.s32 0, %v3393
    %v3395 = vrot.slane %v3368, %v3394
    %v3396 = vmul.f32 %v3390, %v3395
    %v3397 = vmul.f32 %v3391, %v3395
    %v3398 = vlaneseq
    %v3399 = vshrl.u32 %v3398, 7
    %v3400 = vsub.s32 0, %v3399
    %v3401 = vrot.slane %v3369, %v3400
    %v3402 = vadd.f32 %v3396, %v3401
    %v3403 = vadd.f32 %v3397, %v3401
    %3404 = vst [vmem:[#allocation23] sm:$0xff] %v3402
    %3405 = vst [vmem:[#allocation23 + $0x8] sm:$0xff] %v3403
    // Predicated region
    $region122: #{conformer_block.1} parent=1 // pred_check
      _
    $region123: #{conformer_block.1} parent=1 // pred_check_branch
      %3407 = sbr.rel (0) target = $region125
    $region124: #{conformer_block.1} parent=1 // pred_region
      %s3409 = ssub.s32 256, 256
      %3410 = vsyncadd [#allocation4], %s3409
      %s3411 = sshll.u32 [#allocation23], 4
      %s3412 = int_to_ptr.vmem [resolvable:$true] %s3411
      %3417 = dma.vmem_to_hbm [thread:$0]  %s3412, 256, %s17, [#allocation4], 128, 128, 8
    $region125: #{conformer_block.1} parent=1 // pred_fallthru
      _
    // Predicated region
    $region126: #{conformer_block.1} parent=1 // pred_check
      _
    $region127: #{conformer_block.1} parent=1 // pred_check_branch
      %3419 = sbr.rel (0) target = $region129
    $region128: #{conformer_block.1} parent=1 // pred_region
      %3420 = dma.done [#allocation4], 256
    $region129: #{conformer_block.1} parent=1 // pred_fallthru
      _
    %3421 = vsyncpa [#allocation3], 1
    %3422 = vsyncpa [#allocation6], 1
    %3423 = vsyncpa [#allocation9], 1
    %3424 = vsyncpa [#allocation12], 1
    %3425 = vsyncpa [#allocation15], 1
    %3426 = vsyncpa [#allocation18], 1
    %3427 = vsyncpa [#allocation21], 1
    %3428 = vsyncpa [#allocation4], 1

</llo_original>
